<compile_context>
chip_gen: v7x
topology: tpu7x:2x2x1
jax: 0.10.0
libtpu: 0.0.40
codegen_flags: <defaults>
</compile_context>

<pallas_src>
import functools

import jax
import jax.numpy as jnp
from jax import lax
from jax.experimental import pallas as pl
from jax.experimental.pallas import tpu as pltpu


def _bag_sum_kernel(idx_ref, table_ref, out_ref, *,
                    feature_count, width, key_tile, count_dtype):
    # idx_ref:   (BATCH_TILE, F*W)     int32          (same block for every K step)
    # table_ref: (KEY_TILE, E_pad)     compute dtype  (K-th tile of the table)
    # out_ref:   (BATCH_TILE, F*E_pad) f32            (resident accumulator across K)
    ki = pl.program_id(1)

    @pl.when(ki == 0)
    def _init():
        out_ref[...] = jnp.zeros_like(out_ref)

    batch_tile = idx_ref.shape[0]

    # K-invariant local iota; shift the (small) index block into tile-local
    # coordinates instead of adding key_base to the big (BT, K) iota each step.
    local_keys = lax.broadcasted_iota(jnp.int32, (batch_tile, key_tile), 1)
    idx_local = idx_ref[...] - ki * key_tile           # (BT, F*W) int32

    table_blk = table_ref[...]                         # already in compute dtype

    partials = []
    for f in range(feature_count):
        idx_f = idx_local[:, f * width:(f + 1) * width]          # static slice
        agg = jnp.zeros((batch_tile, key_tile), count_dtype)
        # Static unroll over the padded bag width (VPU compare+add); sentinel -1
        # slots and out-of-tile ids never match, so they contribute nothing.
        for w in range(width):
            agg = agg + (idx_f[:, w:w + 1] == local_keys).astype(count_dtype)
        # Gather+sum as an MXU matmul: (BT, K_tile) @ (K_tile, E_pad) -> (BT, E_pad).
        partials.append(
            jnp.dot(agg.astype(table_blk.dtype), table_blk,
                    preferred_element_type=jnp.float32))

    # One lane-dense accumulate/store of the full (BT, F*E_pad) block.
    out_ref[...] += jnp.concatenate(partials, axis=-1)


def _device_kind():
    try:
        return jax.devices()[0].device_kind.lower()
    except Exception:
        return ""


def embedding_bag_sum_concat(indices, table, minibatch_size, feature_count, *,
                             batch_tile=None, key_tile=512,
                             compute_dtype=jnp.bfloat16, count_dtype=None):
    """Pallas equivalent of EmbeddingOperator._compute_sum_concat.

    indices: (minibatch_size * feature_count, W) int32 padded per-bag key ids;
             padded slots must be negative (e.g. -1).
    table:   (num_keys, embedding_size) float32 -- self._data
    returns: (minibatch_size, feature_count * embedding_size) float32
    """
    num_bags, width = indices.shape
    num_keys, emb = table.shape
    assert num_bags == minibatch_size * feature_count

    kind = _device_kind()
    is_v6 = "v6" in kind
    is_v7 = ("v7" in kind) or ("7x" in kind)

    # Batch tile: 128 rows already fill the v5e MXU; 256 feeds the 256-wide
    # v6e/v7x MXUs, but on v7x only when >=2 batch blocks remain for the 2 TCs.
    if batch_tile is None:
        if is_v6 and minibatch_size > 128:
            batch_tile = 256
        elif is_v7 and pl.cdiv(minibatch_size, 256) >= 2:
            batch_tile = 256
        else:
            batch_tile = 128

    # Count dtype: bf16 VPU exists on v6e/v7x (counts <= W are exact in bf16);
    # elsewhere keep f32 counts and cast once before the dot.
    if count_dtype is None:
        if (is_v6 or is_v7) and jnp.dtype(compute_dtype) == jnp.dtype(jnp.bfloat16):
            count_dtype = jnp.bfloat16
        else:
            count_dtype = jnp.float32

    # Lane-dense output: pad the per-feature embedding width so F*E_pad is a
    # multiple of 128 lanes (avoids masked vst.msk partial stores).
    e_pad = emb
    if (feature_count * emb) % 128 != 0:
        e_pad = pl.cdiv(emb, 128) * 128

    # Key tile: big enough to amortize per-step overhead and reach HBM roofline,
    # never larger than the 128-rounded vocab.
    key_tile = int(max(128, min(key_tile, pl.cdiv(num_keys, 128) * 128)))
    k_pad = pl.cdiv(num_keys, key_tile) * key_tile
    k_steps = k_pad // key_tile

    # (B, F*W) layout so each batch-tile step emits the final concat layout.
    idx = indices.reshape(minibatch_size, feature_count * width).astype(jnp.int32)
    b_pad = pl.cdiv(minibatch_size, batch_tile) * batch_tile
    if b_pad != minibatch_size:
        idx = jnp.concatenate(
            [idx, jnp.full((b_pad - minibatch_size, feature_count * width), -1,
                           jnp.int32)], axis=0)

    # Cast the table ONCE to the compute dtype (bf16 halves the dominant HBM
    # stream + table VMEM); pad vocab/embedding dims with zero rows/cols.
    table_p = table.astype(compute_dtype)
    if k_pad != num_keys or e_pad != emb:
        table_p = jnp.zeros((k_pad, e_pad), compute_dtype).at[:num_keys, :emb].set(table_p)

    # Table stream: deeper buffering once tiles are large and the K loop is long.
    if k_steps >= 4:
        table_spec = pl.BlockSpec((key_tile, e_pad), lambda bi, ki: (ki, 0),
                                  pipeline_mode=pl.Buffered(3))
    else:
        table_spec = pl.BlockSpec((key_tile, e_pad), lambda bi, ki: (ki, 0))

    # Rough VMEM budget (double-buffered ins/outs + per-feature agg), clamped to
    # stay v7x (64 MiB physical) safe.
    itemsize = jnp.dtype(compute_dtype).itemsize
    need = (2 * batch_tile * feature_count * width * 4
            + 3 * key_tile * e_pad * itemsize
            + 2 * batch_tile * feature_count * e_pad * 4
            + feature_count * batch_tile * key_tile * 4
            + (4 << 20))
    vmem_limit = int(min(max(need, 32 << 20), 48 << 20))

    grid = (b_pad // batch_tile, k_steps)   # reduction (K) axis last

    out = pl.pallas_call(
        functools.partial(_bag_sum_kernel, feature_count=feature_count,
                          width=width, key_tile=key_tile, count_dtype=count_dtype),
        out_shape=jax.ShapeDtypeStruct((b_pad, feature_count * e_pad), jnp.float32),
        grid_spec=pltpu.PrefetchScalarGridSpec(
            num_scalar_prefetch=0,
            grid=grid,
            in_specs=[
                # indices tile: fixed across K
                pl.BlockSpec((batch_tile, feature_count * width),
                             lambda bi, ki: (bi, 0)),
                # table tile: walks the (padded) vocab -- never fully resident
                table_spec,
            ],
            out_specs=pl.BlockSpec((batch_tile, feature_count * e_pad),
                                   lambda bi, ki: (bi, 0)),
        ),
        compiler_params=pltpu.CompilerParams(
            dimension_semantics=("parallel", "arbitrary"),
            vmem_limit_bytes=vmem_limit,
        ),
    )(idx, table_p)

    # Drop batch padding; strip per-feature lane padding if any.
    out = out[:minibatch_size]
    if e_pad != emb:
        out = out.reshape(minibatch_size, feature_count, e_pad)[:, :, :emb]
        out = out.reshape(minibatch_size, feature_count * emb)
    return out


if __name__ == "__main__":
    # Small deterministic setup consistent with the module's _compute_sum_concat:
    #   embedding_size E=64, minibatch B=8, feature_count F=2, W=4 padded ids
    #   per bag, vocab of 1000 keys (len(self._keys)) -> exercises vocab padding
    #   and a 2-step K reduction with the resident output accumulator.
    B, F, W, E, NUM_KEYS = 8, 2, 4, 64, 1000

    key = jax.random.PRNGKey(0)
    k_tab, k_idx, k_msk = jax.random.split(key, 3)
    table = jax.random.normal(k_tab, (NUM_KEYS, E), dtype=jnp.float32)      # self._data
    indices = jax.random.randint(k_idx, (B * F, W), 0, NUM_KEYS, dtype=jnp.int32)

    # Ragged bags: padded slots use sentinel -1 (contribute nothing).
    pad_mask = jax.random.bernoulli(k_msk, 0.25, (B * F, W))
    pad_mask = pad_mask.at[:, 0].set(False)           # keep >=1 valid id per bag
    indices = jnp.where(pad_mask, -1, indices)
    # Force a duplicate key inside one bag (sum counts multiplicity).
    indices = indices.at[0, 1].set(indices[0, 0])

    out = embedding_bag_sum_concat(indices, table, B, F)
    out = jax.block_until_ready(out)
    assert out.shape == (B, F * E)

    # Pure-JAX references of embedding_bag(mode='sum') + concat reshape.
    valid = (indices >= 0)[..., None]
    safe_idx = jnp.clip(indices, 0, NUM_KEYS - 1)
    ref_f32 = jnp.where(valid, jnp.take(table, safe_idx, axis=0), 0.0)
    ref_f32 = ref_f32.sum(axis=1).reshape(B, F * E)
    tab_bf = table.astype(jnp.bfloat16).astype(jnp.float32)   # matches bf16 table feed
    ref_bf = jnp.where(valid, jnp.take(tab_bf, safe_idx, axis=0), 0.0)
    ref_bf = ref_bf.sum(axis=1).reshape(B, F * E)

    assert jnp.allclose(out, ref_bf, atol=1e-4, rtol=1e-4)     # exact modulo bf16 cast
    assert jnp.allclose(out, ref_f32, atol=5e-2, rtol=5e-2)    # vs f32 module semantics

    # Parity-critical path: full f32 compute matches torch f32 embedding_bag tightly.
    out_f32 = embedding_bag_sum_concat(indices, table, B, F,
                                       compute_dtype=jnp.float32)
    out_f32 = jax.block_until_ready(out_f32)
    assert jnp.allclose(out_f32, ref_f32, atol=1e-5, rtol=1e-5)

    print("KERNEL_OK")
</pallas_src>

<mosaic_0001>
module attributes {stable_mosaic.version = 11 : i64} {
  func.func @_bag_sum_kernel(%arg0: i32, %arg1: i32, %arg2: memref<128x8xi32, #tpu.memory_space<vmem>>, %arg3: memref<512x64xbf16, #tpu.memory_space<vmem>>, %arg4: memref<128x128xf32, #tpu.memory_space<vmem>>) attributes {dimension_semantics = [#tpu.dimension_semantics<parallel>, #tpu.dimension_semantics<arbitrary>], iteration_bounds = array<i64: 1, 2>, scalar_prefetch = 0 : i64, scratch_operands = 0 : i64, tpu.core_type = #tpu.core_type<tc>, window_params = [{transform_indices = @transform_0, window_bounds = array<i64: 128, 8>}, {transform_indices = @transform_1, window_bounds = array<i64: 512, 64>}, {transform_indices = @transform_2, window_bounds = array<i64: 128, 128>}]} {
    %c0_i32 = arith.constant 0 : i32
    %0 = arith.cmpi eq, %arg1, %c0_i32 : i32
    %1 = arith.extui %0 : i1 to i32
    %c0_i32_0 = arith.constant 0 : i32
    %2 = arith.cmpi ne, %1, %c0_i32_0 : i32
    scf.if %2 {
      %cst_11 = arith.constant 0.000000e+00 : f32
      %69 = vector.broadcast %cst_11 : f32 to vector<128x128xf32>
      %c0_12 = arith.constant 0 : index
      %c0_13 = arith.constant 0 : index
      %70 = vector.load %arg4[%c0_12, %c0_13] : memref<128x128xf32, #tpu.memory_space<vmem>>, vector<128x128xf32>
      tpu.vector_store %arg4[%c0_12, %c0_13], %69 {strides = array<i32>} : memref<128x128xf32, #tpu.memory_space<vmem>>, vector<128x128xf32>,
    } else {
    }
    %3 = tpu.iota {dimensions = array<i32: 1>} : vector<128x512xi32>
    %c0 = arith.constant 0 : index
    %c0_1 = arith.constant 0 : index
    %4 = vector.load %arg2[%c0, %c0_1] : memref<128x8xi32, #tpu.memory_space<vmem>>, vector<128x8xi32>
    %c512_i32 = arith.constant 512 : i32
    %5 = arith.muli %arg1, %c512_i32 : i32
    %6 = vector.broadcast %5 : i32 to vector<128x8xi32>
    %7 = arith.subi %4, %6 : vector<128x8xi32>
    %c0_2 = arith.constant 0 : index
    %c0_3 = arith.constant 0 : index
    %8 = vector.load %arg3[%c0_2, %c0_3] : memref<512x64xbf16, #tpu.memory_space<vmem>>, vector<512x64xbf16>
    %9 = vector.extract_strided_slice %7 {offsets = [0, 0], sizes = [128, 4], strides = [1, 1]} : vector<128x8xi32> to vector<128x4xi32>
    %cst = arith.constant 0.000000e+00 : f32
    %10 = vector.broadcast %cst : f32 to vector<128x512xf32>
    %11 = vector.extract_strided_slice %9 {offsets = [0, 0], sizes = [128, 1], strides = [1, 1]} : vector<128x4xi32> to vector<128x1xi32>
    %12 = vector.broadcast %11 : vector<128x1xi32> to vector<128x512xi32>
    %13 = arith.cmpi eq, %12, %3 : vector<128x512xi32>
    %14 = arith.extui %13 : vector<128x512xi1> to vector<128x512xi32>
    %15 = arith.sitofp %14 : vector<128x512xi32> to vector<128x512xf32>
    %16 = arith.addf %10, %15 : vector<128x512xf32>
    %17 = vector.extract_strided_slice %9 {offsets = [0, 1], sizes = [128, 1], strides = [1, 1]} : vector<128x4xi32> to vector<128x1xi32>
    %18 = vector.broadcast %17 : vector<128x1xi32> to vector<128x512xi32>
    %19 = arith.cmpi eq, %18, %3 : vector<128x512xi32>
    %20 = arith.extui %19 : vector<128x512xi1> to vector<128x512xi32>
    %21 = arith.sitofp %20 : vector<128x512xi32> to vector<128x512xf32>
    %22 = arith.addf %16, %21 : vector<128x512xf32>
    %23 = vector.extract_strided_slice %9 {offsets = [0, 2], sizes = [128, 1], strides = [1, 1]} : vector<128x4xi32> to vector<128x1xi32>
    %24 = vector.broadcast %23 : vector<128x1xi32> to vector<128x512xi32>
    %25 = arith.cmpi eq, %24, %3 : vector<128x512xi32>
    %26 = arith.extui %25 : vector<128x512xi1> to vector<128x512xi32>
    %27 = arith.sitofp %26 : vector<128x512xi32> to vector<128x512xf32>
    %28 = arith.addf %22, %27 : vector<128x512xf32>
    %29 = vector.extract_strided_slice %9 {offsets = [0, 3], sizes = [128, 1], strides = [1, 1]} : vector<128x4xi32> to vector<128x1xi32>
    %30 = vector.broadcast %29 : vector<128x1xi32> to vector<128x512xi32>
    %31 = arith.cmpi eq, %30, %3 : vector<128x512xi32>
    %32 = arith.extui %31 : vector<128x512xi1> to vector<128x512xi32>
    %33 = arith.sitofp %32 : vector<128x512xi32> to vector<128x512xf32>
    %34 = arith.addf %28, %33 : vector<128x512xf32>
    %35 = arith.truncf %34 : vector<128x512xf32> to vector<128x512xbf16>
    %cst_4 = arith.constant dense<0.000000e+00> : vector<128x64xf32>
    %36 = tpu.matmul %35, %8, %cst_4 {dimension_numbers = #tpu.dot_dimension_numbers<[1], [0], [0], [1], [0, 0, 1, 1], [], []>} : vector<128x512xbf16>, vector<512x64xbf16>, vector<128x64xf32> -> vector<128x64xf32>
    %37 = vector.extract_strided_slice %7 {offsets = [0, 4], sizes = [128, 4], strides = [1, 1]} : vector<128x8xi32> to vector<128x4xi32>
    %cst_5 = arith.constant 0.000000e+00 : f32
    %38 = vector.broadcast %cst_5 : f32 to vector<128x512xf32>
    %39 = vector.extract_strided_slice %37 {offsets = [0, 0], sizes = [128, 1], strides = [1, 1]} : vector<128x4xi32> to vector<128x1xi32>
    %40 = vector.broadcast %39 : vector<128x1xi32> to vector<128x512xi32>
    %41 = arith.cmpi eq, %40, %3 : vector<128x512xi32>
    %42 = arith.extui %41 : vector<128x512xi1> to vector<128x512xi32>
    %43 = arith.sitofp %42 : vector<128x512xi32> to vector<128x512xf32>
    %44 = arith.addf %38, %43 : vector<128x512xf32>
    %45 = vector.extract_strided_slice %37 {offsets = [0, 1], sizes = [128, 1], strides = [1, 1]} : vector<128x4xi32> to vector<128x1xi32>
    %46 = vector.broadcast %45 : vector<128x1xi32> to vector<128x512xi32>
    %47 = arith.cmpi eq, %46, %3 : vector<128x512xi32>
    %48 = arith.extui %47 : vector<128x512xi1> to vector<128x512xi32>
    %49 = arith.sitofp %48 : vector<128x512xi32> to vector<128x512xf32>
    %50 = arith.addf %44, %49 : vector<128x512xf32>
    %51 = vector.extract_strided_slice %37 {offsets = [0, 2], sizes = [128, 1], strides = [1, 1]} : vector<128x4xi32> to vector<128x1xi32>
    %52 = vector.broadcast %51 : vector<128x1xi32> to vector<128x512xi32>
    %53 = arith.cmpi eq, %52, %3 : vector<128x512xi32>
    %54 = arith.extui %53 : vector<128x512xi1> to vector<128x512xi32>
    %55 = arith.sitofp %54 : vector<128x512xi32> to vector<128x512xf32>
    %56 = arith.addf %50, %55 : vector<128x512xf32>
    %57 = vector.extract_strided_slice %37 {offsets = [0, 3], sizes = [128, 1], strides = [1, 1]} : vector<128x4xi32> to vector<128x1xi32>
    %58 = vector.broadcast %57 : vector<128x1xi32> to vector<128x512xi32>
    %59 = arith.cmpi eq, %58, %3 : vector<128x512xi32>
    %60 = arith.extui %59 : vector<128x512xi1> to vector<128x512xi32>
    %61 = arith.sitofp %60 : vector<128x512xi32> to vector<128x512xf32>
    %62 = arith.addf %56, %61 : vector<128x512xf32>
    %63 = arith.truncf %62 : vector<128x512xf32> to vector<128x512xbf16>
    %cst_6 = arith.constant dense<0.000000e+00> : vector<128x64xf32>
    %64 = tpu.matmul %63, %8, %cst_6 {dimension_numbers = #tpu.dot_dimension_numbers<[1], [0], [0], [1], [0, 0, 1, 1], [], []>} : vector<128x512xbf16>, vector<512x64xbf16>, vector<128x64xf32> -> vector<128x64xf32>
    %c0_7 = arith.constant 0 : index
    %c0_8 = arith.constant 0 : index
    %65 = vector.load %arg4[%c0_7, %c0_8] : memref<128x128xf32, #tpu.memory_space<vmem>>, vector<128x128xf32>
    %66 = tpu.concatenate %36, %64 in 1 : vector<128x64xf32>, vector<128x64xf32> -> vector<128x128xf32>
    %67 = arith.addf %65, %66 : vector<128x128xf32>
    %c0_9 = arith.constant 0 : index
    %c0_10 = arith.constant 0 : index
    %68 = vector.load %arg4[%c0_9, %c0_10] : memref<128x128xf32, #tpu.memory_space<vmem>>, vector<128x128xf32>
    tpu.vector_store %arg4[%c0_9, %c0_10], %67 {strides = array<i32>} : memref<128x128xf32, #tpu.memory_space<vmem>>, vector<128x128xf32>,
    return
  }
  func.func @transform_0(%arg0: i32, %arg1: i32) -> (i32, i32) {
    %c0_i32 = arith.constant 0 : i32
    %c0_i32_0 = arith.constant 0 : i32
    return %arg0, %c0_i32 : i32, i32
  }
  func.func @transform_1(%arg0: i32, %arg1: i32) -> (i32, i32) {
    %c0_i32 = arith.constant 0 : i32
    %c0_i32_0 = arith.constant 0 : i32
    return %arg1, %c0_i32 : i32, i32
  }
  func.func @transform_2(%arg0: i32, %arg1: i32) -> (i32, i32) {
    %c0_i32 = arith.constant 0 : i32
    %c0_i32_0 = arith.constant 0 : i32
    return %arg0, %c0_i32 : i32, i32
  }
}

</mosaic_0001>

<llo_original>
// kernel: tpu_custom_call.1
$region0: #{tpu_custom_call.1}
  #allocation0 [shape = 'u32[]', space=smem, size = 0x4, offset = 0x4, fixed_abs, tag = 'smem constant byte address 0x4 - core index']
  #allocation1 [shape = 'u32[144,128]{1,0:T(1,128)}', space=vmem, size = 0x12000, scoped, tag = 'internal scratch']
  %s0 = inlined_call_operand.vmem [shape: s32[128,8], index: 0, kind: input, shape index: {}]
  %s1 = inlined_call_operand.vmem [shape: bf16[1024,64], index: 1, kind: input, shape index: {}]
  %s2 = inlined_call_operand.hbm [shape: f32[128,128], index: 2, kind: output, shape index: {}]
  %s3 = sld [smem:[#allocation0]]
  $region45: #{tpu_custom_call.1} parent=0
    _
  %s5 = ssub.s32 1, %s3
  %s6 = scalar_select 0, %s5, %s3
  $region1: #{tpu_custom_call.1} parent=0
    #allocation2 [shape = 'u8[65536]{0}', space=vmem, size = 0x10000, scoped, tag = 'output window, operand 0, single buffered']
    #allocation3 [shape = 's32[2]{0}', space=sflag, size = 0x8, scoped, tag = 'scoped memory for tpu_custom_call.1']
    %7 = vsyncpa [#allocation3], 0
    loop: start=0, step=1, limit=4
    $region2: #{tpu_custom_call.1} parent=1 // loop_pre_header
      _
    $region3: #{tpu_custom_call.1} parent=1 // loop_header
      %s9 = sphi 0, %s13
      %p10 = scmp.ge.s32.totalorder %s9, 4
      %s16 = sphi 0, %s28
      %s17 = sphi 0, %s24
      %s18 = sphi 0, %s16
      %s19 = sphi 0, %s17
      %s20 = sphi 0, %s18
      %s21 = sphi 0, %s19
      %s31 = sphi 0, %s33
      %s34 = sphi 0, %s31
      %s35 = sphi 0, %s34
      %s51 = sphi 0, %s35
      %s57 = sphi 0, %s59
      %s60 = sphi 0, %s57
      %s61 = sphi 0, %s60
      %s77 = sphi 0, %s61
      %s83 = sphi 0, %s85
      %s86 = sphi 0, %s83
      %s87 = sphi 0, %s86
      %s103 = sphi 0, %s87
    $region4: #{tpu_custom_call.1} parent=1 // loop_header_branch
      %12 = sbr.rel (%p10) target = $region8
    $region5: #{tpu_custom_call.1} parent=1 // loop_body
      %s14 = ssub.s32 %s9, 1
      %s15 = ssub.s32 %s9, 2
      %s22 = sadd.s32 1, %s17
      %p23 = scmp.ge.s32.totalorder %s22, 2
      %s24 = scalar_select %p23, 0, %s22
      %s25 = sadd.s32 1, %s16
      %s26 = scalar_select %p23, %s25, %s16
      %p27 = scmp.ge.s32.totalorder %s26, 1
      %s28 = scalar_select %p27, 0, %s26
      %s29 = ssub.s32 %s16, %s28
      %p30 = scmp.eq.s32.totalorder %s29, 0
      %s32 = sadd.s32 %s31, 1
      %s33 = scalar_select %p30, %s31, %s32
      %p36 = pneg %p30
      %p37 = scmp.eq.s32.totalorder %s9, 1
      %p38 = por %p36, %p37
      %p39 = scmp.ne.s32.totalorder %s31, %s34
      %p40 = scmp.eq.s32.totalorder %s9, 0
      %p41 = por %p39, %p40
      %p42 = scmp.ne.s32.totalorder %s31, %s34
      %p43 = scmp.eq.s32.totalorder %s14, 1
      %p44 = por %p42, %p43
      %p45 = scmp.ne.s32.totalorder %s34, %s35
      %p46 = scmp.eq.s32.totalorder %s14, 0
      %p47 = por %p45, %p46
      %p48 = scmp.ne.s32.totalorder %s34, %s35
      %p49 = scmp.eq.s32.totalorder %s15, 1
      %p50 = por %p48, %p49
      %p52 = scmp.ne.s32.totalorder %s35, %s51
      %p53 = scmp.eq.s32.totalorder %s15, 0
      %p54 = por %p52, %p53
      %s55 = ssub.s32 %s17, %s24
      %p56 = scmp.eq.s32.totalorder %s55, 0
      %s58 = sadd.s32 %s57, 1
      %s59 = scalar_select %p56, %s57, %s58
      %p62 = pneg %p56
      %p63 = scmp.eq.s32.totalorder %s9, 1
      %p64 = por %p62, %p63
      %p65 = scmp.ne.s32.totalorder %s57, %s60
      %p66 = scmp.eq.s32.totalorder %s9, 0
      %p67 = por %p65, %p66
      %p68 = scmp.ne.s32.totalorder %s57, %s60
      %p69 = scmp.eq.s32.totalorder %s14, 1
      %p70 = por %p68, %p69
      %p71 = scmp.ne.s32.totalorder %s60, %s61
      %p72 = scmp.eq.s32.totalorder %s14, 0
      %p73 = por %p71, %p72
      %p74 = scmp.ne.s32.totalorder %s60, %s61
      %p75 = scmp.eq.s32.totalorder %s15, 1
      %p76 = por %p74, %p75
      %p78 = scmp.ne.s32.totalorder %s61, %s77
      %p79 = scmp.eq.s32.totalorder %s15, 0
      %p80 = por %p78, %p79
      %s81 = ssub.s32 %s16, %s28
      %p82 = scmp.eq.s32.totalorder %s81, 0
      %s84 = sadd.s32 %s83, 1
      %s85 = scalar_select %p82, %s83, %s84
      %p88 = pneg %p82
      %p89 = scmp.eq.s32.totalorder %s9, 1
      %p90 = por %p88, %p89
      %p91 = scmp.ne.s32.totalorder %s83, %s86
      %p92 = scmp.eq.s32.totalorder %s9, 0
      %p93 = por %p91, %p92
      %p94 = scmp.ne.s32.totalorder %s83, %s86
      %p95 = scmp.eq.s32.totalorder %s14, 1
      %p96 = por %p94, %p95
      %p97 = scmp.ne.s32.totalorder %s86, %s87
      %p98 = scmp.eq.s32.totalorder %s14, 0
      %p99 = por %p97, %p98
      %p100 = scmp.ne.s32.totalorder %s86, %s87
      %p101 = scmp.eq.s32.totalorder %s15, 1
      %p102 = por %p100, %p101
      %p104 = scmp.ne.s32.totalorder %s87, %s103
      %p105 = scmp.eq.s32.totalorder %s15, 0
      %p106 = por %p104, %p105
      %p107 = scmp.le.s32.totalorder 1, %s9
      %p108 = scmp.lt.s32.totalorder %s9, 3
      %p109 = pnand %p107, %p108
      %p110 = pneg %p109
      // Predicated region
      $region9: #{tpu_custom_call.1} parent=5 // pred_check
        _
      $region10: #{tpu_custom_call.1} parent=5 // pred_check_branch
        %112 = sbr.rel (%p109) target = $region12
      $region11: #{tpu_custom_call.1} parent=5 // pred_region
        %s113 = ssub.s32 %s9, 1
        // Predicated region
        $region13: #{tpu_custom_call.1} parent=11 // pred_check
          %p114 = pneg %p47
        $region14: #{tpu_custom_call.1} parent=11 // pred_check_branch
          %116 = sbr.rel (%p114) target = $region16
        $region15: #{tpu_custom_call.1} parent=11 // pred_region
          %s117 = smul.u32 16, %s18
          %p118 = scmp.lt.s32.totalorder %s117, 15
          %s119 = scalar_select %p118, %s117, 15
          %s120 = smul.addr %s119, 8
          %s121 = scalar_lea.vmem %s0, %s120
          %s122 = smul.u32 16, %s18
        $region16: #{tpu_custom_call.1} parent=11 // pred_fallthru
          _
      $region12: #{tpu_custom_call.1} parent=5 // pred_fallthru
        _
      %p123 = scmp.lt.s32.totalorder %s9, 2
      // Predicated region
      $region17: #{tpu_custom_call.1} parent=5 // pred_check
        %p124 = pneg %p123
      $region18: #{tpu_custom_call.1} parent=5 // pred_check_branch
        %126 = sbr.rel (%p124) target = $region20
      $region19: #{tpu_custom_call.1} parent=5 // pred_region
        // Predicated region
        $region21: #{tpu_custom_call.1} parent=19 // pred_check
          %p127 = pneg %p67
        $region22: #{tpu_custom_call.1} parent=19 // pred_check_branch
          %129 = sbr.rel (%p127) target = $region24
        $region23: #{tpu_custom_call.1} parent=19 // pred_region
          %s130 = smul.u32 64, %s17
          %p131 = scmp.lt.s32.totalorder %s130, 127
          %s132 = scalar_select %p131, %s130, 127
          %s133 = smul.addr %s132, 4
          %s134 = scalar_lea.vmem %s1, %s133
          %s135 = smul.u32 64, %s17
        $region24: #{tpu_custom_call.1} parent=19 // pred_fallthru
          _
      $region20: #{tpu_custom_call.1} parent=5 // pred_fallthru
        _
      %p136 = scmp.le.s32.totalorder 1, %s9
      %p137 = scmp.lt.s32.totalorder %s9, 3
      %p138 = pnand %p136, %p137
      %p139 = pneg %p138
      // Predicated region
      $region25: #{tpu_custom_call.1} parent=5 // pred_check
        _
      $region26: #{tpu_custom_call.1} parent=5 // pred_check_branch
        %141 = sbr.rel (%p138) target = $region28
      $region27: #{tpu_custom_call.1} parent=5 // pred_region
        %s142 = ssub.s32 %s9, 1
        %s143 = smul.u32 16, %s18
        %p144 = scmp.lt.s32.totalorder %s143, 15
        %s145 = scalar_select %p144, %s143, 15
        %s146 = smul.addr %s145, 8
        %s147 = scalar_lea.vmem %s0, %s146
        %p148 = pneg %p47
        %p149 = pneg %p44
        %s150 = smul.u32 64, %s19
        %p151 = scmp.lt.s32.totalorder %s150, 127
        %s152 = scalar_select %p151, %s150, 127
        %s153 = smul.addr %s152, 4
        %s154 = scalar_lea.vmem %s1, %s153
        %p155 = pneg %p73
        %p156 = pneg %p70
        %p157 = pneg %p99
        %p158 = pneg %p96
        %s159 = smul.u32 16, %s18
        %p160 = scmp.lt.s32.totalorder %s159, 15
        %s161 = scalar_select %p160, %s159, 15
        %s162 = smul.addr %s161, 8
        %s163 = scalar_lea.vmem %s0, %s162
        %s164 = smul.u32 16, %s18
        %s165 = smul.u32 64, %s19
        %p166 = scmp.lt.s32.totalorder %s165, 127
        %s167 = scalar_select %p166, %s165, 127
        %s168 = smul.addr %s167, 4
        %s169 = scalar_lea.vmem %s1, %s168
        %s170 = smul.u32 64, %s19
        %s171 = smul.u32 16, %s18
        %p173 = scmp.eq.s32.totalorder %s19, 0
        // Predicated region
        $region29: #{tpu_custom_call.1} parent=27 // pred_check
          %p174 = pneg %p173
        $region30: #{tpu_custom_call.1} parent=27 // pred_check_branch
          %176 = sbr.rel (%p174) target = $region32
        $region31: #{tpu_custom_call.1} parent=27 // pred_region
          %177 = vst [vmem:[#allocation2] sm:$0xff] 0.0
          %178 = vst [vmem:[#allocation2 + $0x8] sm:$0xff] 0.0
          %179 = vst [vmem:[#allocation2 + $0x10] sm:$0xff] 0.0
          %180 = vst [vmem:[#allocation2 + $0x18] sm:$0xff] 0.0
          %181 = vst [vmem:[#allocation2 + $0x20] sm:$0xff] 0.0
          %182 = vst [vmem:[#allocation2 + $0x28] sm:$0xff] 0.0
          %183 = vst [vmem:[#allocation2 + $0x30] sm:$0xff] 0.0
          %184 = vst [vmem:[#allocation2 + $0x38] sm:$0xff] 0.0
          %185 = vst [vmem:[#allocation2 + $0x40] sm:$0xff] 0.0
          %186 = vst [vmem:[#allocation2 + $0x48] sm:$0xff] 0.0
          %187 = vst [vmem:[#allocation2 + $0x50] sm:$0xff] 0.0
          %188 = vst [vmem:[#allocation2 + $0x58] sm:$0xff] 0.0
          %189 = vst [vmem:[#allocation2 + $0x60] sm:$0xff] 0.0
          %190 = vst [vmem:[#allocation2 + $0x68] sm:$0xff] 0.0
          %191 = vst [vmem:[#allocation2 + $0x70] sm:$0xff] 0.0
          %192 = vst [vmem:[#allocation2 + $0x78] sm:$0xff] 0.0
        $region32: #{tpu_custom_call.1} parent=27 // pred_fallthru
          _
        %v193 = vlaneseq
        %v194 = vand.u32 %v193, 127
        %v195 = vadd.s32 %v194, 128
        %v196 = vadd.s32 %v194, 256
        %v197 = vadd.s32 %v194, 384
        %v198 = vld [vmem:[%s163] sm:$0xff]
        %v199 = vld [vmem:[%s163 + $0x8] sm:$0xff]
        %v200 = vld [vmem:[%s163 + $0x10] sm:$0xff]
        %v201 = vld [vmem:[%s163 + $0x18] sm:$0xff]
        %v202 = vld [vmem:[%s163 + $0x20] sm:$0xff]
        %v203 = vld [vmem:[%s163 + $0x28] sm:$0xff]
        %v204 = vld [vmem:[%s163 + $0x30] sm:$0xff]
        %v205 = vld [vmem:[%s163 + $0x38] sm:$0xff]
        %v206 = vld [vmem:[%s163 + $0x40] sm:$0xff]
        %v207 = vld [vmem:[%s163 + $0x48] sm:$0xff]
        %v208 = vld [vmem:[%s163 + $0x50] sm:$0xff]
        %v209 = vld [vmem:[%s163 + $0x58] sm:$0xff]
        %v210 = vld [vmem:[%s163 + $0x60] sm:$0xff]
        %v211 = vld [vmem:[%s163 + $0x68] sm:$0xff]
        %v212 = vld [vmem:[%s163 + $0x70] sm:$0xff]
        %v213 = vld [vmem:[%s163 + $0x78] sm:$0xff]
        %s214 = smul.u32 %s19, 512
        %v215 = vstv %s214
        %v216 = vsub.s32 %v198, %v215
        %v217 = vsub.s32 %v199, %v215
        %v218 = vsub.s32 %v200, %v215
        %v219 = vsub.s32 %v201, %v215
        %v220 = vsub.s32 %v202, %v215
        %v221 = vsub.s32 %v203, %v215
        %v222 = vsub.s32 %v204, %v215
        %v223 = vsub.s32 %v205, %v215
        %v224 = vsub.s32 %v206, %v215
        %v225 = vsub.s32 %v207, %v215
        %v226 = vsub.s32 %v208, %v215
        %v227 = vsub.s32 %v209, %v215
        %v228 = vsub.s32 %v210, %v215
        %v229 = vsub.s32 %v211, %v215
        %v230 = vsub.s32 %v212, %v215
        %v231 = vsub.s32 %v213, %v215
        %v232 = vld [vmem:[%s169] sm:$0xf]
        %v233 = vld [vmem:[%s169 + $0x4] sm:$0xf]
        %v234 = vld [vmem:[%s169 + $0x8] sm:$0xf]
        %v235 = vld [vmem:[%s169 + $0xc] sm:$0xf]
        %v236 = vld [vmem:[%s169 + $0x10] sm:$0xf]
        %v237 = vld [vmem:[%s169 + $0x14] sm:$0xf]
        %v238 = vld [vmem:[%s169 + $0x18] sm:$0xf]
        %v239 = vld [vmem:[%s169 + $0x1c] sm:$0xf]
        %v240 = vld [vmem:[%s169 + $0x20] sm:$0xf]
        %v241 = vld [vmem:[%s169 + $0x24] sm:$0xf]
        %v242 = vld [vmem:[%s169 + $0x28] sm:$0xf]
        %v243 = vld [vmem:[%s169 + $0x2c] sm:$0xf]
        %v244 = vld [vmem:[%s169 + $0x30] sm:$0xf]
        %v245 = vld [vmem:[%s169 + $0x34] sm:$0xf]
        %v246 = vld [vmem:[%s169 + $0x38] sm:$0xf]
        %v247 = vld [vmem:[%s169 + $0x3c] sm:$0xf]
        %v248 = vld [vmem:[%s169 + $0x40] sm:$0xf]
        %v249 = vld [vmem:[%s169 + $0x44] sm:$0xf]
        %v250 = vld [vmem:[%s169 + $0x48] sm:$0xf]
        %v251 = vld [vmem:[%s169 + $0x4c] sm:$0xf]
        %v252 = vld [vmem:[%s169 + $0x50] sm:$0xf]
        %v253 = vld [vmem:[%s169 + $0x54] sm:$0xf]
        %v254 = vld [vmem:[%s169 + $0x58] sm:$0xf]
        %v255 = vld [vmem:[%s169 + $0x5c] sm:$0xf]
        %v256 = vld [vmem:[%s169 + $0x60] sm:$0xf]
        %v257 = vld [vmem:[%s169 + $0x64] sm:$0xf]
        %v258 = vld [vmem:[%s169 + $0x68] sm:$0xf]
        %v259 = vld [vmem:[%s169 + $0x6c] sm:$0xf]
        %v260 = vld [vmem:[%s169 + $0x70] sm:$0xf]
        %v261 = vld [vmem:[%s169 + $0x74] sm:$0xf]
        %v262 = vld [vmem:[%s169 + $0x78] sm:$0xf]
        %v263 = vld [vmem:[%s169 + $0x7c] sm:$0xf]
        %v264 = vld [vmem:[%s169 + $0x80] sm:$0xf]
        %v265 = vld [vmem:[%s169 + $0x84] sm:$0xf]
        %v266 = vld [vmem:[%s169 + $0x88] sm:$0xf]
        %v267 = vld [vmem:[%s169 + $0x8c] sm:$0xf]
        %v268 = vld [vmem:[%s169 + $0x90] sm:$0xf]
        %v269 = vld [vmem:[%s169 + $0x94] sm:$0xf]
        %v270 = vld [vmem:[%s169 + $0x98] sm:$0xf]
        %v271 = vld [vmem:[%s169 + $0x9c] sm:$0xf]
        %v272 = vld [vmem:[%s169 + $0xa0] sm:$0xf]
        %v273 = vld [vmem:[%s169 + $0xa4] sm:$0xf]
        %v274 = vld [vmem:[%s169 + $0xa8] sm:$0xf]
        %v275 = vld [vmem:[%s169 + $0xac] sm:$0xf]
        %v276 = vld [vmem:[%s169 + $0xb0] sm:$0xf]
        %v277 = vld [vmem:[%s169 + $0xb4] sm:$0xf]
        %v278 = vld [vmem:[%s169 + $0xb8] sm:$0xf]
        %v279 = vld [vmem:[%s169 + $0xbc] sm:$0xf]
        %v280 = vld [vmem:[%s169 + $0xc0] sm:$0xf]
        %v281 = vld [vmem:[%s169 + $0xc4] sm:$0xf]
        %v282 = vld [vmem:[%s169 + $0xc8] sm:$0xf]
        %v283 = vld [vmem:[%s169 + $0xcc] sm:$0xf]
        %v284 = vld [vmem:[%s169 + $0xd0] sm:$0xf]
        %v285 = vld [vmem:[%s169 + $0xd4] sm:$0xf]
        %v286 = vld [vmem:[%s169 + $0xd8] sm:$0xf]
        %v287 = vld [vmem:[%s169 + $0xdc] sm:$0xf]
        %v288 = vld [vmem:[%s169 + $0xe0] sm:$0xf]
        %v289 = vld [vmem:[%s169 + $0xe4] sm:$0xf]
        %v290 = vld [vmem:[%s169 + $0xe8] sm:$0xf]
        %v291 = vld [vmem:[%s169 + $0xec] sm:$0xf]
        %v292 = vld [vmem:[%s169 + $0xf0] sm:$0xf]
        %v293 = vld [vmem:[%s169 + $0xf4] sm:$0xf]
        %v294 = vld [vmem:[%s169 + $0xf8] sm:$0xf]
        %v295 = vld [vmem:[%s169 + $0xfc] sm:$0xf]
        %296 = vset.pattern.permute.xlu0 0
        %297 = vperm.xlu0 %296, %v216
        %v298 = vpop.permute.xlu0 %297
        %299 = vset.pattern.permute.xlu0 0
        %300 = vperm.xlu0 %299, %v217
        %v301 = vpop.permute.xlu0 %300
        %302 = vset.pattern.permute.xlu0 0
        %303 = vperm.xlu0 %302, %v218
        %v304 = vpop.permute.xlu0 %303
        %305 = vset.pattern.permute.xlu0 0
        %306 = vperm.xlu0 %305, %v219
        %v307 = vpop.permute.xlu0 %306
        %308 = vset.pattern.permute.xlu0 0
        %309 = vperm.xlu0 %308, %v220
        %v310 = vpop.permute.xlu0 %309
        %311 = vset.pattern.permute.xlu0 0
        %312 = vperm.xlu0 %311, %v221
        %v313 = vpop.permute.xlu0 %312
        %314 = vset.pattern.permute.xlu0 0
        %315 = vperm.xlu0 %314, %v222
        %v316 = vpop.permute.xlu0 %315
        %317 = vset.pattern.permute.xlu0 0
        %318 = vperm.xlu0 %317, %v223
        %v319 = vpop.permute.xlu0 %318
        %320 = vset.pattern.permute.xlu0 0
        %321 = vperm.xlu0 %320, %v224
        %v322 = vpop.permute.xlu0 %321
        %323 = vset.pattern.permute.xlu0 0
        %324 = vperm.xlu0 %323, %v225
        %v325 = vpop.permute.xlu0 %324
        %326 = vset.pattern.permute.xlu0 0
        %327 = vperm.xlu0 %326, %v226
        %v328 = vpop.permute.xlu0 %327
        %329 = vset.pattern.permute.xlu0 0
        %330 = vperm.xlu0 %329, %v227
        %v331 = vpop.permute.xlu0 %330
        %332 = vset.pattern.permute.xlu0 0
        %333 = vperm.xlu0 %332, %v228
        %v334 = vpop.permute.xlu0 %333
        %335 = vset.pattern.permute.xlu0 0
        %336 = vperm.xlu0 %335, %v229
        %v337 = vpop.permute.xlu0 %336
        %338 = vset.pattern.permute.xlu0 0
        %339 = vperm.xlu0 %338, %v230
        %v340 = vpop.permute.xlu0 %339
        %341 = vset.pattern.permute.xlu0 0
        %342 = vperm.xlu0 %341, %v231
        %v343 = vpop.permute.xlu0 %342
        %vm344 = vcmp.eq.s32.totalorder %v298, %v194
        %vm345 = vcmp.eq.s32.totalorder %v298, %v195
        %vm346 = vcmp.eq.s32.totalorder %v298, %v196
        %vm347 = vcmp.eq.s32.totalorder %v298, %v197
        %vm348 = vcmp.eq.s32.totalorder %v301, %v194
        %vm349 = vcmp.eq.s32.totalorder %v301, %v195
        %vm350 = vcmp.eq.s32.totalorder %v301, %v196
        %vm351 = vcmp.eq.s32.totalorder %v301, %v197
        %vm352 = vcmp.eq.s32.totalorder %v304, %v194
        %vm353 = vcmp.eq.s32.totalorder %v304, %v195
        %vm354 = vcmp.eq.s32.totalorder %v304, %v196
        %vm355 = vcmp.eq.s32.totalorder %v304, %v197
        %vm356 = vcmp.eq.s32.totalorder %v307, %v194
        %vm357 = vcmp.eq.s32.totalorder %v307, %v195
        %vm358 = vcmp.eq.s32.totalorder %v307, %v196
        %vm359 = vcmp.eq.s32.totalorder %v307, %v197
        %vm360 = vcmp.eq.s32.totalorder %v310, %v194
        %vm361 = vcmp.eq.s32.totalorder %v310, %v195
        %vm362 = vcmp.eq.s32.totalorder %v310, %v196
        %vm363 = vcmp.eq.s32.totalorder %v310, %v197
        %vm364 = vcmp.eq.s32.totalorder %v313, %v194
        %vm365 = vcmp.eq.s32.totalorder %v313, %v195
        %vm366 = vcmp.eq.s32.totalorder %v313, %v196
        %vm367 = vcmp.eq.s32.totalorder %v313, %v197
        %vm368 = vcmp.eq.s32.totalorder %v316, %v194
        %vm369 = vcmp.eq.s32.totalorder %v316, %v195
        %vm370 = vcmp.eq.s32.totalorder %v316, %v196
        %vm371 = vcmp.eq.s32.totalorder %v316, %v197
        %vm372 = vcmp.eq.s32.totalorder %v319, %v194
        %vm373 = vcmp.eq.s32.totalorder %v319, %v195
        %vm374 = vcmp.eq.s32.totalorder %v319, %v196
        %vm375 = vcmp.eq.s32.totalorder %v319, %v197
        %vm376 = vcmp.eq.s32.totalorder %v322, %v194
        %vm377 = vcmp.eq.s32.totalorder %v322, %v195
        %vm378 = vcmp.eq.s32.totalorder %v322, %v196
        %vm379 = vcmp.eq.s32.totalorder %v322, %v197
        %vm380 = vcmp.eq.s32.totalorder %v325, %v194
        %vm381 = vcmp.eq.s32.totalorder %v325, %v195
        %vm382 = vcmp.eq.s32.totalorder %v325, %v196
        %vm383 = vcmp.eq.s32.totalorder %v325, %v197
        %vm384 = vcmp.eq.s32.totalorder %v328, %v194
        %vm385 = vcmp.eq.s32.totalorder %v328, %v195
        %vm386 = vcmp.eq.s32.totalorder %v328, %v196
        %vm387 = vcmp.eq.s32.totalorder %v328, %v197
        %vm388 = vcmp.eq.s32.totalorder %v331, %v194
        %vm389 = vcmp.eq.s32.totalorder %v331, %v195
        %vm390 = vcmp.eq.s32.totalorder %v331, %v196
        %vm391 = vcmp.eq.s32.totalorder %v331, %v197
        %vm392 = vcmp.eq.s32.totalorder %v334, %v194
        %vm393 = vcmp.eq.s32.totalorder %v334, %v195
        %vm394 = vcmp.eq.s32.totalorder %v334, %v196
        %vm395 = vcmp.eq.s32.totalorder %v334, %v197
        %vm396 = vcmp.eq.s32.totalorder %v337, %v194
        %vm397 = vcmp.eq.s32.totalorder %v337, %v195
        %vm398 = vcmp.eq.s32.totalorder %v337, %v196
        %vm399 = vcmp.eq.s32.totalorder %v337, %v197
        %vm400 = vcmp.eq.s32.totalorder %v340, %v194
        %vm401 = vcmp.eq.s32.totalorder %v340, %v195
        %vm402 = vcmp.eq.s32.totalorder %v340, %v196
        %vm403 = vcmp.eq.s32.totalorder %v340, %v197
        %vm404 = vcmp.eq.s32.totalorder %v343, %v194
        %vm405 = vcmp.eq.s32.totalorder %v343, %v195
        %vm406 = vcmp.eq.s32.totalorder %v343, %v196
        %vm407 = vcmp.eq.s32.totalorder %v343, %v197
        %v408 = vsel %vm344, 1, 0
        %v409 = vsel %vm345, 1, 0
        %v410 = vsel %vm346, 1, 0
        %v411 = vsel %vm347, 1, 0
        %v412 = vsel %vm348, 1, 0
        %v413 = vsel %vm349, 1, 0
        %v414 = vsel %vm350, 1, 0
        %v415 = vsel %vm351, 1, 0
        %v416 = vsel %vm352, 1, 0
        %v417 = vsel %vm353, 1, 0
        %v418 = vsel %vm354, 1, 0
        %v419 = vsel %vm355, 1, 0
        %v420 = vsel %vm356, 1, 0
        %v421 = vsel %vm357, 1, 0
        %v422 = vsel %vm358, 1, 0
        %v423 = vsel %vm359, 1, 0
        %v424 = vsel %vm360, 1, 0
        %v425 = vsel %vm361, 1, 0
        %v426 = vsel %vm362, 1, 0
        %v427 = vsel %vm363, 1, 0
        %v428 = vsel %vm364, 1, 0
        %v429 = vsel %vm365, 1, 0
        %v430 = vsel %vm366, 1, 0
        %v431 = vsel %vm367, 1, 0
        %v432 = vsel %vm368, 1, 0
        %v433 = vsel %vm369, 1, 0
        %v434 = vsel %vm370, 1, 0
        %v435 = vsel %vm371, 1, 0
        %v436 = vsel %vm372, 1, 0
        %v437 = vsel %vm373, 1, 0
        %v438 = vsel %vm374, 1, 0
        %v439 = vsel %vm375, 1, 0
        %v440 = vsel %vm376, 1, 0
        %v441 = vsel %vm377, 1, 0
        %v442 = vsel %vm378, 1, 0
        %v443 = vsel %vm379, 1, 0
        %v444 = vsel %vm380, 1, 0
        %v445 = vsel %vm381, 1, 0
        %v446 = vsel %vm382, 1, 0
        %v447 = vsel %vm383, 1, 0
        %v448 = vsel %vm384, 1, 0
        %v449 = vsel %vm385, 1, 0
        %v450 = vsel %vm386, 1, 0
        %v451 = vsel %vm387, 1, 0
        %v452 = vsel %vm388, 1, 0
        %v453 = vsel %vm389, 1, 0
        %v454 = vsel %vm390, 1, 0
        %v455 = vsel %vm391, 1, 0
        %v456 = vsel %vm392, 1, 0
        %v457 = vsel %vm393, 1, 0
        %v458 = vsel %vm394, 1, 0
        %v459 = vsel %vm395, 1, 0
        %v460 = vsel %vm396, 1, 0
        %v461 = vsel %vm397, 1, 0
        %v462 = vsel %vm398, 1, 0
        %v463 = vsel %vm399, 1, 0
        %v464 = vsel %vm400, 1, 0
        %v465 = vsel %vm401, 1, 0
        %v466 = vsel %vm402, 1, 0
        %v467 = vsel %vm403, 1, 0
        %v468 = vsel %vm404, 1, 0
        %v469 = vsel %vm405, 1, 0
        %v470 = vsel %vm406, 1, 0
        %v471 = vsel %vm407, 1, 0
        %v472 = vcvt.s32.f32 %v408
        %v473 = vcvt.s32.f32 %v409
        %v474 = vcvt.s32.f32 %v410
        %v475 = vcvt.s32.f32 %v411
        %v476 = vcvt.s32.f32 %v412
        %v477 = vcvt.s32.f32 %v413
        %v478 = vcvt.s32.f32 %v414
        %v479 = vcvt.s32.f32 %v415
        %v480 = vcvt.s32.f32 %v416
        %v481 = vcvt.s32.f32 %v417
        %v482 = vcvt.s32.f32 %v418
        %v483 = vcvt.s32.f32 %v419
        %v484 = vcvt.s32.f32 %v420
        %v485 = vcvt.s32.f32 %v421
        %v486 = vcvt.s32.f32 %v422
        %v487 = vcvt.s32.f32 %v423
        %v488 = vcvt.s32.f32 %v424
        %v489 = vcvt.s32.f32 %v425
        %v490 = vcvt.s32.f32 %v426
        %v491 = vcvt.s32.f32 %v427
        %v492 = vcvt.s32.f32 %v428
        %v493 = vcvt.s32.f32 %v429
        %v494 = vcvt.s32.f32 %v430
        %v495 = vcvt.s32.f32 %v431
        %v496 = vcvt.s32.f32 %v432
        %v497 = vcvt.s32.f32 %v433
        %v498 = vcvt.s32.f32 %v434
        %v499 = vcvt.s32.f32 %v435
        %v500 = vcvt.s32.f32 %v436
        %v501 = vcvt.s32.f32 %v437
        %v502 = vcvt.s32.f32 %v438
        %v503 = vcvt.s32.f32 %v439
        %v504 = vcvt.s32.f32 %v440
        %v505 = vcvt.s32.f32 %v441
        %v506 = vcvt.s32.f32 %v442
        %v507 = vcvt.s32.f32 %v443
        %v508 = vcvt.s32.f32 %v444
        %v509 = vcvt.s32.f32 %v445
        %v510 = vcvt.s32.f32 %v446
        %v511 = vcvt.s32.f32 %v447
        %v512 = vcvt.s32.f32 %v448
        %v513 = vcvt.s32.f32 %v449
        %v514 = vcvt.s32.f32 %v450
        %v515 = vcvt.s32.f32 %v451
        %v516 = vcvt.s32.f32 %v452
        %v517 = vcvt.s32.f32 %v453
        %v518 = vcvt.s32.f32 %v454
        %v519 = vcvt.s32.f32 %v455
        %v520 = vcvt.s32.f32 %v456
        %v521 = vcvt.s32.f32 %v457
        %v522 = vcvt.s32.f32 %v458
        %v523 = vcvt.s32.f32 %v459
        %v524 = vcvt.s32.f32 %v460
        %v525 = vcvt.s32.f32 %v461
        %v526 = vcvt.s32.f32 %v462
        %v527 = vcvt.s32.f32 %v463
        %v528 = vcvt.s32.f32 %v464
        %v529 = vcvt.s32.f32 %v465
        %v530 = vcvt.s32.f32 %v466
        %v531 = vcvt.s32.f32 %v467
        %v532 = vcvt.s32.f32 %v468
        %v533 = vcvt.s32.f32 %v469
        %v534 = vcvt.s32.f32 %v470
        %v535 = vcvt.s32.f32 %v471
        %v536 = vadd.f32 %v472, 0.0
        %v537 = vadd.f32 %v473, 0.0
        %v538 = vadd.f32 %v474, 0.0
        %v539 = vadd.f32 %v475, 0.0
        %v540 = vadd.f32 %v476, 0.0
        %v541 = vadd.f32 %v477, 0.0
        %v542 = vadd.f32 %v478, 0.0
        %v543 = vadd.f32 %v479, 0.0
        %v544 = vadd.f32 %v480, 0.0
        %v545 = vadd.f32 %v481, 0.0
        %v546 = vadd.f32 %v482, 0.0
        %v547 = vadd.f32 %v483, 0.0
        %v548 = vadd.f32 %v484, 0.0
        %v549 = vadd.f32 %v485, 0.0
        %v550 = vadd.f32 %v486, 0.0
        %v551 = vadd.f32 %v487, 0.0
        %v552 = vadd.f32 %v488, 0.0
        %v553 = vadd.f32 %v489, 0.0
        %v554 = vadd.f32 %v490, 0.0
        %v555 = vadd.f32 %v491, 0.0
        %v556 = vadd.f32 %v492, 0.0
        %v557 = vadd.f32 %v493, 0.0
        %v558 = vadd.f32 %v494, 0.0
        %v559 = vadd.f32 %v495, 0.0
        %v560 = vadd.f32 %v496, 0.0
        %v561 = vadd.f32 %v497, 0.0
        %v562 = vadd.f32 %v498, 0.0
        %v563 = vadd.f32 %v499, 0.0
        %v564 = vadd.f32 %v500, 0.0
        %v565 = vadd.f32 %v501, 0.0
        %v566 = vadd.f32 %v502, 0.0
        %v567 = vadd.f32 %v503, 0.0
        %v568 = vadd.f32 %v504, 0.0
        %v569 = vadd.f32 %v505, 0.0
        %v570 = vadd.f32 %v506, 0.0
        %v571 = vadd.f32 %v507, 0.0
        %v572 = vadd.f32 %v508, 0.0
        %v573 = vadd.f32 %v509, 0.0
        %v574 = vadd.f32 %v510, 0.0
        %v575 = vadd.f32 %v511, 0.0
        %v576 = vadd.f32 %v512, 0.0
        %v577 = vadd.f32 %v513, 0.0
        %v578 = vadd.f32 %v514, 0.0
        %v579 = vadd.f32 %v515, 0.0
        %v580 = vadd.f32 %v516, 0.0
        %v581 = vadd.f32 %v517, 0.0
        %v582 = vadd.f32 %v518, 0.0
        %v583 = vadd.f32 %v519, 0.0
        %v584 = vadd.f32 %v520, 0.0
        %v585 = vadd.f32 %v521, 0.0
        %v586 = vadd.f32 %v522, 0.0
        %v587 = vadd.f32 %v523, 0.0
        %v588 = vadd.f32 %v524, 0.0
        %v589 = vadd.f32 %v525, 0.0
        %v590 = vadd.f32 %v526, 0.0
        %v591 = vadd.f32 %v527, 0.0
        %v592 = vadd.f32 %v528, 0.0
        %v593 = vadd.f32 %v529, 0.0
        %v594 = vadd.f32 %v530, 0.0
        %v595 = vadd.f32 %v531, 0.0
        %v596 = vadd.f32 %v532, 0.0
        %v597 = vadd.f32 %v533, 0.0
        %v598 = vadd.f32 %v534, 0.0
        %v599 = vadd.f32 %v535, 0.0
        %600 = vset.pattern.permute.xlu0 1
        %601 = vperm.xlu0 %600, %v216
        %v602 = vpop.permute.xlu0 %601
        %603 = vset.pattern.permute.xlu0 1
        %604 = vperm.xlu0 %603, %v217
        %v605 = vpop.permute.xlu0 %604
        %606 = vset.pattern.permute.xlu0 1
        %607 = vperm.xlu0 %606, %v218
        %v608 = vpop.permute.xlu0 %607
        %609 = vset.pattern.permute.xlu0 1
        %610 = vperm.xlu0 %609, %v219
        %v611 = vpop.permute.xlu0 %610
        %612 = vset.pattern.permute.xlu0 1
        %613 = vperm.xlu0 %612, %v220
        %v614 = vpop.permute.xlu0 %613
        %615 = vset.pattern.permute.xlu0 1
        %616 = vperm.xlu0 %615, %v221
        %v617 = vpop.permute.xlu0 %616
        %618 = vset.pattern.permute.xlu0 1
        %619 = vperm.xlu0 %618, %v222
        %v620 = vpop.permute.xlu0 %619
        %621 = vset.pattern.permute.xlu0 1
        %622 = vperm.xlu0 %621, %v223
        %v623 = vpop.permute.xlu0 %622
        %624 = vset.pattern.permute.xlu0 1
        %625 = vperm.xlu0 %624, %v224
        %v626 = vpop.permute.xlu0 %625
        %627 = vset.pattern.permute.xlu0 1
        %628 = vperm.xlu0 %627, %v225
        %v629 = vpop.permute.xlu0 %628
        %630 = vset.pattern.permute.xlu0 1
        %631 = vperm.xlu0 %630, %v226
        %v632 = vpop.permute.xlu0 %631
        %633 = vset.pattern.permute.xlu0 1
        %634 = vperm.xlu0 %633, %v227
        %v635 = vpop.permute.xlu0 %634
        %636 = vset.pattern.permute.xlu0 1
        %637 = vperm.xlu0 %636, %v228
        %v638 = vpop.permute.xlu0 %637
        %639 = vset.pattern.permute.xlu0 1
        %640 = vperm.xlu0 %639, %v229
        %v641 = vpop.permute.xlu0 %640
        %642 = vset.pattern.permute.xlu0 1
        %643 = vperm.xlu0 %642, %v230
        %v644 = vpop.permute.xlu0 %643
        %645 = vset.pattern.permute.xlu0 1
        %646 = vperm.xlu0 %645, %v231
        %v647 = vpop.permute.xlu0 %646
        %vm648 = vcmp.eq.s32.totalorder %v602, %v194
        %vm649 = vcmp.eq.s32.totalorder %v602, %v195
        %vm650 = vcmp.eq.s32.totalorder %v602, %v196
        %vm651 = vcmp.eq.s32.totalorder %v602, %v197
        %vm652 = vcmp.eq.s32.totalorder %v605, %v194
        %vm653 = vcmp.eq.s32.totalorder %v605, %v195
        %vm654 = vcmp.eq.s32.totalorder %v605, %v196
        %vm655 = vcmp.eq.s32.totalorder %v605, %v197
        %vm656 = vcmp.eq.s32.totalorder %v608, %v194
        %vm657 = vcmp.eq.s32.totalorder %v608, %v195
        %vm658 = vcmp.eq.s32.totalorder %v608, %v196
        %vm659 = vcmp.eq.s32.totalorder %v608, %v197
        %vm660 = vcmp.eq.s32.totalorder %v611, %v194
        %vm661 = vcmp.eq.s32.totalorder %v611, %v195
        %vm662 = vcmp.eq.s32.totalorder %v611, %v196
        %vm663 = vcmp.eq.s32.totalorder %v611, %v197
        %vm664 = vcmp.eq.s32.totalorder %v614, %v194
        %vm665 = vcmp.eq.s32.totalorder %v614, %v195
        %vm666 = vcmp.eq.s32.totalorder %v614, %v196
        %vm667 = vcmp.eq.s32.totalorder %v614, %v197
        %vm668 = vcmp.eq.s32.totalorder %v617, %v194
        %vm669 = vcmp.eq.s32.totalorder %v617, %v195
        %vm670 = vcmp.eq.s32.totalorder %v617, %v196
        %vm671 = vcmp.eq.s32.totalorder %v617, %v197
        %vm672 = vcmp.eq.s32.totalorder %v620, %v194
        %vm673 = vcmp.eq.s32.totalorder %v620, %v195
        %vm674 = vcmp.eq.s32.totalorder %v620, %v196
        %vm675 = vcmp.eq.s32.totalorder %v620, %v197
        %vm676 = vcmp.eq.s32.totalorder %v623, %v194
        %vm677 = vcmp.eq.s32.totalorder %v623, %v195
        %vm678 = vcmp.eq.s32.totalorder %v623, %v196
        %vm679 = vcmp.eq.s32.totalorder %v623, %v197
        %vm680 = vcmp.eq.s32.totalorder %v626, %v194
        %vm681 = vcmp.eq.s32.totalorder %v626, %v195
        %vm682 = vcmp.eq.s32.totalorder %v626, %v196
        %vm683 = vcmp.eq.s32.totalorder %v626, %v197
        %vm684 = vcmp.eq.s32.totalorder %v629, %v194
        %vm685 = vcmp.eq.s32.totalorder %v629, %v195
        %vm686 = vcmp.eq.s32.totalorder %v629, %v196
        %vm687 = vcmp.eq.s32.totalorder %v629, %v197
        %vm688 = vcmp.eq.s32.totalorder %v632, %v194
        %vm689 = vcmp.eq.s32.totalorder %v632, %v195
        %vm690 = vcmp.eq.s32.totalorder %v632, %v196
        %vm691 = vcmp.eq.s32.totalorder %v632, %v197
        %vm692 = vcmp.eq.s32.totalorder %v635, %v194
        %vm693 = vcmp.eq.s32.totalorder %v635, %v195
        %vm694 = vcmp.eq.s32.totalorder %v635, %v196
        %vm695 = vcmp.eq.s32.totalorder %v635, %v197
        %vm696 = vcmp.eq.s32.totalorder %v638, %v194
        %vm697 = vcmp.eq.s32.totalorder %v638, %v195
        %vm698 = vcmp.eq.s32.totalorder %v638, %v196
        %vm699 = vcmp.eq.s32.totalorder %v638, %v197
        %vm700 = vcmp.eq.s32.totalorder %v641, %v194
        %vm701 = vcmp.eq.s32.totalorder %v641, %v195
        %vm702 = vcmp.eq.s32.totalorder %v641, %v196
        %vm703 = vcmp.eq.s32.totalorder %v641, %v197
        %vm704 = vcmp.eq.s32.totalorder %v644, %v194
        %vm705 = vcmp.eq.s32.totalorder %v644, %v195
        %vm706 = vcmp.eq.s32.totalorder %v644, %v196
        %vm707 = vcmp.eq.s32.totalorder %v644, %v197
        %vm708 = vcmp.eq.s32.totalorder %v647, %v194
        %vm709 = vcmp.eq.s32.totalorder %v647, %v195
        %vm710 = vcmp.eq.s32.totalorder %v647, %v196
        %vm711 = vcmp.eq.s32.totalorder %v647, %v197
        %v712 = vsel %vm648, 1, 0
        %v713 = vsel %vm649, 1, 0
        %v714 = vsel %vm650, 1, 0
        %v715 = vsel %vm651, 1, 0
        %v716 = vsel %vm652, 1, 0
        %v717 = vsel %vm653, 1, 0
        %v718 = vsel %vm654, 1, 0
        %v719 = vsel %vm655, 1, 0
        %v720 = vsel %vm656, 1, 0
        %v721 = vsel %vm657, 1, 0
        %v722 = vsel %vm658, 1, 0
        %v723 = vsel %vm659, 1, 0
        %v724 = vsel %vm660, 1, 0
        %v725 = vsel %vm661, 1, 0
        %v726 = vsel %vm662, 1, 0
        %v727 = vsel %vm663, 1, 0
        %v728 = vsel %vm664, 1, 0
        %v729 = vsel %vm665, 1, 0
        %v730 = vsel %vm666, 1, 0
        %v731 = vsel %vm667, 1, 0
        %v732 = vsel %vm668, 1, 0
        %v733 = vsel %vm669, 1, 0
        %v734 = vsel %vm670, 1, 0
        %v735 = vsel %vm671, 1, 0
        %v736 = vsel %vm672, 1, 0
        %v737 = vsel %vm673, 1, 0
        %v738 = vsel %vm674, 1, 0
        %v739 = vsel %vm675, 1, 0
        %v740 = vsel %vm676, 1, 0
        %v741 = vsel %vm677, 1, 0
        %v742 = vsel %vm678, 1, 0
        %v743 = vsel %vm679, 1, 0
        %v744 = vsel %vm680, 1, 0
        %v745 = vsel %vm681, 1, 0
        %v746 = vsel %vm682, 1, 0
        %v747 = vsel %vm683, 1, 0
        %v748 = vsel %vm684, 1, 0
        %v749 = vsel %vm685, 1, 0
        %v750 = vsel %vm686, 1, 0
        %v751 = vsel %vm687, 1, 0
        %v752 = vsel %vm688, 1, 0
        %v753 = vsel %vm689, 1, 0
        %v754 = vsel %vm690, 1, 0
        %v755 = vsel %vm691, 1, 0
        %v756 = vsel %vm692, 1, 0
        %v757 = vsel %vm693, 1, 0
        %v758 = vsel %vm694, 1, 0
        %v759 = vsel %vm695, 1, 0
        %v760 = vsel %vm696, 1, 0
        %v761 = vsel %vm697, 1, 0
        %v762 = vsel %vm698, 1, 0
        %v763 = vsel %vm699, 1, 0
        %v764 = vsel %vm700, 1, 0
        %v765 = vsel %vm701, 1, 0
        %v766 = vsel %vm702, 1, 0
        %v767 = vsel %vm703, 1, 0
        %v768 = vsel %vm704, 1, 0
        %v769 = vsel %vm705, 1, 0
        %v770 = vsel %vm706, 1, 0
        %v771 = vsel %vm707, 1, 0
        %v772 = vsel %vm708, 1, 0
        %v773 = vsel %vm709, 1, 0
        %v774 = vsel %vm710, 1, 0
        %v775 = vsel %vm711, 1, 0
        %v776 = vcvt.s32.f32 %v712
        %v777 = vcvt.s32.f32 %v713
        %v778 = vcvt.s32.f32 %v714
        %v779 = vcvt.s32.f32 %v715
        %v780 = vcvt.s32.f32 %v716
        %v781 = vcvt.s32.f32 %v717
        %v782 = vcvt.s32.f32 %v718
        %v783 = vcvt.s32.f32 %v719
        %v784 = vcvt.s32.f32 %v720
        %v785 = vcvt.s32.f32 %v721
        %v786 = vcvt.s32.f32 %v722
        %v787 = vcvt.s32.f32 %v723
        %v788 = vcvt.s32.f32 %v724
        %v789 = vcvt.s32.f32 %v725
        %v790 = vcvt.s32.f32 %v726
        %v791 = vcvt.s32.f32 %v727
        %v792 = vcvt.s32.f32 %v728
        %v793 = vcvt.s32.f32 %v729
        %v794 = vcvt.s32.f32 %v730
        %v795 = vcvt.s32.f32 %v731
        %v796 = vcvt.s32.f32 %v732
        %v797 = vcvt.s32.f32 %v733
        %v798 = vcvt.s32.f32 %v734
        %v799 = vcvt.s32.f32 %v735
        %v800 = vcvt.s32.f32 %v736
        %v801 = vcvt.s32.f32 %v737
        %v802 = vcvt.s32.f32 %v738
        %v803 = vcvt.s32.f32 %v739
        %v804 = vcvt.s32.f32 %v740
        %v805 = vcvt.s32.f32 %v741
        %v806 = vcvt.s32.f32 %v742
        %v807 = vcvt.s32.f32 %v743
        %v808 = vcvt.s32.f32 %v744
        %v809 = vcvt.s32.f32 %v745
        %v810 = vcvt.s32.f32 %v746
        %v811 = vcvt.s32.f32 %v747
        %v812 = vcvt.s32.f32 %v748
        %v813 = vcvt.s32.f32 %v749
        %v814 = vcvt.s32.f32 %v750
        %v815 = vcvt.s32.f32 %v751
        %v816 = vcvt.s32.f32 %v752
        %v817 = vcvt.s32.f32 %v753
        %v818 = vcvt.s32.f32 %v754
        %v819 = vcvt.s32.f32 %v755
        %v820 = vcvt.s32.f32 %v756
        %v821 = vcvt.s32.f32 %v757
        %v822 = vcvt.s32.f32 %v758
        %v823 = vcvt.s32.f32 %v759
        %v824 = vcvt.s32.f32 %v760
        %v825 = vcvt.s32.f32 %v761
        %v826 = vcvt.s32.f32 %v762
        %v827 = vcvt.s32.f32 %v763
        %v828 = vcvt.s32.f32 %v764
        %v829 = vcvt.s32.f32 %v765
        %v830 = vcvt.s32.f32 %v766
        %v831 = vcvt.s32.f32 %v767
        %v832 = vcvt.s32.f32 %v768
        %v833 = vcvt.s32.f32 %v769
        %v834 = vcvt.s32.f32 %v770
        %v835 = vcvt.s32.f32 %v771
        %v836 = vcvt.s32.f32 %v772
        %v837 = vcvt.s32.f32 %v773
        %v838 = vcvt.s32.f32 %v774
        %v839 = vcvt.s32.f32 %v775
        %v840 = vadd.f32 %v536, %v776
        %v841 = vadd.f32 %v537, %v777
        %v842 = vadd.f32 %v538, %v778
        %v843 = vadd.f32 %v539, %v779
        %v844 = vadd.f32 %v540, %v780
        %v845 = vadd.f32 %v541, %v781
        %v846 = vadd.f32 %v542, %v782
        %v847 = vadd.f32 %v543, %v783
        %v848 = vadd.f32 %v544, %v784
        %v849 = vadd.f32 %v545, %v785
        %v850 = vadd.f32 %v546, %v786
        %v851 = vadd.f32 %v547, %v787
        %v852 = vadd.f32 %v548, %v788
        %v853 = vadd.f32 %v549, %v789
        %v854 = vadd.f32 %v550, %v790
        %v855 = vadd.f32 %v551, %v791
        %v856 = vadd.f32 %v552, %v792
        %v857 = vadd.f32 %v553, %v793
        %v858 = vadd.f32 %v554, %v794
        %v859 = vadd.f32 %v555, %v795
        %v860 = vadd.f32 %v556, %v796
        %v861 = vadd.f32 %v557, %v797
        %v862 = vadd.f32 %v558, %v798
        %v863 = vadd.f32 %v559, %v799
        %v864 = vadd.f32 %v560, %v800
        %v865 = vadd.f32 %v561, %v801
        %v866 = vadd.f32 %v562, %v802
        %v867 = vadd.f32 %v563, %v803
        %v868 = vadd.f32 %v564, %v804
        %v869 = vadd.f32 %v565, %v805
        %v870 = vadd.f32 %v566, %v806
        %v871 = vadd.f32 %v567, %v807
        %v872 = vadd.f32 %v568, %v808
        %v873 = vadd.f32 %v569, %v809
        %v874 = vadd.f32 %v570, %v810
        %v875 = vadd.f32 %v571, %v811
        %v876 = vadd.f32 %v572, %v812
        %v877 = vadd.f32 %v573, %v813
        %v878 = vadd.f32 %v574, %v814
        %v879 = vadd.f32 %v575, %v815
        %v880 = vadd.f32 %v576, %v816
        %v881 = vadd.f32 %v577, %v817
        %v882 = vadd.f32 %v578, %v818
        %v883 = vadd.f32 %v579, %v819
        %v884 = vadd.f32 %v580, %v820
        %v885 = vadd.f32 %v581, %v821
        %v886 = vadd.f32 %v582, %v822
        %v887 = vadd.f32 %v583, %v823
        %v888 = vadd.f32 %v584, %v824
        %v889 = vadd.f32 %v585, %v825
        %v890 = vadd.f32 %v586, %v826
        %v891 = vadd.f32 %v587, %v827
        %v892 = vadd.f32 %v588, %v828
        %v893 = vadd.f32 %v589, %v829
        %v894 = vadd.f32 %v590, %v830
        %v895 = vadd.f32 %v591, %v831
        %v896 = vadd.f32 %v592, %v832
        %v897 = vadd.f32 %v593, %v833
        %v898 = vadd.f32 %v594, %v834
        %v899 = vadd.f32 %v595, %v835
        %v900 = vadd.f32 %v596, %v836
        %v901 = vadd.f32 %v597, %v837
        %v902 = vadd.f32 %v598, %v838
        %v903 = vadd.f32 %v599, %v839
        %904 = vset.pattern.permute.xlu0 2
        %905 = vperm.xlu0 %904, %v216
        %v906 = vpop.permute.xlu0 %905
        %907 = vset.pattern.permute.xlu0 2
        %908 = vperm.xlu0 %907, %v217
        %v909 = vpop.permute.xlu0 %908
        %910 = vset.pattern.permute.xlu0 2
        %911 = vperm.xlu0 %910, %v218
        %v912 = vpop.permute.xlu0 %911
        %913 = vset.pattern.permute.xlu0 2
        %914 = vperm.xlu0 %913, %v219
        %v915 = vpop.permute.xlu0 %914
        %916 = vset.pattern.permute.xlu0 2
        %917 = vperm.xlu0 %916, %v220
        %v918 = vpop.permute.xlu0 %917
        %919 = vset.pattern.permute.xlu0 2
        %920 = vperm.xlu0 %919, %v221
        %v921 = vpop.permute.xlu0 %920
        %922 = vset.pattern.permute.xlu0 2
        %923 = vperm.xlu0 %922, %v222
        %v924 = vpop.permute.xlu0 %923
        %925 = vset.pattern.permute.xlu0 2
        %926 = vperm.xlu0 %925, %v223
        %v927 = vpop.permute.xlu0 %926
        %928 = vset.pattern.permute.xlu0 2
        %929 = vperm.xlu0 %928, %v224
        %v930 = vpop.permute.xlu0 %929
        %931 = vset.pattern.permute.xlu0 2
        %932 = vperm.xlu0 %931, %v225
        %v933 = vpop.permute.xlu0 %932
        %934 = vset.pattern.permute.xlu0 2
        %935 = vperm.xlu0 %934, %v226
        %v936 = vpop.permute.xlu0 %935
        %937 = vset.pattern.permute.xlu0 2
        %938 = vperm.xlu0 %937, %v227
        %v939 = vpop.permute.xlu0 %938
        %940 = vset.pattern.permute.xlu0 2
        %941 = vperm.xlu0 %940, %v228
        %v942 = vpop.permute.xlu0 %941
        %943 = vset.pattern.permute.xlu0 2
        %944 = vperm.xlu0 %943, %v229
        %v945 = vpop.permute.xlu0 %944
        %946 = vset.pattern.permute.xlu0 2
        %947 = vperm.xlu0 %946, %v230
        %v948 = vpop.permute.xlu0 %947
        %949 = vset.pattern.permute.xlu0 2
        %950 = vperm.xlu0 %949, %v231
        %v951 = vpop.permute.xlu0 %950
        %vm952 = vcmp.eq.s32.totalorder %v906, %v194
        %vm953 = vcmp.eq.s32.totalorder %v906, %v195
        %vm954 = vcmp.eq.s32.totalorder %v906, %v196
        %vm955 = vcmp.eq.s32.totalorder %v906, %v197
        %vm956 = vcmp.eq.s32.totalorder %v909, %v194
        %vm957 = vcmp.eq.s32.totalorder %v909, %v195
        %vm958 = vcmp.eq.s32.totalorder %v909, %v196
        %vm959 = vcmp.eq.s32.totalorder %v909, %v197
        %vm960 = vcmp.eq.s32.totalorder %v912, %v194
        %vm961 = vcmp.eq.s32.totalorder %v912, %v195
        %vm962 = vcmp.eq.s32.totalorder %v912, %v196
        %vm963 = vcmp.eq.s32.totalorder %v912, %v197
        %vm964 = vcmp.eq.s32.totalorder %v915, %v194
        %vm965 = vcmp.eq.s32.totalorder %v915, %v195
        %vm966 = vcmp.eq.s32.totalorder %v915, %v196
        %vm967 = vcmp.eq.s32.totalorder %v915, %v197
        %vm968 = vcmp.eq.s32.totalorder %v918, %v194
        %vm969 = vcmp.eq.s32.totalorder %v918, %v195
        %vm970 = vcmp.eq.s32.totalorder %v918, %v196
        %vm971 = vcmp.eq.s32.totalorder %v918, %v197
        %vm972 = vcmp.eq.s32.totalorder %v921, %v194
        %vm973 = vcmp.eq.s32.totalorder %v921, %v195
        %vm974 = vcmp.eq.s32.totalorder %v921, %v196
        %vm975 = vcmp.eq.s32.totalorder %v921, %v197
        %vm976 = vcmp.eq.s32.totalorder %v924, %v194
        %vm977 = vcmp.eq.s32.totalorder %v924, %v195
        %vm978 = vcmp.eq.s32.totalorder %v924, %v196
        %vm979 = vcmp.eq.s32.totalorder %v924, %v197
        %vm980 = vcmp.eq.s32.totalorder %v927, %v194
        %vm981 = vcmp.eq.s32.totalorder %v927, %v195
        %vm982 = vcmp.eq.s32.totalorder %v927, %v196
        %vm983 = vcmp.eq.s32.totalorder %v927, %v197
        %vm984 = vcmp.eq.s32.totalorder %v930, %v194
        %vm985 = vcmp.eq.s32.totalorder %v930, %v195
        %vm986 = vcmp.eq.s32.totalorder %v930, %v196
        %vm987 = vcmp.eq.s32.totalorder %v930, %v197
        %vm988 = vcmp.eq.s32.totalorder %v933, %v194
        %vm989 = vcmp.eq.s32.totalorder %v933, %v195
        %vm990 = vcmp.eq.s32.totalorder %v933, %v196
        %vm991 = vcmp.eq.s32.totalorder %v933, %v197
        %vm992 = vcmp.eq.s32.totalorder %v936, %v194
        %vm993 = vcmp.eq.s32.totalorder %v936, %v195
        %vm994 = vcmp.eq.s32.totalorder %v936, %v196
        %vm995 = vcmp.eq.s32.totalorder %v936, %v197
        %vm996 = vcmp.eq.s32.totalorder %v939, %v194
        %vm997 = vcmp.eq.s32.totalorder %v939, %v195
        %vm998 = vcmp.eq.s32.totalorder %v939, %v196
        %vm999 = vcmp.eq.s32.totalorder %v939, %v197
        %vm1000 = vcmp.eq.s32.totalorder %v942, %v194
        %vm1001 = vcmp.eq.s32.totalorder %v942, %v195
        %vm1002 = vcmp.eq.s32.totalorder %v942, %v196
        %vm1003 = vcmp.eq.s32.totalorder %v942, %v197
        %vm1004 = vcmp.eq.s32.totalorder %v945, %v194
        %vm1005 = vcmp.eq.s32.totalorder %v945, %v195
        %vm1006 = vcmp.eq.s32.totalorder %v945, %v196
        %vm1007 = vcmp.eq.s32.totalorder %v945, %v197
        %vm1008 = vcmp.eq.s32.totalorder %v948, %v194
        %vm1009 = vcmp.eq.s32.totalorder %v948, %v195
        %vm1010 = vcmp.eq.s32.totalorder %v948, %v196
        %vm1011 = vcmp.eq.s32.totalorder %v948, %v197
        %vm1012 = vcmp.eq.s32.totalorder %v951, %v194
        %vm1013 = vcmp.eq.s32.totalorder %v951, %v195
        %vm1014 = vcmp.eq.s32.totalorder %v951, %v196
        %vm1015 = vcmp.eq.s32.totalorder %v951, %v197
        %v1016 = vsel %vm952, 1, 0
        %v1017 = vsel %vm953, 1, 0
        %v1018 = vsel %vm954, 1, 0
        %v1019 = vsel %vm955, 1, 0
        %v1020 = vsel %vm956, 1, 0
        %v1021 = vsel %vm957, 1, 0
        %v1022 = vsel %vm958, 1, 0
        %v1023 = vsel %vm959, 1, 0
        %v1024 = vsel %vm960, 1, 0
        %v1025 = vsel %vm961, 1, 0
        %v1026 = vsel %vm962, 1, 0
        %v1027 = vsel %vm963, 1, 0
        %v1028 = vsel %vm964, 1, 0
        %v1029 = vsel %vm965, 1, 0
        %v1030 = vsel %vm966, 1, 0
        %v1031 = vsel %vm967, 1, 0
        %v1032 = vsel %vm968, 1, 0
        %v1033 = vsel %vm969, 1, 0
        %v1034 = vsel %vm970, 1, 0
        %v1035 = vsel %vm971, 1, 0
        %v1036 = vsel %vm972, 1, 0
        %v1037 = vsel %vm973, 1, 0
        %v1038 = vsel %vm974, 1, 0
        %v1039 = vsel %vm975, 1, 0
        %v1040 = vsel %vm976, 1, 0
        %v1041 = vsel %vm977, 1, 0
        %v1042 = vsel %vm978, 1, 0
        %v1043 = vsel %vm979, 1, 0
        %v1044 = vsel %vm980, 1, 0
        %v1045 = vsel %vm981, 1, 0
        %v1046 = vsel %vm982, 1, 0
        %v1047 = vsel %vm983, 1, 0
        %v1048 = vsel %vm984, 1, 0
        %v1049 = vsel %vm985, 1, 0
        %v1050 = vsel %vm986, 1, 0
        %v1051 = vsel %vm987, 1, 0
        %v1052 = vsel %vm988, 1, 0
        %v1053 = vsel %vm989, 1, 0
        %v1054 = vsel %vm990, 1, 0
        %v1055 = vsel %vm991, 1, 0
        %v1056 = vsel %vm992, 1, 0
        %v1057 = vsel %vm993, 1, 0
        %v1058 = vsel %vm994, 1, 0
        %v1059 = vsel %vm995, 1, 0
        %v1060 = vsel %vm996, 1, 0
        %v1061 = vsel %vm997, 1, 0
        %v1062 = vsel %vm998, 1, 0
        %v1063 = vsel %vm999, 1, 0
        %v1064 = vsel %vm1000, 1, 0
        %v1065 = vsel %vm1001, 1, 0
        %v1066 = vsel %vm1002, 1, 0
        %v1067 = vsel %vm1003, 1, 0
        %v1068 = vsel %vm1004, 1, 0
        %v1069 = vsel %vm1005, 1, 0
        %v1070 = vsel %vm1006, 1, 0
        %v1071 = vsel %vm1007, 1, 0
        %v1072 = vsel %vm1008, 1, 0
        %v1073 = vsel %vm1009, 1, 0
        %v1074 = vsel %vm1010, 1, 0
        %v1075 = vsel %vm1011, 1, 0
        %v1076 = vsel %vm1012, 1, 0
        %v1077 = vsel %vm1013, 1, 0
        %v1078 = vsel %vm1014, 1, 0
        %v1079 = vsel %vm1015, 1, 0
        %v1080 = vcvt.s32.f32 %v1016
        %v1081 = vcvt.s32.f32 %v1017
        %v1082 = vcvt.s32.f32 %v1018
        %v1083 = vcvt.s32.f32 %v1019
        %v1084 = vcvt.s32.f32 %v1020
        %v1085 = vcvt.s32.f32 %v1021
        %v1086 = vcvt.s32.f32 %v1022
        %v1087 = vcvt.s32.f32 %v1023
        %v1088 = vcvt.s32.f32 %v1024
        %v1089 = vcvt.s32.f32 %v1025
        %v1090 = vcvt.s32.f32 %v1026
        %v1091 = vcvt.s32.f32 %v1027
        %v1092 = vcvt.s32.f32 %v1028
        %v1093 = vcvt.s32.f32 %v1029
        %v1094 = vcvt.s32.f32 %v1030
        %v1095 = vcvt.s32.f32 %v1031
        %v1096 = vcvt.s32.f32 %v1032
        %v1097 = vcvt.s32.f32 %v1033
        %v1098 = vcvt.s32.f32 %v1034
        %v1099 = vcvt.s32.f32 %v1035
        %v1100 = vcvt.s32.f32 %v1036
        %v1101 = vcvt.s32.f32 %v1037
        %v1102 = vcvt.s32.f32 %v1038
        %v1103 = vcvt.s32.f32 %v1039
        %v1104 = vcvt.s32.f32 %v1040
        %v1105 = vcvt.s32.f32 %v1041
        %v1106 = vcvt.s32.f32 %v1042
        %v1107 = vcvt.s32.f32 %v1043
        %v1108 = vcvt.s32.f32 %v1044
        %v1109 = vcvt.s32.f32 %v1045
        %v1110 = vcvt.s32.f32 %v1046
        %v1111 = vcvt.s32.f32 %v1047
        %v1112 = vcvt.s32.f32 %v1048
        %v1113 = vcvt.s32.f32 %v1049
        %v1114 = vcvt.s32.f32 %v1050
        %v1115 = vcvt.s32.f32 %v1051
        %v1116 = vcvt.s32.f32 %v1052
        %v1117 = vcvt.s32.f32 %v1053
        %v1118 = vcvt.s32.f32 %v1054
        %v1119 = vcvt.s32.f32 %v1055
        %v1120 = vcvt.s32.f32 %v1056
        %v1121 = vcvt.s32.f32 %v1057
        %v1122 = vcvt.s32.f32 %v1058
        %v1123 = vcvt.s32.f32 %v1059
        %v1124 = vcvt.s32.f32 %v1060
        %v1125 = vcvt.s32.f32 %v1061
        %v1126 = vcvt.s32.f32 %v1062
        %v1127 = vcvt.s32.f32 %v1063
        %v1128 = vcvt.s32.f32 %v1064
        %v1129 = vcvt.s32.f32 %v1065
        %v1130 = vcvt.s32.f32 %v1066
        %v1131 = vcvt.s32.f32 %v1067
        %v1132 = vcvt.s32.f32 %v1068
        %v1133 = vcvt.s32.f32 %v1069
        %v1134 = vcvt.s32.f32 %v1070
        %v1135 = vcvt.s32.f32 %v1071
        %v1136 = vcvt.s32.f32 %v1072
        %v1137 = vcvt.s32.f32 %v1073
        %v1138 = vcvt.s32.f32 %v1074
        %v1139 = vcvt.s32.f32 %v1075
        %v1140 = vcvt.s32.f32 %v1076
        %v1141 = vcvt.s32.f32 %v1077
        %v1142 = vcvt.s32.f32 %v1078
        %v1143 = vcvt.s32.f32 %v1079
        %v1144 = vadd.f32 %v840, %v1080
        %v1145 = vadd.f32 %v841, %v1081
        %v1146 = vadd.f32 %v842, %v1082
        %v1147 = vadd.f32 %v843, %v1083
        %v1148 = vadd.f32 %v844, %v1084
        %v1149 = vadd.f32 %v845, %v1085
        %v1150 = vadd.f32 %v846, %v1086
        %v1151 = vadd.f32 %v847, %v1087
        %v1152 = vadd.f32 %v848, %v1088
        %v1153 = vadd.f32 %v849, %v1089
        %v1154 = vadd.f32 %v850, %v1090
        %v1155 = vadd.f32 %v851, %v1091
        %v1156 = vadd.f32 %v852, %v1092
        %v1157 = vadd.f32 %v853, %v1093
        %v1158 = vadd.f32 %v854, %v1094
        %v1159 = vadd.f32 %v855, %v1095
        %v1160 = vadd.f32 %v856, %v1096
        %v1161 = vadd.f32 %v857, %v1097
        %v1162 = vadd.f32 %v858, %v1098
        %v1163 = vadd.f32 %v859, %v1099
        %v1164 = vadd.f32 %v860, %v1100
        %v1165 = vadd.f32 %v861, %v1101
        %v1166 = vadd.f32 %v862, %v1102
        %v1167 = vadd.f32 %v863, %v1103
        %v1168 = vadd.f32 %v864, %v1104
        %v1169 = vadd.f32 %v865, %v1105
        %v1170 = vadd.f32 %v866, %v1106
        %v1171 = vadd.f32 %v867, %v1107
        %v1172 = vadd.f32 %v868, %v1108
        %v1173 = vadd.f32 %v869, %v1109
        %v1174 = vadd.f32 %v870, %v1110
        %v1175 = vadd.f32 %v871, %v1111
        %v1176 = vadd.f32 %v872, %v1112
        %v1177 = vadd.f32 %v873, %v1113
        %v1178 = vadd.f32 %v874, %v1114
        %v1179 = vadd.f32 %v875, %v1115
        %v1180 = vadd.f32 %v876, %v1116
        %v1181 = vadd.f32 %v877, %v1117
        %v1182 = vadd.f32 %v878, %v1118
        %v1183 = vadd.f32 %v879, %v1119
        %v1184 = vadd.f32 %v880, %v1120
        %v1185 = vadd.f32 %v881, %v1121
        %v1186 = vadd.f32 %v882, %v1122
        %v1187 = vadd.f32 %v883, %v1123
        %v1188 = vadd.f32 %v884, %v1124
        %v1189 = vadd.f32 %v885, %v1125
        %v1190 = vadd.f32 %v886, %v1126
        %v1191 = vadd.f32 %v887, %v1127
        %v1192 = vadd.f32 %v888, %v1128
        %v1193 = vadd.f32 %v889, %v1129
        %v1194 = vadd.f32 %v890, %v1130
        %v1195 = vadd.f32 %v891, %v1131
        %v1196 = vadd.f32 %v892, %v1132
        %v1197 = vadd.f32 %v893, %v1133
        %v1198 = vadd.f32 %v894, %v1134
        %v1199 = vadd.f32 %v895, %v1135
        %v1200 = vadd.f32 %v896, %v1136
        %v1201 = vadd.f32 %v897, %v1137
        %v1202 = vadd.f32 %v898, %v1138
        %v1203 = vadd.f32 %v899, %v1139
        %v1204 = vadd.f32 %v900, %v1140
        %v1205 = vadd.f32 %v901, %v1141
        %v1206 = vadd.f32 %v902, %v1142
        %v1207 = vadd.f32 %v903, %v1143
        %1208 = vset.pattern.permute.xlu0 3
        %1209 = vperm.xlu0 %1208, %v216
        %v1210 = vpop.permute.xlu0 %1209
        %1211 = vset.pattern.permute.xlu0 3
        %1212 = vperm.xlu0 %1211, %v217
        %v1213 = vpop.permute.xlu0 %1212
        %1214 = vset.pattern.permute.xlu0 3
        %1215 = vperm.xlu0 %1214, %v218
        %v1216 = vpop.permute.xlu0 %1215
        %1217 = vset.pattern.permute.xlu0 3
        %1218 = vperm.xlu0 %1217, %v219
        %v1219 = vpop.permute.xlu0 %1218
        %1220 = vset.pattern.permute.xlu0 3
        %1221 = vperm.xlu0 %1220, %v220
        %v1222 = vpop.permute.xlu0 %1221
        %1223 = vset.pattern.permute.xlu0 3
        %1224 = vperm.xlu0 %1223, %v221
        %v1225 = vpop.permute.xlu0 %1224
        %1226 = vset.pattern.permute.xlu0 3
        %1227 = vperm.xlu0 %1226, %v222
        %v1228 = vpop.permute.xlu0 %1227
        %1229 = vset.pattern.permute.xlu0 3
        %1230 = vperm.xlu0 %1229, %v223
        %v1231 = vpop.permute.xlu0 %1230
        %1232 = vset.pattern.permute.xlu0 3
        %1233 = vperm.xlu0 %1232, %v224
        %v1234 = vpop.permute.xlu0 %1233
        %1235 = vset.pattern.permute.xlu0 3
        %1236 = vperm.xlu0 %1235, %v225
        %v1237 = vpop.permute.xlu0 %1236
        %1238 = vset.pattern.permute.xlu0 3
        %1239 = vperm.xlu0 %1238, %v226
        %v1240 = vpop.permute.xlu0 %1239
        %1241 = vset.pattern.permute.xlu0 3
        %1242 = vperm.xlu0 %1241, %v227
        %v1243 = vpop.permute.xlu0 %1242
        %1244 = vset.pattern.permute.xlu0 3
        %1245 = vperm.xlu0 %1244, %v228
        %v1246 = vpop.permute.xlu0 %1245
        %1247 = vset.pattern.permute.xlu0 3
        %1248 = vperm.xlu0 %1247, %v229
        %v1249 = vpop.permute.xlu0 %1248
        %1250 = vset.pattern.permute.xlu0 3
        %1251 = vperm.xlu0 %1250, %v230
        %v1252 = vpop.permute.xlu0 %1251
        %1253 = vset.pattern.permute.xlu0 3
        %1254 = vperm.xlu0 %1253, %v231
        %v1255 = vpop.permute.xlu0 %1254
        %vm1256 = vcmp.eq.s32.totalorder %v1210, %v194
        %vm1257 = vcmp.eq.s32.totalorder %v1210, %v195
        %vm1258 = vcmp.eq.s32.totalorder %v1210, %v196
        %vm1259 = vcmp.eq.s32.totalorder %v1210, %v197
        %vm1260 = vcmp.eq.s32.totalorder %v1213, %v194
        %vm1261 = vcmp.eq.s32.totalorder %v1213, %v195
        %vm1262 = vcmp.eq.s32.totalorder %v1213, %v196
        %vm1263 = vcmp.eq.s32.totalorder %v1213, %v197
        %vm1264 = vcmp.eq.s32.totalorder %v1216, %v194
        %vm1265 = vcmp.eq.s32.totalorder %v1216, %v195
        %vm1266 = vcmp.eq.s32.totalorder %v1216, %v196
        %vm1267 = vcmp.eq.s32.totalorder %v1216, %v197
        %vm1268 = vcmp.eq.s32.totalorder %v1219, %v194
        %vm1269 = vcmp.eq.s32.totalorder %v1219, %v195
        %vm1270 = vcmp.eq.s32.totalorder %v1219, %v196
        %vm1271 = vcmp.eq.s32.totalorder %v1219, %v197
        %vm1272 = vcmp.eq.s32.totalorder %v1222, %v194
        %vm1273 = vcmp.eq.s32.totalorder %v1222, %v195
        %vm1274 = vcmp.eq.s32.totalorder %v1222, %v196
        %vm1275 = vcmp.eq.s32.totalorder %v1222, %v197
        %vm1276 = vcmp.eq.s32.totalorder %v1225, %v194
        %vm1277 = vcmp.eq.s32.totalorder %v1225, %v195
        %vm1278 = vcmp.eq.s32.totalorder %v1225, %v196
        %vm1279 = vcmp.eq.s32.totalorder %v1225, %v197
        %vm1280 = vcmp.eq.s32.totalorder %v1228, %v194
        %vm1281 = vcmp.eq.s32.totalorder %v1228, %v195
        %vm1282 = vcmp.eq.s32.totalorder %v1228, %v196
        %vm1283 = vcmp.eq.s32.totalorder %v1228, %v197
        %vm1284 = vcmp.eq.s32.totalorder %v1231, %v194
        %vm1285 = vcmp.eq.s32.totalorder %v1231, %v195
        %vm1286 = vcmp.eq.s32.totalorder %v1231, %v196
        %vm1287 = vcmp.eq.s32.totalorder %v1231, %v197
        %vm1288 = vcmp.eq.s32.totalorder %v1234, %v194
        %vm1289 = vcmp.eq.s32.totalorder %v1234, %v195
        %vm1290 = vcmp.eq.s32.totalorder %v1234, %v196
        %vm1291 = vcmp.eq.s32.totalorder %v1234, %v197
        %vm1292 = vcmp.eq.s32.totalorder %v1237, %v194
        %vm1293 = vcmp.eq.s32.totalorder %v1237, %v195
        %vm1294 = vcmp.eq.s32.totalorder %v1237, %v196
        %vm1295 = vcmp.eq.s32.totalorder %v1237, %v197
        %vm1296 = vcmp.eq.s32.totalorder %v1240, %v194
        %vm1297 = vcmp.eq.s32.totalorder %v1240, %v195
        %vm1298 = vcmp.eq.s32.totalorder %v1240, %v196
        %vm1299 = vcmp.eq.s32.totalorder %v1240, %v197
        %vm1300 = vcmp.eq.s32.totalorder %v1243, %v194
        %vm1301 = vcmp.eq.s32.totalorder %v1243, %v195
        %vm1302 = vcmp.eq.s32.totalorder %v1243, %v196
        %vm1303 = vcmp.eq.s32.totalorder %v1243, %v197
        %vm1304 = vcmp.eq.s32.totalorder %v1246, %v194
        %vm1305 = vcmp.eq.s32.totalorder %v1246, %v195
        %vm1306 = vcmp.eq.s32.totalorder %v1246, %v196
        %vm1307 = vcmp.eq.s32.totalorder %v1246, %v197
        %vm1308 = vcmp.eq.s32.totalorder %v1249, %v194
        %vm1309 = vcmp.eq.s32.totalorder %v1249, %v195
        %vm1310 = vcmp.eq.s32.totalorder %v1249, %v196
        %vm1311 = vcmp.eq.s32.totalorder %v1249, %v197
        %vm1312 = vcmp.eq.s32.totalorder %v1252, %v194
        %vm1313 = vcmp.eq.s32.totalorder %v1252, %v195
        %vm1314 = vcmp.eq.s32.totalorder %v1252, %v196
        %vm1315 = vcmp.eq.s32.totalorder %v1252, %v197
        %vm1316 = vcmp.eq.s32.totalorder %v1255, %v194
        %vm1317 = vcmp.eq.s32.totalorder %v1255, %v195
        %vm1318 = vcmp.eq.s32.totalorder %v1255, %v196
        %vm1319 = vcmp.eq.s32.totalorder %v1255, %v197
        %v1320 = vsel %vm1256, 1, 0
        %v1321 = vsel %vm1257, 1, 0
        %v1322 = vsel %vm1258, 1, 0
        %v1323 = vsel %vm1259, 1, 0
        %v1324 = vsel %vm1260, 1, 0
        %v1325 = vsel %vm1261, 1, 0
        %v1326 = vsel %vm1262, 1, 0
        %v1327 = vsel %vm1263, 1, 0
        %v1328 = vsel %vm1264, 1, 0
        %v1329 = vsel %vm1265, 1, 0
        %v1330 = vsel %vm1266, 1, 0
        %v1331 = vsel %vm1267, 1, 0
        %v1332 = vsel %vm1268, 1, 0
        %v1333 = vsel %vm1269, 1, 0
        %v1334 = vsel %vm1270, 1, 0
        %v1335 = vsel %vm1271, 1, 0
        %v1336 = vsel %vm1272, 1, 0
        %v1337 = vsel %vm1273, 1, 0
        %v1338 = vsel %vm1274, 1, 0
        %v1339 = vsel %vm1275, 1, 0
        %v1340 = vsel %vm1276, 1, 0
        %v1341 = vsel %vm1277, 1, 0
        %v1342 = vsel %vm1278, 1, 0
        %v1343 = vsel %vm1279, 1, 0
        %v1344 = vsel %vm1280, 1, 0
        %v1345 = vsel %vm1281, 1, 0
        %v1346 = vsel %vm1282, 1, 0
        %v1347 = vsel %vm1283, 1, 0
        %v1348 = vsel %vm1284, 1, 0
        %v1349 = vsel %vm1285, 1, 0
        %v1350 = vsel %vm1286, 1, 0
        %v1351 = vsel %vm1287, 1, 0
        %v1352 = vsel %vm1288, 1, 0
        %v1353 = vsel %vm1289, 1, 0
        %v1354 = vsel %vm1290, 1, 0
        %v1355 = vsel %vm1291, 1, 0
        %v1356 = vsel %vm1292, 1, 0
        %v1357 = vsel %vm1293, 1, 0
        %v1358 = vsel %vm1294, 1, 0
        %v1359 = vsel %vm1295, 1, 0
        %v1360 = vsel %vm1296, 1, 0
        %v1361 = vsel %vm1297, 1, 0
        %v1362 = vsel %vm1298, 1, 0
        %v1363 = vsel %vm1299, 1, 0
        %v1364 = vsel %vm1300, 1, 0
        %v1365 = vsel %vm1301, 1, 0
        %v1366 = vsel %vm1302, 1, 0
        %v1367 = vsel %vm1303, 1, 0
        %v1368 = vsel %vm1304, 1, 0
        %v1369 = vsel %vm1305, 1, 0
        %v1370 = vsel %vm1306, 1, 0
        %v1371 = vsel %vm1307, 1, 0
        %v1372 = vsel %vm1308, 1, 0
        %v1373 = vsel %vm1309, 1, 0
        %v1374 = vsel %vm1310, 1, 0
        %v1375 = vsel %vm1311, 1, 0
        %v1376 = vsel %vm1312, 1, 0
        %v1377 = vsel %vm1313, 1, 0
        %v1378 = vsel %vm1314, 1, 0
        %v1379 = vsel %vm1315, 1, 0
        %v1380 = vsel %vm1316, 1, 0
        %v1381 = vsel %vm1317, 1, 0
        %v1382 = vsel %vm1318, 1, 0
        %v1383 = vsel %vm1319, 1, 0
        %v1384 = vcvt.s32.f32 %v1320
        %v1385 = vcvt.s32.f32 %v1321
        %v1386 = vcvt.s32.f32 %v1322
        %v1387 = vcvt.s32.f32 %v1323
        %v1388 = vcvt.s32.f32 %v1324
        %v1389 = vcvt.s32.f32 %v1325
        %v1390 = vcvt.s32.f32 %v1326
        %v1391 = vcvt.s32.f32 %v1327
        %v1392 = vcvt.s32.f32 %v1328
        %v1393 = vcvt.s32.f32 %v1329
        %v1394 = vcvt.s32.f32 %v1330
        %v1395 = vcvt.s32.f32 %v1331
        %v1396 = vcvt.s32.f32 %v1332
        %v1397 = vcvt.s32.f32 %v1333
        %v1398 = vcvt.s32.f32 %v1334
        %v1399 = vcvt.s32.f32 %v1335
        %v1400 = vcvt.s32.f32 %v1336
        %v1401 = vcvt.s32.f32 %v1337
        %v1402 = vcvt.s32.f32 %v1338
        %v1403 = vcvt.s32.f32 %v1339
        %v1404 = vcvt.s32.f32 %v1340
        %v1405 = vcvt.s32.f32 %v1341
        %v1406 = vcvt.s32.f32 %v1342
        %v1407 = vcvt.s32.f32 %v1343
        %v1408 = vcvt.s32.f32 %v1344
        %v1409 = vcvt.s32.f32 %v1345
        %v1410 = vcvt.s32.f32 %v1346
        %v1411 = vcvt.s32.f32 %v1347
        %v1412 = vcvt.s32.f32 %v1348
        %v1413 = vcvt.s32.f32 %v1349
        %v1414 = vcvt.s32.f32 %v1350
        %v1415 = vcvt.s32.f32 %v1351
        %v1416 = vcvt.s32.f32 %v1352
        %v1417 = vcvt.s32.f32 %v1353
        %v1418 = vcvt.s32.f32 %v1354
        %v1419 = vcvt.s32.f32 %v1355
        %v1420 = vcvt.s32.f32 %v1356
        %v1421 = vcvt.s32.f32 %v1357
        %v1422 = vcvt.s32.f32 %v1358
        %v1423 = vcvt.s32.f32 %v1359
        %v1424 = vcvt.s32.f32 %v1360
        %v1425 = vcvt.s32.f32 %v1361
        %v1426 = vcvt.s32.f32 %v1362
        %v1427 = vcvt.s32.f32 %v1363
        %v1428 = vcvt.s32.f32 %v1364
        %v1429 = vcvt.s32.f32 %v1365
        %v1430 = vcvt.s32.f32 %v1366
        %v1431 = vcvt.s32.f32 %v1367
        %v1432 = vcvt.s32.f32 %v1368
        %v1433 = vcvt.s32.f32 %v1369
        %v1434 = vcvt.s32.f32 %v1370
        %v1435 = vcvt.s32.f32 %v1371
        %v1436 = vcvt.s32.f32 %v1372
        %v1437 = vcvt.s32.f32 %v1373
        %v1438 = vcvt.s32.f32 %v1374
        %v1439 = vcvt.s32.f32 %v1375
        %v1440 = vcvt.s32.f32 %v1376
        %v1441 = vcvt.s32.f32 %v1377
        %v1442 = vcvt.s32.f32 %v1378
        %v1443 = vcvt.s32.f32 %v1379
        %v1444 = vcvt.s32.f32 %v1380
        %v1445 = vcvt.s32.f32 %v1381
        %v1446 = vcvt.s32.f32 %v1382
        %v1447 = vcvt.s32.f32 %v1383
        %v1448 = vadd.f32 %v1144, %v1384
        %v1449 = vadd.f32 %v1145, %v1385
        %v1450 = vadd.f32 %v1146, %v1386
        %v1451 = vadd.f32 %v1147, %v1387
        %v1452 = vadd.f32 %v1148, %v1388
        %v1453 = vadd.f32 %v1149, %v1389
        %v1454 = vadd.f32 %v1150, %v1390
        %v1455 = vadd.f32 %v1151, %v1391
        %v1456 = vadd.f32 %v1152, %v1392
        %v1457 = vadd.f32 %v1153, %v1393
        %v1458 = vadd.f32 %v1154, %v1394
        %v1459 = vadd.f32 %v1155, %v1395
        %v1460 = vadd.f32 %v1156, %v1396
        %v1461 = vadd.f32 %v1157, %v1397
        %v1462 = vadd.f32 %v1158, %v1398
        %v1463 = vadd.f32 %v1159, %v1399
        %v1464 = vadd.f32 %v1160, %v1400
        %v1465 = vadd.f32 %v1161, %v1401
        %v1466 = vadd.f32 %v1162, %v1402
        %v1467 = vadd.f32 %v1163, %v1403
        %v1468 = vadd.f32 %v1164, %v1404
        %v1469 = vadd.f32 %v1165, %v1405
        %v1470 = vadd.f32 %v1166, %v1406
        %v1471 = vadd.f32 %v1167, %v1407
        %v1472 = vadd.f32 %v1168, %v1408
        %v1473 = vadd.f32 %v1169, %v1409
        %v1474 = vadd.f32 %v1170, %v1410
        %v1475 = vadd.f32 %v1171, %v1411
        %v1476 = vadd.f32 %v1172, %v1412
        %v1477 = vadd.f32 %v1173, %v1413
        %v1478 = vadd.f32 %v1174, %v1414
        %v1479 = vadd.f32 %v1175, %v1415
        %v1480 = vadd.f32 %v1176, %v1416
        %v1481 = vadd.f32 %v1177, %v1417
        %v1482 = vadd.f32 %v1178, %v1418
        %v1483 = vadd.f32 %v1179, %v1419
        %v1484 = vadd.f32 %v1180, %v1420
        %v1485 = vadd.f32 %v1181, %v1421
        %v1486 = vadd.f32 %v1182, %v1422
        %v1487 = vadd.f32 %v1183, %v1423
        %v1488 = vadd.f32 %v1184, %v1424
        %v1489 = vadd.f32 %v1185, %v1425
        %v1490 = vadd.f32 %v1186, %v1426
        %v1491 = vadd.f32 %v1187, %v1427
        %v1492 = vadd.f32 %v1188, %v1428
        %v1493 = vadd.f32 %v1189, %v1429
        %v1494 = vadd.f32 %v1190, %v1430
        %v1495 = vadd.f32 %v1191, %v1431
        %v1496 = vadd.f32 %v1192, %v1432
        %v1497 = vadd.f32 %v1193, %v1433
        %v1498 = vadd.f32 %v1194, %v1434
        %v1499 = vadd.f32 %v1195, %v1435
        %v1500 = vadd.f32 %v1196, %v1436
        %v1501 = vadd.f32 %v1197, %v1437
        %v1502 = vadd.f32 %v1198, %v1438
        %v1503 = vadd.f32 %v1199, %v1439
        %v1504 = vadd.f32 %v1200, %v1440
        %v1505 = vadd.f32 %v1201, %v1441
        %v1506 = vadd.f32 %v1202, %v1442
        %v1507 = vadd.f32 %v1203, %v1443
        %v1508 = vadd.f32 %v1204, %v1444
        %v1509 = vadd.f32 %v1205, %v1445
        %v1510 = vadd.f32 %v1206, %v1446
        %v1511 = vadd.f32 %v1207, %v1447
        %v1512 = vpack.c.bf16 %v1452, %v1448
        %v1513 = vpack.c.bf16 %v1453, %v1449
        %v1514 = vpack.c.bf16 %v1454, %v1450
        %v1515 = vpack.c.bf16 %v1455, %v1451
        %v1516 = vpack.c.bf16 %v1460, %v1456
        %v1517 = vpack.c.bf16 %v1461, %v1457
        %v1518 = vpack.c.bf16 %v1462, %v1458
        %v1519 = vpack.c.bf16 %v1463, %v1459
        %v1520 = vpack.c.bf16 %v1468, %v1464
        %v1521 = vpack.c.bf16 %v1469, %v1465
        %v1522 = vpack.c.bf16 %v1470, %v1466
        %v1523 = vpack.c.bf16 %v1471, %v1467
        %v1524 = vpack.c.bf16 %v1476, %v1472
        %v1525 = vpack.c.bf16 %v1477, %v1473
        %v1526 = vpack.c.bf16 %v1478, %v1474
        %v1527 = vpack.c.bf16 %v1479, %v1475
        %v1528 = vpack.c.bf16 %v1484, %v1480
        %v1529 = vpack.c.bf16 %v1485, %v1481
        %v1530 = vpack.c.bf16 %v1486, %v1482
        %v1531 = vpack.c.bf16 %v1487, %v1483
        %v1532 = vpack.c.bf16 %v1492, %v1488
        %v1533 = vpack.c.bf16 %v1493, %v1489
        %v1534 = vpack.c.bf16 %v1494, %v1490
        %v1535 = vpack.c.bf16 %v1495, %v1491
        %v1536 = vpack.c.bf16 %v1500, %v1496
        %v1537 = vpack.c.bf16 %v1501, %v1497
        %v1538 = vpack.c.bf16 %v1502, %v1498
        %v1539 = vpack.c.bf16 %v1503, %v1499
        %v1540 = vpack.c.bf16 %v1508, %v1504
        %v1541 = vpack.c.bf16 %v1509, %v1505
        %v1542 = vpack.c.bf16 %v1510, %v1506
        %v1543 = vpack.c.bf16 %v1511, %v1507
        %v1608 = vunpack.c.l.b16 %v232
        %v1609 = vunpack.c.l.b16 %v233
        %v1610 = vunpack.c.l.b16 %v234
        %v1611 = vunpack.c.l.b16 %v235
        %v1612 = vunpack.c.l.b16 %v236
        %v1613 = vunpack.c.l.b16 %v237
        %v1614 = vunpack.c.l.b16 %v238
        %v1615 = vunpack.c.l.b16 %v239
        %v1616 = vunpack.c.l.b16 %v240
        %v1617 = vunpack.c.l.b16 %v241
        %v1618 = vunpack.c.l.b16 %v242
        %v1619 = vunpack.c.l.b16 %v243
        %v1620 = vunpack.c.l.b16 %v244
        %v1621 = vunpack.c.l.b16 %v245
        %v1622 = vunpack.c.l.b16 %v246
        %v1623 = vunpack.c.l.b16 %v247
        %v1624 = vunpack.c.l.b16 %v248
        %v1625 = vunpack.c.l.b16 %v249
        %v1626 = vunpack.c.l.b16 %v250
        %v1627 = vunpack.c.l.b16 %v251
        %v1628 = vunpack.c.l.b16 %v252
        %v1629 = vunpack.c.l.b16 %v253
        %v1630 = vunpack.c.l.b16 %v254
        %v1631 = vunpack.c.l.b16 %v255
        %v1632 = vunpack.c.l.b16 %v256
        %v1633 = vunpack.c.l.b16 %v257
        %v1634 = vunpack.c.l.b16 %v258
        %v1635 = vunpack.c.l.b16 %v259
        %v1636 = vunpack.c.l.b16 %v260
        %v1637 = vunpack.c.l.b16 %v261
        %v1638 = vunpack.c.l.b16 %v262
        %v1639 = vunpack.c.l.b16 %v263
        %v1640 = vunpack.c.l.b16 %v264
        %v1641 = vunpack.c.l.b16 %v265
        %v1642 = vunpack.c.l.b16 %v266
        %v1643 = vunpack.c.l.b16 %v267
        %v1644 = vunpack.c.l.b16 %v268
        %v1645 = vunpack.c.l.b16 %v269
        %v1646 = vunpack.c.l.b16 %v270
        %v1647 = vunpack.c.l.b16 %v271
        %v1648 = vunpack.c.l.b16 %v272
        %v1649 = vunpack.c.l.b16 %v273
        %v1650 = vunpack.c.l.b16 %v274
        %v1651 = vunpack.c.l.b16 %v275
        %v1652 = vunpack.c.l.b16 %v276
        %v1653 = vunpack.c.l.b16 %v277
        %v1654 = vunpack.c.l.b16 %v278
        %v1655 = vunpack.c.l.b16 %v279
        %v1656 = vunpack.c.l.b16 %v280
        %v1657 = vunpack.c.l.b16 %v281
        %v1658 = vunpack.c.l.b16 %v282
        %v1659 = vunpack.c.l.b16 %v283
        %v1660 = vunpack.c.l.b16 %v284
        %v1661 = vunpack.c.l.b16 %v285
        %v1662 = vunpack.c.l.b16 %v286
        %v1663 = vunpack.c.l.b16 %v287
        %v1664 = vunpack.c.l.b16 %v288
        %v1665 = vunpack.c.l.b16 %v289
        %v1666 = vunpack.c.l.b16 %v290
        %v1667 = vunpack.c.l.b16 %v291
        %v1668 = vunpack.c.l.b16 %v292
        %v1669 = vunpack.c.l.b16 %v293
        %v1670 = vunpack.c.l.b16 %v294
        %v1671 = vunpack.c.l.b16 %v295
        %v1672 = vpack.c.b16 %v1609, %v1608
        %v1673 = vpack.c.b16 %v1611, %v1610
        %v1674 = vpack.c.b16 %v1613, %v1612
        %v1675 = vpack.c.b16 %v1615, %v1614
        %v1676 = vpack.c.b16 %v1617, %v1616
        %v1677 = vpack.c.b16 %v1619, %v1618
        %v1678 = vpack.c.b16 %v1621, %v1620
        %v1679 = vpack.c.b16 %v1623, %v1622
        %v1680 = vpack.c.b16 %v1625, %v1624
        %v1681 = vpack.c.b16 %v1627, %v1626
        %v1682 = vpack.c.b16 %v1629, %v1628
        %v1683 = vpack.c.b16 %v1631, %v1630
        %v1684 = vpack.c.b16 %v1633, %v1632
        %v1685 = vpack.c.b16 %v1635, %v1634
        %v1686 = vpack.c.b16 %v1637, %v1636
        %v1687 = vpack.c.b16 %v1639, %v1638
        %v1688 = vpack.c.b16 %v1641, %v1640
        %v1689 = vpack.c.b16 %v1643, %v1642
        %v1690 = vpack.c.b16 %v1645, %v1644
        %v1691 = vpack.c.b16 %v1647, %v1646
        %v1692 = vpack.c.b16 %v1649, %v1648
        %v1693 = vpack.c.b16 %v1651, %v1650
        %v1694 = vpack.c.b16 %v1653, %v1652
        %v1695 = vpack.c.b16 %v1655, %v1654
        %v1696 = vpack.c.b16 %v1657, %v1656
        %v1697 = vpack.c.b16 %v1659, %v1658
        %v1698 = vpack.c.b16 %v1661, %v1660
        %v1699 = vpack.c.b16 %v1663, %v1662
        %v1700 = vpack.c.b16 %v1665, %v1664
        %v1701 = vpack.c.b16 %v1667, %v1666
        %v1702 = vpack.c.b16 %v1669, %v1668
        %v1703 = vpack.c.b16 %v1671, %v1670
        %1736 = vmatprep.subr.bf16.mxu0 0
        %1737 = vmatpush1.bf16.msra.mxu0 %v1672
        %1738 = vmatprep.subr.bf16.mxu0 0
        %1739 = vmatpush1.bf16.msra.mxu0 %v1673
        %1740 = vmatprep.subr.bf16.mxu0 0
        %1741 = vmatpush1.bf16.msra.mxu0 %v1674
        %1742 = vmatprep.subr.bf16.mxu0 0
        %1743 = vmatpush1.bf16.msra.mxu0 %v1675
        %1744 = vmatprep.subr.bf16.mxu0 0
        %1745 = vmatpush1.bf16.msra.mxu0 %v1676
        %1746 = vmatprep.subr.bf16.mxu0 0
        %1747 = vmatpush1.bf16.msra.mxu0 %v1677
        %1748 = vmatprep.subr.bf16.mxu0 0
        %1749 = vmatpush1.bf16.msra.mxu0 %v1678
        %1750 = vmatprep.subr.bf16.mxu0 0
        %1751 = vmatpush1.bf16.msra.mxu0 %v1679
        %1752 = vmatprep.subr.bf16.mxu0 0
        %1753 = vmatpush1.bf16.msra.mxu0 %v1680
        %1754 = vmatprep.subr.bf16.mxu0 0
        %1755 = vmatpush1.bf16.msra.mxu0 %v1681
        %1756 = vmatprep.subr.bf16.mxu0 0
        %1757 = vmatpush1.bf16.msra.mxu0 %v1682
        %1758 = vmatprep.subr.bf16.mxu0 0
        %1759 = vmatpush1.bf16.msra.mxu0 %v1683
        %1760 = vmatprep.subr.bf16.mxu0 0
        %1761 = vmatpush1.bf16.msra.mxu0 %v1684
        %1762 = vmatprep.subr.bf16.mxu0 0
        %1763 = vmatpush1.bf16.msra.mxu0 %v1685
        %1764 = vmatprep.subr.bf16.mxu0 0
        %1765 = vmatpush1.bf16.msra.mxu0 %v1686
        %1766 = vmatprep.subr.bf16.mxu0 0
        %1767 = vmatpush1.bf16.msra.mxu0 %v1687
        %1768 = vmatprep.mubr.bf16.mxu0 %v1513
        %1769 = vmatmul.mubr.bf16.gmra.mrb[0].mxu0 %v1512
        %v1770 = vpop.f32.mrb[0].mxu0
        %v1771 = vadd.f32 0.0, %v1770
        %v1772 = vpop.f32.mrb[0].mxu0
        %v1773 = vpop.f32.mrb[0].mxu0
        %v1774 = vadd.f32 0.0, %v1773
        %v1775 = vpop.f32.mrb[0].mxu0
        %1776 = vmatprep.mubr.bf16.mxu0 %v1517
        %1777 = vmatmul.mubr.bf16.gmra.mrb[0].mxu0 %v1516
        %v1778 = vpop.f32.mrb[0].mxu0
        %v1779 = vadd.f32 0.0, %v1778
        %v1780 = vpop.f32.mrb[0].mxu0
        %v1781 = vpop.f32.mrb[0].mxu0
        %v1782 = vadd.f32 0.0, %v1781
        %v1783 = vpop.f32.mrb[0].mxu0
        %1784 = vmatprep.mubr.bf16.mxu0 %v1521
        %1785 = vmatmul.mubr.bf16.gmra.mrb[0].mxu0 %v1520
        %v1786 = vpop.f32.mrb[0].mxu0
        %v1787 = vadd.f32 0.0, %v1786
        %v1788 = vpop.f32.mrb[0].mxu0
        %v1789 = vpop.f32.mrb[0].mxu0
        %v1790 = vadd.f32 0.0, %v1789
        %v1791 = vpop.f32.mrb[0].mxu0
        %1792 = vmatprep.mubr.bf16.mxu0 %v1525
        %1793 = vmatmul.mubr.bf16.gmra.mrb[0].mxu0 %v1524
        %v1794 = vpop.f32.mrb[0].mxu0
        %v1795 = vadd.f32 0.0, %v1794
        %v1796 = vpop.f32.mrb[0].mxu0
        %v1797 = vpop.f32.mrb[0].mxu0
        %v1798 = vadd.f32 0.0, %v1797
        %v1799 = vpop.f32.mrb[0].mxu0
        %1800 = vmatprep.mubr.bf16.mxu0 %v1529
        %1801 = vmatmul.mubr.bf16.gmra.mrb[0].mxu0 %v1528
        %v1802 = vpop.f32.mrb[0].mxu0
        %v1803 = vadd.f32 0.0, %v1802
        %v1804 = vpop.f32.mrb[0].mxu0
        %v1805 = vpop.f32.mrb[0].mxu0
        %v1806 = vadd.f32 0.0, %v1805
        %v1807 = vpop.f32.mrb[0].mxu0
        %1808 = vmatprep.mubr.bf16.mxu0 %v1533
        %1809 = vmatmul.mubr.bf16.gmra.mrb[0].mxu0 %v1532
        %v1810 = vpop.f32.mrb[0].mxu0
        %v1811 = vadd.f32 0.0, %v1810
        %v1812 = vpop.f32.mrb[0].mxu0
        %v1813 = vpop.f32.mrb[0].mxu0
        %v1814 = vadd.f32 0.0, %v1813
        %v1815 = vpop.f32.mrb[0].mxu0
        %1816 = vmatprep.mubr.bf16.mxu0 %v1537
        %1817 = vmatmul.mubr.bf16.gmra.mrb[0].mxu0 %v1536
        %v1818 = vpop.f32.mrb[0].mxu0
        %v1819 = vadd.f32 0.0, %v1818
        %v1820 = vpop.f32.mrb[0].mxu0
        %v1821 = vpop.f32.mrb[0].mxu0
        %v1822 = vadd.f32 0.0, %v1821
        %v1823 = vpop.f32.mrb[0].mxu0
        %1824 = vmatprep.mubr.bf16.mxu0 %v1541
        %1825 = vmatmul.mubr.bf16.gmra.mrb[0].mxu0 %v1540
        %v1826 = vpop.f32.mrb[0].mxu0
        %v1827 = vadd.f32 0.0, %v1826
        %v1828 = vpop.f32.mrb[0].mxu0
        %v1829 = vpop.f32.mrb[0].mxu0
        %v1830 = vadd.f32 0.0, %v1829
        %v1831 = vpop.f32.mrb[0].mxu0
        %1832 = vdwg.mxu0
        %1833 = vmatprep.subr.bf16.mxu0 0
        %1834 = vmatpush1.bf16.msra.mxu0 %v1688
        %1835 = vmatprep.subr.bf16.mxu0 0
        %1836 = vmatpush1.bf16.msra.mxu0 %v1689
        %1837 = vmatprep.subr.bf16.mxu0 0
        %1838 = vmatpush1.bf16.msra.mxu0 %v1690
        %1839 = vmatprep.subr.bf16.mxu0 0
        %1840 = vmatpush1.bf16.msra.mxu0 %v1691
        %1841 = vmatprep.subr.bf16.mxu0 0
        %1842 = vmatpush1.bf16.msra.mxu0 %v1692
        %1843 = vmatprep.subr.bf16.mxu0 0
        %1844 = vmatpush1.bf16.msra.mxu0 %v1693
        %1845 = vmatprep.subr.bf16.mxu0 0
        %1846 = vmatpush1.bf16.msra.mxu0 %v1694
        %1847 = vmatprep.subr.bf16.mxu0 0
        %1848 = vmatpush1.bf16.msra.mxu0 %v1695
        %1849 = vmatprep.subr.bf16.mxu0 0
        %1850 = vmatpush1.bf16.msra.mxu0 %v1696
        %1851 = vmatprep.subr.bf16.mxu0 0
        %1852 = vmatpush1.bf16.msra.mxu0 %v1697
        %1853 = vmatprep.subr.bf16.mxu0 0
        %1854 = vmatpush1.bf16.msra.mxu0 %v1698
        %1855 = vmatprep.subr.bf16.mxu0 0
        %1856 = vmatpush1.bf16.msra.mxu0 %v1699
        %1857 = vmatprep.subr.bf16.mxu0 0
        %1858 = vmatpush1.bf16.msra.mxu0 %v1700
        %1859 = vmatprep.subr.bf16.mxu0 0
        %1860 = vmatpush1.bf16.msra.mxu0 %v1701
        %1861 = vmatprep.subr.bf16.mxu0 0
        %1862 = vmatpush1.bf16.msra.mxu0 %v1702
        %1863 = vmatprep.subr.bf16.mxu0 0
        %1864 = vmatpush1.bf16.msra.mxu0 %v1703
        %1865 = vmatprep.mubr.bf16.mxu0 %v1515
        %1866 = vmatmul.mubr.bf16.gmra.mrb[0].mxu0 %v1514
        %v1867 = vpop.f32.mrb[0].mxu0
        %v1868 = vadd.f32 %v1771, %v1867
        %v1869 = vpop.f32.mrb[0].mxu0
        %v1870 = vpop.f32.mrb[0].mxu0
        %v1871 = vadd.f32 %v1774, %v1870
        %v1872 = vpop.f32.mrb[0].mxu0
        %1873 = vmatprep.mubr.bf16.mxu0 %v1519
        %1874 = vmatmul.mubr.bf16.gmra.mrb[0].mxu0 %v1518
        %v1875 = vpop.f32.mrb[0].mxu0
        %v1876 = vadd.f32 %v1779, %v1875
        %v1877 = vpop.f32.mrb[0].mxu0
        %v1878 = vpop.f32.mrb[0].mxu0
        %v1879 = vadd.f32 %v1782, %v1878
        %v1880 = vpop.f32.mrb[0].mxu0
        %1881 = vmatprep.mubr.bf16.mxu0 %v1523
        %1882 = vmatmul.mubr.bf16.gmra.mrb[0].mxu0 %v1522
        %v1883 = vpop.f32.mrb[0].mxu0
        %v1884 = vadd.f32 %v1787, %v1883
        %v1885 = vpop.f32.mrb[0].mxu0
        %v1886 = vpop.f32.mrb[0].mxu0
        %v1887 = vadd.f32 %v1790, %v1886
        %v1888 = vpop.f32.mrb[0].mxu0
        %1889 = vmatprep.mubr.bf16.mxu0 %v1527
        %1890 = vmatmul.mubr.bf16.gmra.mrb[0].mxu0 %v1526
        %v1891 = vpop.f32.mrb[0].mxu0
        %v1892 = vadd.f32 %v1795, %v1891
        %v1893 = vpop.f32.mrb[0].mxu0
        %v1894 = vpop.f32.mrb[0].mxu0
        %v1895 = vadd.f32 %v1798, %v1894
        %v1896 = vpop.f32.mrb[0].mxu0
        %1897 = vmatprep.mubr.bf16.mxu0 %v1531
        %1898 = vmatmul.mubr.bf16.gmra.mrb[0].mxu0 %v1530
        %v1899 = vpop.f32.mrb[0].mxu0
        %v1900 = vadd.f32 %v1803, %v1899
        %v1901 = vpop.f32.mrb[0].mxu0
        %v1902 = vpop.f32.mrb[0].mxu0
        %v1903 = vadd.f32 %v1806, %v1902
        %v1904 = vpop.f32.mrb[0].mxu0
        %1905 = vmatprep.mubr.bf16.mxu0 %v1535
        %1906 = vmatmul.mubr.bf16.gmra.mrb[0].mxu0 %v1534
        %v1907 = vpop.f32.mrb[0].mxu0
        %v1908 = vadd.f32 %v1811, %v1907
        %v1909 = vpop.f32.mrb[0].mxu0
        %v1910 = vpop.f32.mrb[0].mxu0
        %v1911 = vadd.f32 %v1814, %v1910
        %v1912 = vpop.f32.mrb[0].mxu0
        %1913 = vmatprep.mubr.bf16.mxu0 %v1539
        %1914 = vmatmul.mubr.bf16.gmra.mrb[0].mxu0 %v1538
        %v1915 = vpop.f32.mrb[0].mxu0
        %v1916 = vadd.f32 %v1819, %v1915
        %v1917 = vpop.f32.mrb[0].mxu0
        %v1918 = vpop.f32.mrb[0].mxu0
        %v1919 = vadd.f32 %v1822, %v1918
        %v1920 = vpop.f32.mrb[0].mxu0
        %1921 = vmatprep.mubr.bf16.mxu0 %v1543
        %1922 = vmatmul.mubr.bf16.gmra.mrb[0].mxu0 %v1542
        %v1923 = vpop.f32.mrb[0].mxu0
        %v1924 = vadd.f32 %v1827, %v1923
        %v1925 = vpop.f32.mrb[0].mxu0
        %v1926 = vpop.f32.mrb[0].mxu0
        %v1927 = vadd.f32 %v1830, %v1926
        %v1928 = vpop.f32.mrb[0].mxu0
        %1929 = vdwg.mxu0
        %1930 = vset.pattern.permute.xlu0 4
        %1931 = vperm.xlu0 %1930, %v216
        %v1932 = vpop.permute.xlu0 %1931
        %1933 = vset.pattern.permute.xlu0 4
        %1934 = vperm.xlu0 %1933, %v217
        %v1935 = vpop.permute.xlu0 %1934
        %1936 = vset.pattern.permute.xlu0 4
        %1937 = vperm.xlu0 %1936, %v218
        %v1938 = vpop.permute.xlu0 %1937
        %1939 = vset.pattern.permute.xlu0 4
        %1940 = vperm.xlu0 %1939, %v219
        %v1941 = vpop.permute.xlu0 %1940
        %1942 = vset.pattern.permute.xlu0 4
        %1943 = vperm.xlu0 %1942, %v220
        %v1944 = vpop.permute.xlu0 %1943
        %1945 = vset.pattern.permute.xlu0 4
        %1946 = vperm.xlu0 %1945, %v221
        %v1947 = vpop.permute.xlu0 %1946
        %1948 = vset.pattern.permute.xlu0 4
        %1949 = vperm.xlu0 %1948, %v222
        %v1950 = vpop.permute.xlu0 %1949
        %1951 = vset.pattern.permute.xlu0 4
        %1952 = vperm.xlu0 %1951, %v223
        %v1953 = vpop.permute.xlu0 %1952
        %1954 = vset.pattern.permute.xlu0 4
        %1955 = vperm.xlu0 %1954, %v224
        %v1956 = vpop.permute.xlu0 %1955
        %1957 = vset.pattern.permute.xlu0 4
        %1958 = vperm.xlu0 %1957, %v225
        %v1959 = vpop.permute.xlu0 %1958
        %1960 = vset.pattern.permute.xlu0 4
        %1961 = vperm.xlu0 %1960, %v226
        %v1962 = vpop.permute.xlu0 %1961
        %1963 = vset.pattern.permute.xlu0 4
        %1964 = vperm.xlu0 %1963, %v227
        %v1965 = vpop.permute.xlu0 %1964
        %1966 = vset.pattern.permute.xlu0 4
        %1967 = vperm.xlu0 %1966, %v228
        %v1968 = vpop.permute.xlu0 %1967
        %1969 = vset.pattern.permute.xlu0 4
        %1970 = vperm.xlu0 %1969, %v229
        %v1971 = vpop.permute.xlu0 %1970
        %1972 = vset.pattern.permute.xlu0 4
        %1973 = vperm.xlu0 %1972, %v230
        %v1974 = vpop.permute.xlu0 %1973
        %1975 = vset.pattern.permute.xlu0 4
        %1976 = vperm.xlu0 %1975, %v231
        %v1977 = vpop.permute.xlu0 %1976
        %vm1978 = vcmp.eq.s32.totalorder %v1932, %v194
        %vm1979 = vcmp.eq.s32.totalorder %v1932, %v195
        %vm1980 = vcmp.eq.s32.totalorder %v1932, %v196
        %vm1981 = vcmp.eq.s32.totalorder %v1932, %v197
        %vm1982 = vcmp.eq.s32.totalorder %v1935, %v194
        %vm1983 = vcmp.eq.s32.totalorder %v1935, %v195
        %vm1984 = vcmp.eq.s32.totalorder %v1935, %v196
        %vm1985 = vcmp.eq.s32.totalorder %v1935, %v197
        %vm1986 = vcmp.eq.s32.totalorder %v1938, %v194
        %vm1987 = vcmp.eq.s32.totalorder %v1938, %v195
        %vm1988 = vcmp.eq.s32.totalorder %v1938, %v196
        %vm1989 = vcmp.eq.s32.totalorder %v1938, %v197
        %vm1990 = vcmp.eq.s32.totalorder %v1941, %v194
        %vm1991 = vcmp.eq.s32.totalorder %v1941, %v195
        %vm1992 = vcmp.eq.s32.totalorder %v1941, %v196
        %vm1993 = vcmp.eq.s32.totalorder %v1941, %v197
        %vm1994 = vcmp.eq.s32.totalorder %v1944, %v194
        %vm1995 = vcmp.eq.s32.totalorder %v1944, %v195
        %vm1996 = vcmp.eq.s32.totalorder %v1944, %v196
        %vm1997 = vcmp.eq.s32.totalorder %v1944, %v197
        %vm1998 = vcmp.eq.s32.totalorder %v1947, %v194
        %vm1999 = vcmp.eq.s32.totalorder %v1947, %v195
        %vm2000 = vcmp.eq.s32.totalorder %v1947, %v196
        %vm2001 = vcmp.eq.s32.totalorder %v1947, %v197
        %vm2002 = vcmp.eq.s32.totalorder %v1950, %v194
        %vm2003 = vcmp.eq.s32.totalorder %v1950, %v195
        %vm2004 = vcmp.eq.s32.totalorder %v1950, %v196
        %vm2005 = vcmp.eq.s32.totalorder %v1950, %v197
        %vm2006 = vcmp.eq.s32.totalorder %v1953, %v194
        %vm2007 = vcmp.eq.s32.totalorder %v1953, %v195
        %vm2008 = vcmp.eq.s32.totalorder %v1953, %v196
        %vm2009 = vcmp.eq.s32.totalorder %v1953, %v197
        %vm2010 = vcmp.eq.s32.totalorder %v1956, %v194
        %vm2011 = vcmp.eq.s32.totalorder %v1956, %v195
        %vm2012 = vcmp.eq.s32.totalorder %v1956, %v196
        %vm2013 = vcmp.eq.s32.totalorder %v1956, %v197
        %vm2014 = vcmp.eq.s32.totalorder %v1959, %v194
        %vm2015 = vcmp.eq.s32.totalorder %v1959, %v195
        %vm2016 = vcmp.eq.s32.totalorder %v1959, %v196
        %vm2017 = vcmp.eq.s32.totalorder %v1959, %v197
        %vm2018 = vcmp.eq.s32.totalorder %v1962, %v194
        %vm2019 = vcmp.eq.s32.totalorder %v1962, %v195
        %vm2020 = vcmp.eq.s32.totalorder %v1962, %v196
        %vm2021 = vcmp.eq.s32.totalorder %v1962, %v197
        %vm2022 = vcmp.eq.s32.totalorder %v1965, %v194
        %vm2023 = vcmp.eq.s32.totalorder %v1965, %v195
        %vm2024 = vcmp.eq.s32.totalorder %v1965, %v196
        %vm2025 = vcmp.eq.s32.totalorder %v1965, %v197
        %vm2026 = vcmp.eq.s32.totalorder %v1968, %v194
        %vm2027 = vcmp.eq.s32.totalorder %v1968, %v195
        %vm2028 = vcmp.eq.s32.totalorder %v1968, %v196
        %vm2029 = vcmp.eq.s32.totalorder %v1968, %v197
        %vm2030 = vcmp.eq.s32.totalorder %v1971, %v194
        %vm2031 = vcmp.eq.s32.totalorder %v1971, %v195
        %vm2032 = vcmp.eq.s32.totalorder %v1971, %v196
        %vm2033 = vcmp.eq.s32.totalorder %v1971, %v197
        %vm2034 = vcmp.eq.s32.totalorder %v1974, %v194
        %vm2035 = vcmp.eq.s32.totalorder %v1974, %v195
        %vm2036 = vcmp.eq.s32.totalorder %v1974, %v196
        %vm2037 = vcmp.eq.s32.totalorder %v1974, %v197
        %vm2038 = vcmp.eq.s32.totalorder %v1977, %v194
        %vm2039 = vcmp.eq.s32.totalorder %v1977, %v195
        %vm2040 = vcmp.eq.s32.totalorder %v1977, %v196
        %vm2041 = vcmp.eq.s32.totalorder %v1977, %v197
        %v2042 = vsel %vm1978, 1, 0
        %v2043 = vsel %vm1979, 1, 0
        %v2044 = vsel %vm1980, 1, 0
        %v2045 = vsel %vm1981, 1, 0
        %v2046 = vsel %vm1982, 1, 0
        %v2047 = vsel %vm1983, 1, 0
        %v2048 = vsel %vm1984, 1, 0
        %v2049 = vsel %vm1985, 1, 0
        %v2050 = vsel %vm1986, 1, 0
        %v2051 = vsel %vm1987, 1, 0
        %v2052 = vsel %vm1988, 1, 0
        %v2053 = vsel %vm1989, 1, 0
        %v2054 = vsel %vm1990, 1, 0
        %v2055 = vsel %vm1991, 1, 0
        %v2056 = vsel %vm1992, 1, 0
        %v2057 = vsel %vm1993, 1, 0
        %v2058 = vsel %vm1994, 1, 0
        %v2059 = vsel %vm1995, 1, 0
        %v2060 = vsel %vm1996, 1, 0
        %v2061 = vsel %vm1997, 1, 0
        %v2062 = vsel %vm1998, 1, 0
        %v2063 = vsel %vm1999, 1, 0
        %v2064 = vsel %vm2000, 1, 0
        %v2065 = vsel %vm2001, 1, 0
        %v2066 = vsel %vm2002, 1, 0
        %v2067 = vsel %vm2003, 1, 0
        %v2068 = vsel %vm2004, 1, 0
        %v2069 = vsel %vm2005, 1, 0
        %v2070 = vsel %vm2006, 1, 0
        %v2071 = vsel %vm2007, 1, 0
        %v2072 = vsel %vm2008, 1, 0
        %v2073 = vsel %vm2009, 1, 0
        %v2074 = vsel %vm2010, 1, 0
        %v2075 = vsel %vm2011, 1, 0
        %v2076 = vsel %vm2012, 1, 0
        %v2077 = vsel %vm2013, 1, 0
        %v2078 = vsel %vm2014, 1, 0
        %v2079 = vsel %vm2015, 1, 0
        %v2080 = vsel %vm2016, 1, 0
        %v2081 = vsel %vm2017, 1, 0
        %v2082 = vsel %vm2018, 1, 0
        %v2083 = vsel %vm2019, 1, 0
        %v2084 = vsel %vm2020, 1, 0
        %v2085 = vsel %vm2021, 1, 0
        %v2086 = vsel %vm2022, 1, 0
        %v2087 = vsel %vm2023, 1, 0
        %v2088 = vsel %vm2024, 1, 0
        %v2089 = vsel %vm2025, 1, 0
        %v2090 = vsel %vm2026, 1, 0
        %v2091 = vsel %vm2027, 1, 0
        %v2092 = vsel %vm2028, 1, 0
        %v2093 = vsel %vm2029, 1, 0
        %v2094 = vsel %vm2030, 1, 0
        %v2095 = vsel %vm2031, 1, 0
        %v2096 = vsel %vm2032, 1, 0
        %v2097 = vsel %vm2033, 1, 0
        %v2098 = vsel %vm2034, 1, 0
        %v2099 = vsel %vm2035, 1, 0
        %v2100 = vsel %vm2036, 1, 0
        %v2101 = vsel %vm2037, 1, 0
        %v2102 = vsel %vm2038, 1, 0
        %v2103 = vsel %vm2039, 1, 0
        %v2104 = vsel %vm2040, 1, 0
        %v2105 = vsel %vm2041, 1, 0
        %v2106 = vcvt.s32.f32 %v2042
        %v2107 = vcvt.s32.f32 %v2043
        %v2108 = vcvt.s32.f32 %v2044
        %v2109 = vcvt.s32.f32 %v2045
        %v2110 = vcvt.s32.f32 %v2046
        %v2111 = vcvt.s32.f32 %v2047
        %v2112 = vcvt.s32.f32 %v2048
        %v2113 = vcvt.s32.f32 %v2049
        %v2114 = vcvt.s32.f32 %v2050
        %v2115 = vcvt.s32.f32 %v2051
        %v2116 = vcvt.s32.f32 %v2052
        %v2117 = vcvt.s32.f32 %v2053
        %v2118 = vcvt.s32.f32 %v2054
        %v2119 = vcvt.s32.f32 %v2055
        %v2120 = vcvt.s32.f32 %v2056
        %v2121 = vcvt.s32.f32 %v2057
        %v2122 = vcvt.s32.f32 %v2058
        %v2123 = vcvt.s32.f32 %v2059
        %v2124 = vcvt.s32.f32 %v2060
        %v2125 = vcvt.s32.f32 %v2061
        %v2126 = vcvt.s32.f32 %v2062
        %v2127 = vcvt.s32.f32 %v2063
        %v2128 = vcvt.s32.f32 %v2064
        %v2129 = vcvt.s32.f32 %v2065
        %v2130 = vcvt.s32.f32 %v2066
        %v2131 = vcvt.s32.f32 %v2067
        %v2132 = vcvt.s32.f32 %v2068
        %v2133 = vcvt.s32.f32 %v2069
        %v2134 = vcvt.s32.f32 %v2070
        %v2135 = vcvt.s32.f32 %v2071
        %v2136 = vcvt.s32.f32 %v2072
        %v2137 = vcvt.s32.f32 %v2073
        %v2138 = vcvt.s32.f32 %v2074
        %v2139 = vcvt.s32.f32 %v2075
        %v2140 = vcvt.s32.f32 %v2076
        %v2141 = vcvt.s32.f32 %v2077
        %v2142 = vcvt.s32.f32 %v2078
        %v2143 = vcvt.s32.f32 %v2079
        %v2144 = vcvt.s32.f32 %v2080
        %v2145 = vcvt.s32.f32 %v2081
        %v2146 = vcvt.s32.f32 %v2082
        %v2147 = vcvt.s32.f32 %v2083
        %v2148 = vcvt.s32.f32 %v2084
        %v2149 = vcvt.s32.f32 %v2085
        %v2150 = vcvt.s32.f32 %v2086
        %v2151 = vcvt.s32.f32 %v2087
        %v2152 = vcvt.s32.f32 %v2088
        %v2153 = vcvt.s32.f32 %v2089
        %v2154 = vcvt.s32.f32 %v2090
        %v2155 = vcvt.s32.f32 %v2091
        %v2156 = vcvt.s32.f32 %v2092
        %v2157 = vcvt.s32.f32 %v2093
        %v2158 = vcvt.s32.f32 %v2094
        %v2159 = vcvt.s32.f32 %v2095
        %v2160 = vcvt.s32.f32 %v2096
        %v2161 = vcvt.s32.f32 %v2097
        %v2162 = vcvt.s32.f32 %v2098
        %v2163 = vcvt.s32.f32 %v2099
        %v2164 = vcvt.s32.f32 %v2100
        %v2165 = vcvt.s32.f32 %v2101
        %v2166 = vcvt.s32.f32 %v2102
        %v2167 = vcvt.s32.f32 %v2103
        %v2168 = vcvt.s32.f32 %v2104
        %v2169 = vcvt.s32.f32 %v2105
        %v2170 = vadd.f32 %v2106, 0.0
        %v2171 = vadd.f32 %v2107, 0.0
        %v2172 = vadd.f32 %v2108, 0.0
        %v2173 = vadd.f32 %v2109, 0.0
        %v2174 = vadd.f32 %v2110, 0.0
        %v2175 = vadd.f32 %v2111, 0.0
        %v2176 = vadd.f32 %v2112, 0.0
        %v2177 = vadd.f32 %v2113, 0.0
        %v2178 = vadd.f32 %v2114, 0.0
        %v2179 = vadd.f32 %v2115, 0.0
        %v2180 = vadd.f32 %v2116, 0.0
        %v2181 = vadd.f32 %v2117, 0.0
        %v2182 = vadd.f32 %v2118, 0.0
        %v2183 = vadd.f32 %v2119, 0.0
        %v2184 = vadd.f32 %v2120, 0.0
        %v2185 = vadd.f32 %v2121, 0.0
        %v2186 = vadd.f32 %v2122, 0.0
        %v2187 = vadd.f32 %v2123, 0.0
        %v2188 = vadd.f32 %v2124, 0.0
        %v2189 = vadd.f32 %v2125, 0.0
        %v2190 = vadd.f32 %v2126, 0.0
        %v2191 = vadd.f32 %v2127, 0.0
        %v2192 = vadd.f32 %v2128, 0.0
        %v2193 = vadd.f32 %v2129, 0.0
        %v2194 = vadd.f32 %v2130, 0.0
        %v2195 = vadd.f32 %v2131, 0.0
        %v2196 = vadd.f32 %v2132, 0.0
        %v2197 = vadd.f32 %v2133, 0.0
        %v2198 = vadd.f32 %v2134, 0.0
        %v2199 = vadd.f32 %v2135, 0.0
        %v2200 = vadd.f32 %v2136, 0.0
        %v2201 = vadd.f32 %v2137, 0.0
        %v2202 = vadd.f32 %v2138, 0.0
        %v2203 = vadd.f32 %v2139, 0.0
        %v2204 = vadd.f32 %v2140, 0.0
        %v2205 = vadd.f32 %v2141, 0.0
        %v2206 = vadd.f32 %v2142, 0.0
        %v2207 = vadd.f32 %v2143, 0.0
        %v2208 = vadd.f32 %v2144, 0.0
        %v2209 = vadd.f32 %v2145, 0.0
        %v2210 = vadd.f32 %v2146, 0.0
        %v2211 = vadd.f32 %v2147, 0.0
        %v2212 = vadd.f32 %v2148, 0.0
        %v2213 = vadd.f32 %v2149, 0.0
        %v2214 = vadd.f32 %v2150, 0.0
        %v2215 = vadd.f32 %v2151, 0.0
        %v2216 = vadd.f32 %v2152, 0.0
        %v2217 = vadd.f32 %v2153, 0.0
        %v2218 = vadd.f32 %v2154, 0.0
        %v2219 = vadd.f32 %v2155, 0.0
        %v2220 = vadd.f32 %v2156, 0.0
        %v2221 = vadd.f32 %v2157, 0.0
        %v2222 = vadd.f32 %v2158, 0.0
        %v2223 = vadd.f32 %v2159, 0.0
        %v2224 = vadd.f32 %v2160, 0.0
        %v2225 = vadd.f32 %v2161, 0.0
        %v2226 = vadd.f32 %v2162, 0.0
        %v2227 = vadd.f32 %v2163, 0.0
        %v2228 = vadd.f32 %v2164, 0.0
        %v2229 = vadd.f32 %v2165, 0.0
        %v2230 = vadd.f32 %v2166, 0.0
        %v2231 = vadd.f32 %v2167, 0.0
        %v2232 = vadd.f32 %v2168, 0.0
        %v2233 = vadd.f32 %v2169, 0.0
        %2234 = vset.pattern.permute.xlu0 5
        %2235 = vperm.xlu0 %2234, %v216
        %v2236 = vpop.permute.xlu0 %2235
        %2237 = vset.pattern.permute.xlu0 5
        %2238 = vperm.xlu0 %2237, %v217
        %v2239 = vpop.permute.xlu0 %2238
        %2240 = vset.pattern.permute.xlu0 5
        %2241 = vperm.xlu0 %2240, %v218
        %v2242 = vpop.permute.xlu0 %2241
        %2243 = vset.pattern.permute.xlu0 5
        %2244 = vperm.xlu0 %2243, %v219
        %v2245 = vpop.permute.xlu0 %2244
        %2246 = vset.pattern.permute.xlu0 5
        %2247 = vperm.xlu0 %2246, %v220
        %v2248 = vpop.permute.xlu0 %2247
        %2249 = vset.pattern.permute.xlu0 5
        %2250 = vperm.xlu0 %2249, %v221
        %v2251 = vpop.permute.xlu0 %2250
        %2252 = vset.pattern.permute.xlu0 5
        %2253 = vperm.xlu0 %2252, %v222
        %v2254 = vpop.permute.xlu0 %2253
        %2255 = vset.pattern.permute.xlu0 5
        %2256 = vperm.xlu0 %2255, %v223
        %v2257 = vpop.permute.xlu0 %2256
        %2258 = vset.pattern.permute.xlu0 5
        %2259 = vperm.xlu0 %2258, %v224
        %v2260 = vpop.permute.xlu0 %2259
        %2261 = vset.pattern.permute.xlu0 5
        %2262 = vperm.xlu0 %2261, %v225
        %v2263 = vpop.permute.xlu0 %2262
        %2264 = vset.pattern.permute.xlu0 5
        %2265 = vperm.xlu0 %2264, %v226
        %v2266 = vpop.permute.xlu0 %2265
        %2267 = vset.pattern.permute.xlu0 5
        %2268 = vperm.xlu0 %2267, %v227
        %v2269 = vpop.permute.xlu0 %2268
        %2270 = vset.pattern.permute.xlu0 5
        %2271 = vperm.xlu0 %2270, %v228
        %v2272 = vpop.permute.xlu0 %2271
        %2273 = vset.pattern.permute.xlu0 5
        %2274 = vperm.xlu0 %2273, %v229
        %v2275 = vpop.permute.xlu0 %2274
        %2276 = vset.pattern.permute.xlu0 5
        %2277 = vperm.xlu0 %2276, %v230
        %v2278 = vpop.permute.xlu0 %2277
        %2279 = vset.pattern.permute.xlu0 5
        %2280 = vperm.xlu0 %2279, %v231
        %v2281 = vpop.permute.xlu0 %2280
        %vm2282 = vcmp.eq.s32.totalorder %v2236, %v194
        %vm2283 = vcmp.eq.s32.totalorder %v2236, %v195
        %vm2284 = vcmp.eq.s32.totalorder %v2236, %v196
        %vm2285 = vcmp.eq.s32.totalorder %v2236, %v197
        %vm2286 = vcmp.eq.s32.totalorder %v2239, %v194
        %vm2287 = vcmp.eq.s32.totalorder %v2239, %v195
        %vm2288 = vcmp.eq.s32.totalorder %v2239, %v196
        %vm2289 = vcmp.eq.s32.totalorder %v2239, %v197
        %vm2290 = vcmp.eq.s32.totalorder %v2242, %v194
        %vm2291 = vcmp.eq.s32.totalorder %v2242, %v195
        %vm2292 = vcmp.eq.s32.totalorder %v2242, %v196
        %vm2293 = vcmp.eq.s32.totalorder %v2242, %v197
        %vm2294 = vcmp.eq.s32.totalorder %v2245, %v194
        %vm2295 = vcmp.eq.s32.totalorder %v2245, %v195
        %vm2296 = vcmp.eq.s32.totalorder %v2245, %v196
        %vm2297 = vcmp.eq.s32.totalorder %v2245, %v197
        %vm2298 = vcmp.eq.s32.totalorder %v2248, %v194
        %vm2299 = vcmp.eq.s32.totalorder %v2248, %v195
        %vm2300 = vcmp.eq.s32.totalorder %v2248, %v196
        %vm2301 = vcmp.eq.s32.totalorder %v2248, %v197
        %vm2302 = vcmp.eq.s32.totalorder %v2251, %v194
        %vm2303 = vcmp.eq.s32.totalorder %v2251, %v195
        %vm2304 = vcmp.eq.s32.totalorder %v2251, %v196
        %vm2305 = vcmp.eq.s32.totalorder %v2251, %v197
        %vm2306 = vcmp.eq.s32.totalorder %v2254, %v194
        %vm2307 = vcmp.eq.s32.totalorder %v2254, %v195
        %vm2308 = vcmp.eq.s32.totalorder %v2254, %v196
        %vm2309 = vcmp.eq.s32.totalorder %v2254, %v197
        %vm2310 = vcmp.eq.s32.totalorder %v2257, %v194
        %vm2311 = vcmp.eq.s32.totalorder %v2257, %v195
        %vm2312 = vcmp.eq.s32.totalorder %v2257, %v196
        %vm2313 = vcmp.eq.s32.totalorder %v2257, %v197
        %vm2314 = vcmp.eq.s32.totalorder %v2260, %v194
        %vm2315 = vcmp.eq.s32.totalorder %v2260, %v195
        %vm2316 = vcmp.eq.s32.totalorder %v2260, %v196
        %vm2317 = vcmp.eq.s32.totalorder %v2260, %v197
        %vm2318 = vcmp.eq.s32.totalorder %v2263, %v194
        %vm2319 = vcmp.eq.s32.totalorder %v2263, %v195
        %vm2320 = vcmp.eq.s32.totalorder %v2263, %v196
        %vm2321 = vcmp.eq.s32.totalorder %v2263, %v197
        %vm2322 = vcmp.eq.s32.totalorder %v2266, %v194
        %vm2323 = vcmp.eq.s32.totalorder %v2266, %v195
        %vm2324 = vcmp.eq.s32.totalorder %v2266, %v196
        %vm2325 = vcmp.eq.s32.totalorder %v2266, %v197
        %vm2326 = vcmp.eq.s32.totalorder %v2269, %v194
        %vm2327 = vcmp.eq.s32.totalorder %v2269, %v195
        %vm2328 = vcmp.eq.s32.totalorder %v2269, %v196
        %vm2329 = vcmp.eq.s32.totalorder %v2269, %v197
        %vm2330 = vcmp.eq.s32.totalorder %v2272, %v194
        %vm2331 = vcmp.eq.s32.totalorder %v2272, %v195
        %vm2332 = vcmp.eq.s32.totalorder %v2272, %v196
        %vm2333 = vcmp.eq.s32.totalorder %v2272, %v197
        %vm2334 = vcmp.eq.s32.totalorder %v2275, %v194
        %vm2335 = vcmp.eq.s32.totalorder %v2275, %v195
        %vm2336 = vcmp.eq.s32.totalorder %v2275, %v196
        %vm2337 = vcmp.eq.s32.totalorder %v2275, %v197
        %vm2338 = vcmp.eq.s32.totalorder %v2278, %v194
        %vm2339 = vcmp.eq.s32.totalorder %v2278, %v195
        %vm2340 = vcmp.eq.s32.totalorder %v2278, %v196
        %vm2341 = vcmp.eq.s32.totalorder %v2278, %v197
        %vm2342 = vcmp.eq.s32.totalorder %v2281, %v194
        %vm2343 = vcmp.eq.s32.totalorder %v2281, %v195
        %vm2344 = vcmp.eq.s32.totalorder %v2281, %v196
        %vm2345 = vcmp.eq.s32.totalorder %v2281, %v197
        %v2346 = vsel %vm2282, 1, 0
        %v2347 = vsel %vm2283, 1, 0
        %v2348 = vsel %vm2284, 1, 0
        %v2349 = vsel %vm2285, 1, 0
        %v2350 = vsel %vm2286, 1, 0
        %v2351 = vsel %vm2287, 1, 0
        %v2352 = vsel %vm2288, 1, 0
        %v2353 = vsel %vm2289, 1, 0
        %v2354 = vsel %vm2290, 1, 0
        %v2355 = vsel %vm2291, 1, 0
        %v2356 = vsel %vm2292, 1, 0
        %v2357 = vsel %vm2293, 1, 0
        %v2358 = vsel %vm2294, 1, 0
        %v2359 = vsel %vm2295, 1, 0
        %v2360 = vsel %vm2296, 1, 0
        %v2361 = vsel %vm2297, 1, 0
        %v2362 = vsel %vm2298, 1, 0
        %v2363 = vsel %vm2299, 1, 0
        %v2364 = vsel %vm2300, 1, 0
        %v2365 = vsel %vm2301, 1, 0
        %v2366 = vsel %vm2302, 1, 0
        %v2367 = vsel %vm2303, 1, 0
        %v2368 = vsel %vm2304, 1, 0
        %v2369 = vsel %vm2305, 1, 0
        %v2370 = vsel %vm2306, 1, 0
        %v2371 = vsel %vm2307, 1, 0
        %v2372 = vsel %vm2308, 1, 0
        %v2373 = vsel %vm2309, 1, 0
        %v2374 = vsel %vm2310, 1, 0
        %v2375 = vsel %vm2311, 1, 0
        %v2376 = vsel %vm2312, 1, 0
        %v2377 = vsel %vm2313, 1, 0
        %v2378 = vsel %vm2314, 1, 0
        %v2379 = vsel %vm2315, 1, 0
        %v2380 = vsel %vm2316, 1, 0
        %v2381 = vsel %vm2317, 1, 0
        %v2382 = vsel %vm2318, 1, 0
        %v2383 = vsel %vm2319, 1, 0
        %v2384 = vsel %vm2320, 1, 0
        %v2385 = vsel %vm2321, 1, 0
        %v2386 = vsel %vm2322, 1, 0
        %v2387 = vsel %vm2323, 1, 0
        %v2388 = vsel %vm2324, 1, 0
        %v2389 = vsel %vm2325, 1, 0
        %v2390 = vsel %vm2326, 1, 0
        %v2391 = vsel %vm2327, 1, 0
        %v2392 = vsel %vm2328, 1, 0
        %v2393 = vsel %vm2329, 1, 0
        %v2394 = vsel %vm2330, 1, 0
        %v2395 = vsel %vm2331, 1, 0
        %v2396 = vsel %vm2332, 1, 0
        %v2397 = vsel %vm2333, 1, 0
        %v2398 = vsel %vm2334, 1, 0
        %v2399 = vsel %vm2335, 1, 0
        %v2400 = vsel %vm2336, 1, 0
        %v2401 = vsel %vm2337, 1, 0
        %v2402 = vsel %vm2338, 1, 0
        %v2403 = vsel %vm2339, 1, 0
        %v2404 = vsel %vm2340, 1, 0
        %v2405 = vsel %vm2341, 1, 0
        %v2406 = vsel %vm2342, 1, 0
        %v2407 = vsel %vm2343, 1, 0
        %v2408 = vsel %vm2344, 1, 0
        %v2409 = vsel %vm2345, 1, 0
        %v2410 = vcvt.s32.f32 %v2346
        %v2411 = vcvt.s32.f32 %v2347
        %v2412 = vcvt.s32.f32 %v2348
        %v2413 = vcvt.s32.f32 %v2349
        %v2414 = vcvt.s32.f32 %v2350
        %v2415 = vcvt.s32.f32 %v2351
        %v2416 = vcvt.s32.f32 %v2352
        %v2417 = vcvt.s32.f32 %v2353
        %v2418 = vcvt.s32.f32 %v2354
        %v2419 = vcvt.s32.f32 %v2355
        %v2420 = vcvt.s32.f32 %v2356
        %v2421 = vcvt.s32.f32 %v2357
        %v2422 = vcvt.s32.f32 %v2358
        %v2423 = vcvt.s32.f32 %v2359
        %v2424 = vcvt.s32.f32 %v2360
        %v2425 = vcvt.s32.f32 %v2361
        %v2426 = vcvt.s32.f32 %v2362
        %v2427 = vcvt.s32.f32 %v2363
        %v2428 = vcvt.s32.f32 %v2364
        %v2429 = vcvt.s32.f32 %v2365
        %v2430 = vcvt.s32.f32 %v2366
        %v2431 = vcvt.s32.f32 %v2367
        %v2432 = vcvt.s32.f32 %v2368
        %v2433 = vcvt.s32.f32 %v2369
        %v2434 = vcvt.s32.f32 %v2370
        %v2435 = vcvt.s32.f32 %v2371
        %v2436 = vcvt.s32.f32 %v2372
        %v2437 = vcvt.s32.f32 %v2373
        %v2438 = vcvt.s32.f32 %v2374
        %v2439 = vcvt.s32.f32 %v2375
        %v2440 = vcvt.s32.f32 %v2376
        %v2441 = vcvt.s32.f32 %v2377
        %v2442 = vcvt.s32.f32 %v2378
        %v2443 = vcvt.s32.f32 %v2379
        %v2444 = vcvt.s32.f32 %v2380
        %v2445 = vcvt.s32.f32 %v2381
        %v2446 = vcvt.s32.f32 %v2382
        %v2447 = vcvt.s32.f32 %v2383
        %v2448 = vcvt.s32.f32 %v2384
        %v2449 = vcvt.s32.f32 %v2385
        %v2450 = vcvt.s32.f32 %v2386
        %v2451 = vcvt.s32.f32 %v2387
        %v2452 = vcvt.s32.f32 %v2388
        %v2453 = vcvt.s32.f32 %v2389
        %v2454 = vcvt.s32.f32 %v2390
        %v2455 = vcvt.s32.f32 %v2391
        %v2456 = vcvt.s32.f32 %v2392
        %v2457 = vcvt.s32.f32 %v2393
        %v2458 = vcvt.s32.f32 %v2394
        %v2459 = vcvt.s32.f32 %v2395
        %v2460 = vcvt.s32.f32 %v2396
        %v2461 = vcvt.s32.f32 %v2397
        %v2462 = vcvt.s32.f32 %v2398
        %v2463 = vcvt.s32.f32 %v2399
        %v2464 = vcvt.s32.f32 %v2400
        %v2465 = vcvt.s32.f32 %v2401
        %v2466 = vcvt.s32.f32 %v2402
        %v2467 = vcvt.s32.f32 %v2403
        %v2468 = vcvt.s32.f32 %v2404
        %v2469 = vcvt.s32.f32 %v2405
        %v2470 = vcvt.s32.f32 %v2406
        %v2471 = vcvt.s32.f32 %v2407
        %v2472 = vcvt.s32.f32 %v2408
        %v2473 = vcvt.s32.f32 %v2409
        %v2474 = vadd.f32 %v2170, %v2410
        %v2475 = vadd.f32 %v2171, %v2411
        %v2476 = vadd.f32 %v2172, %v2412
        %v2477 = vadd.f32 %v2173, %v2413
        %v2478 = vadd.f32 %v2174, %v2414
        %v2479 = vadd.f32 %v2175, %v2415
        %v2480 = vadd.f32 %v2176, %v2416
        %v2481 = vadd.f32 %v2177, %v2417
        %v2482 = vadd.f32 %v2178, %v2418
        %v2483 = vadd.f32 %v2179, %v2419
        %v2484 = vadd.f32 %v2180, %v2420
        %v2485 = vadd.f32 %v2181, %v2421
        %v2486 = vadd.f32 %v2182, %v2422
        %v2487 = vadd.f32 %v2183, %v2423
        %v2488 = vadd.f32 %v2184, %v2424
        %v2489 = vadd.f32 %v2185, %v2425
        %v2490 = vadd.f32 %v2186, %v2426
        %v2491 = vadd.f32 %v2187, %v2427
        %v2492 = vadd.f32 %v2188, %v2428
        %v2493 = vadd.f32 %v2189, %v2429
        %v2494 = vadd.f32 %v2190, %v2430
        %v2495 = vadd.f32 %v2191, %v2431
        %v2496 = vadd.f32 %v2192, %v2432
        %v2497 = vadd.f32 %v2193, %v2433
        %v2498 = vadd.f32 %v2194, %v2434
        %v2499 = vadd.f32 %v2195, %v2435
        %v2500 = vadd.f32 %v2196, %v2436
        %v2501 = vadd.f32 %v2197, %v2437
        %v2502 = vadd.f32 %v2198, %v2438
        %v2503 = vadd.f32 %v2199, %v2439
        %v2504 = vadd.f32 %v2200, %v2440
        %v2505 = vadd.f32 %v2201, %v2441
        %v2506 = vadd.f32 %v2202, %v2442
        %v2507 = vadd.f32 %v2203, %v2443
        %v2508 = vadd.f32 %v2204, %v2444
        %v2509 = vadd.f32 %v2205, %v2445
        %v2510 = vadd.f32 %v2206, %v2446
        %v2511 = vadd.f32 %v2207, %v2447
        %v2512 = vadd.f32 %v2208, %v2448
        %v2513 = vadd.f32 %v2209, %v2449
        %v2514 = vadd.f32 %v2210, %v2450
        %v2515 = vadd.f32 %v2211, %v2451
        %v2516 = vadd.f32 %v2212, %v2452
        %v2517 = vadd.f32 %v2213, %v2453
        %v2518 = vadd.f32 %v2214, %v2454
        %v2519 = vadd.f32 %v2215, %v2455
        %v2520 = vadd.f32 %v2216, %v2456
        %v2521 = vadd.f32 %v2217, %v2457
        %v2522 = vadd.f32 %v2218, %v2458
        %v2523 = vadd.f32 %v2219, %v2459
        %v2524 = vadd.f32 %v2220, %v2460
        %v2525 = vadd.f32 %v2221, %v2461
        %v2526 = vadd.f32 %v2222, %v2462
        %v2527 = vadd.f32 %v2223, %v2463
        %v2528 = vadd.f32 %v2224, %v2464
        %v2529 = vadd.f32 %v2225, %v2465
        %v2530 = vadd.f32 %v2226, %v2466
        %v2531 = vadd.f32 %v2227, %v2467
        %v2532 = vadd.f32 %v2228, %v2468
        %v2533 = vadd.f32 %v2229, %v2469
        %v2534 = vadd.f32 %v2230, %v2470
        %v2535 = vadd.f32 %v2231, %v2471
        %v2536 = vadd.f32 %v2232, %v2472
        %v2537 = vadd.f32 %v2233, %v2473
        %2538 = vset.pattern.permute.xlu0 6
        %2539 = vperm.xlu0 %2538, %v216
        %v2540 = vpop.permute.xlu0 %2539
        %2541 = vset.pattern.permute.xlu0 6
        %2542 = vperm.xlu0 %2541, %v217
        %v2543 = vpop.permute.xlu0 %2542
        %2544 = vset.pattern.permute.xlu0 6
        %2545 = vperm.xlu0 %2544, %v218
        %v2546 = vpop.permute.xlu0 %2545
        %2547 = vset.pattern.permute.xlu0 6
        %2548 = vperm.xlu0 %2547, %v219
        %v2549 = vpop.permute.xlu0 %2548
        %2550 = vset.pattern.permute.xlu0 6
        %2551 = vperm.xlu0 %2550, %v220
        %v2552 = vpop.permute.xlu0 %2551
        %2553 = vset.pattern.permute.xlu0 6
        %2554 = vperm.xlu0 %2553, %v221
        %v2555 = vpop.permute.xlu0 %2554
        %2556 = vset.pattern.permute.xlu0 6
        %2557 = vperm.xlu0 %2556, %v222
        %v2558 = vpop.permute.xlu0 %2557
        %2559 = vset.pattern.permute.xlu0 6
        %2560 = vperm.xlu0 %2559, %v223
        %v2561 = vpop.permute.xlu0 %2560
        %2562 = vset.pattern.permute.xlu0 6
        %2563 = vperm.xlu0 %2562, %v224
        %v2564 = vpop.permute.xlu0 %2563
        %2565 = vset.pattern.permute.xlu0 6
        %2566 = vperm.xlu0 %2565, %v225
        %v2567 = vpop.permute.xlu0 %2566
        %2568 = vset.pattern.permute.xlu0 6
        %2569 = vperm.xlu0 %2568, %v226
        %v2570 = vpop.permute.xlu0 %2569
        %2571 = vset.pattern.permute.xlu0 6
        %2572 = vperm.xlu0 %2571, %v227
        %v2573 = vpop.permute.xlu0 %2572
        %2574 = vset.pattern.permute.xlu0 6
        %2575 = vperm.xlu0 %2574, %v228
        %v2576 = vpop.permute.xlu0 %2575
        %2577 = vset.pattern.permute.xlu0 6
        %2578 = vperm.xlu0 %2577, %v229
        %v2579 = vpop.permute.xlu0 %2578
        %2580 = vset.pattern.permute.xlu0 6
        %2581 = vperm.xlu0 %2580, %v230
        %v2582 = vpop.permute.xlu0 %2581
        %2583 = vset.pattern.permute.xlu0 6
        %2584 = vperm.xlu0 %2583, %v231
        %v2585 = vpop.permute.xlu0 %2584
        %vm2586 = vcmp.eq.s32.totalorder %v2540, %v194
        %vm2587 = vcmp.eq.s32.totalorder %v2540, %v195
        %vm2588 = vcmp.eq.s32.totalorder %v2540, %v196
        %vm2589 = vcmp.eq.s32.totalorder %v2540, %v197
        %vm2590 = vcmp.eq.s32.totalorder %v2543, %v194
        %vm2591 = vcmp.eq.s32.totalorder %v2543, %v195
        %vm2592 = vcmp.eq.s32.totalorder %v2543, %v196
        %vm2593 = vcmp.eq.s32.totalorder %v2543, %v197
        %vm2594 = vcmp.eq.s32.totalorder %v2546, %v194
        %vm2595 = vcmp.eq.s32.totalorder %v2546, %v195
        %vm2596 = vcmp.eq.s32.totalorder %v2546, %v196
        %vm2597 = vcmp.eq.s32.totalorder %v2546, %v197
        %vm2598 = vcmp.eq.s32.totalorder %v2549, %v194
        %vm2599 = vcmp.eq.s32.totalorder %v2549, %v195
        %vm2600 = vcmp.eq.s32.totalorder %v2549, %v196
        %vm2601 = vcmp.eq.s32.totalorder %v2549, %v197
        %vm2602 = vcmp.eq.s32.totalorder %v2552, %v194
        %vm2603 = vcmp.eq.s32.totalorder %v2552, %v195
        %vm2604 = vcmp.eq.s32.totalorder %v2552, %v196
        %vm2605 = vcmp.eq.s32.totalorder %v2552, %v197
        %vm2606 = vcmp.eq.s32.totalorder %v2555, %v194
        %vm2607 = vcmp.eq.s32.totalorder %v2555, %v195
        %vm2608 = vcmp.eq.s32.totalorder %v2555, %v196
        %vm2609 = vcmp.eq.s32.totalorder %v2555, %v197
        %vm2610 = vcmp.eq.s32.totalorder %v2558, %v194
        %vm2611 = vcmp.eq.s32.totalorder %v2558, %v195
        %vm2612 = vcmp.eq.s32.totalorder %v2558, %v196
        %vm2613 = vcmp.eq.s32.totalorder %v2558, %v197
        %vm2614 = vcmp.eq.s32.totalorder %v2561, %v194
        %vm2615 = vcmp.eq.s32.totalorder %v2561, %v195
        %vm2616 = vcmp.eq.s32.totalorder %v2561, %v196
        %vm2617 = vcmp.eq.s32.totalorder %v2561, %v197
        %vm2618 = vcmp.eq.s32.totalorder %v2564, %v194
        %vm2619 = vcmp.eq.s32.totalorder %v2564, %v195
        %vm2620 = vcmp.eq.s32.totalorder %v2564, %v196
        %vm2621 = vcmp.eq.s32.totalorder %v2564, %v197
        %vm2622 = vcmp.eq.s32.totalorder %v2567, %v194
        %vm2623 = vcmp.eq.s32.totalorder %v2567, %v195
        %vm2624 = vcmp.eq.s32.totalorder %v2567, %v196
        %vm2625 = vcmp.eq.s32.totalorder %v2567, %v197
        %vm2626 = vcmp.eq.s32.totalorder %v2570, %v194
        %vm2627 = vcmp.eq.s32.totalorder %v2570, %v195
        %vm2628 = vcmp.eq.s32.totalorder %v2570, %v196
        %vm2629 = vcmp.eq.s32.totalorder %v2570, %v197
        %vm2630 = vcmp.eq.s32.totalorder %v2573, %v194
        %vm2631 = vcmp.eq.s32.totalorder %v2573, %v195
        %vm2632 = vcmp.eq.s32.totalorder %v2573, %v196
        %vm2633 = vcmp.eq.s32.totalorder %v2573, %v197
        %vm2634 = vcmp.eq.s32.totalorder %v2576, %v194
        %vm2635 = vcmp.eq.s32.totalorder %v2576, %v195
        %vm2636 = vcmp.eq.s32.totalorder %v2576, %v196
        %vm2637 = vcmp.eq.s32.totalorder %v2576, %v197
        %vm2638 = vcmp.eq.s32.totalorder %v2579, %v194
        %vm2639 = vcmp.eq.s32.totalorder %v2579, %v195
        %vm2640 = vcmp.eq.s32.totalorder %v2579, %v196
        %vm2641 = vcmp.eq.s32.totalorder %v2579, %v197
        %vm2642 = vcmp.eq.s32.totalorder %v2582, %v194
        %vm2643 = vcmp.eq.s32.totalorder %v2582, %v195
        %vm2644 = vcmp.eq.s32.totalorder %v2582, %v196
        %vm2645 = vcmp.eq.s32.totalorder %v2582, %v197
        %vm2646 = vcmp.eq.s32.totalorder %v2585, %v194
        %vm2647 = vcmp.eq.s32.totalorder %v2585, %v195
        %vm2648 = vcmp.eq.s32.totalorder %v2585, %v196
        %vm2649 = vcmp.eq.s32.totalorder %v2585, %v197
        %v2650 = vsel %vm2586, 1, 0
        %v2651 = vsel %vm2587, 1, 0
        %v2652 = vsel %vm2588, 1, 0
        %v2653 = vsel %vm2589, 1, 0
        %v2654 = vsel %vm2590, 1, 0
        %v2655 = vsel %vm2591, 1, 0
        %v2656 = vsel %vm2592, 1, 0
        %v2657 = vsel %vm2593, 1, 0
        %v2658 = vsel %vm2594, 1, 0
        %v2659 = vsel %vm2595, 1, 0
        %v2660 = vsel %vm2596, 1, 0
        %v2661 = vsel %vm2597, 1, 0
        %v2662 = vsel %vm2598, 1, 0
        %v2663 = vsel %vm2599, 1, 0
        %v2664 = vsel %vm2600, 1, 0
        %v2665 = vsel %vm2601, 1, 0
        %v2666 = vsel %vm2602, 1, 0
        %v2667 = vsel %vm2603, 1, 0
        %v2668 = vsel %vm2604, 1, 0
        %v2669 = vsel %vm2605, 1, 0
        %v2670 = vsel %vm2606, 1, 0
        %v2671 = vsel %vm2607, 1, 0
        %v2672 = vsel %vm2608, 1, 0
        %v2673 = vsel %vm2609, 1, 0
        %v2674 = vsel %vm2610, 1, 0
        %v2675 = vsel %vm2611, 1, 0
        %v2676 = vsel %vm2612, 1, 0
        %v2677 = vsel %vm2613, 1, 0
        %v2678 = vsel %vm2614, 1, 0
        %v2679 = vsel %vm2615, 1, 0
        %v2680 = vsel %vm2616, 1, 0
        %v2681 = vsel %vm2617, 1, 0
        %v2682 = vsel %vm2618, 1, 0
        %v2683 = vsel %vm2619, 1, 0
        %v2684 = vsel %vm2620, 1, 0
        %v2685 = vsel %vm2621, 1, 0
        %v2686 = vsel %vm2622, 1, 0
        %v2687 = vsel %vm2623, 1, 0
        %v2688 = vsel %vm2624, 1, 0
        %v2689 = vsel %vm2625, 1, 0
        %v2690 = vsel %vm2626, 1, 0
        %v2691 = vsel %vm2627, 1, 0
        %v2692 = vsel %vm2628, 1, 0
        %v2693 = vsel %vm2629, 1, 0
        %v2694 = vsel %vm2630, 1, 0
        %v2695 = vsel %vm2631, 1, 0
        %v2696 = vsel %vm2632, 1, 0
        %v2697 = vsel %vm2633, 1, 0
        %v2698 = vsel %vm2634, 1, 0
        %v2699 = vsel %vm2635, 1, 0
        %v2700 = vsel %vm2636, 1, 0
        %v2701 = vsel %vm2637, 1, 0
        %v2702 = vsel %vm2638, 1, 0
        %v2703 = vsel %vm2639, 1, 0
        %v2704 = vsel %vm2640, 1, 0
        %v2705 = vsel %vm2641, 1, 0
        %v2706 = vsel %vm2642, 1, 0
        %v2707 = vsel %vm2643, 1, 0
        %v2708 = vsel %vm2644, 1, 0
        %v2709 = vsel %vm2645, 1, 0
        %v2710 = vsel %vm2646, 1, 0
        %v2711 = vsel %vm2647, 1, 0
        %v2712 = vsel %vm2648, 1, 0
        %v2713 = vsel %vm2649, 1, 0
        %v2714 = vcvt.s32.f32 %v2650
        %v2715 = vcvt.s32.f32 %v2651
        %v2716 = vcvt.s32.f32 %v2652
        %v2717 = vcvt.s32.f32 %v2653
        %v2718 = vcvt.s32.f32 %v2654
        %v2719 = vcvt.s32.f32 %v2655
        %v2720 = vcvt.s32.f32 %v2656
        %v2721 = vcvt.s32.f32 %v2657
        %v2722 = vcvt.s32.f32 %v2658
        %v2723 = vcvt.s32.f32 %v2659
        %v2724 = vcvt.s32.f32 %v2660
        %v2725 = vcvt.s32.f32 %v2661
        %v2726 = vcvt.s32.f32 %v2662
        %v2727 = vcvt.s32.f32 %v2663
        %v2728 = vcvt.s32.f32 %v2664
        %v2729 = vcvt.s32.f32 %v2665
        %v2730 = vcvt.s32.f32 %v2666
        %v2731 = vcvt.s32.f32 %v2667
        %v2732 = vcvt.s32.f32 %v2668
        %v2733 = vcvt.s32.f32 %v2669
        %v2734 = vcvt.s32.f32 %v2670
        %v2735 = vcvt.s32.f32 %v2671
        %v2736 = vcvt.s32.f32 %v2672
        %v2737 = vcvt.s32.f32 %v2673
        %v2738 = vcvt.s32.f32 %v2674
        %v2739 = vcvt.s32.f32 %v2675
        %v2740 = vcvt.s32.f32 %v2676
        %v2741 = vcvt.s32.f32 %v2677
        %v2742 = vcvt.s32.f32 %v2678
        %v2743 = vcvt.s32.f32 %v2679
        %v2744 = vcvt.s32.f32 %v2680
        %v2745 = vcvt.s32.f32 %v2681
        %v2746 = vcvt.s32.f32 %v2682
        %v2747 = vcvt.s32.f32 %v2683
        %v2748 = vcvt.s32.f32 %v2684
        %v2749 = vcvt.s32.f32 %v2685
        %v2750 = vcvt.s32.f32 %v2686
        %v2751 = vcvt.s32.f32 %v2687
        %v2752 = vcvt.s32.f32 %v2688
        %v2753 = vcvt.s32.f32 %v2689
        %v2754 = vcvt.s32.f32 %v2690
        %v2755 = vcvt.s32.f32 %v2691
        %v2756 = vcvt.s32.f32 %v2692
        %v2757 = vcvt.s32.f32 %v2693
        %v2758 = vcvt.s32.f32 %v2694
        %v2759 = vcvt.s32.f32 %v2695
        %v2760 = vcvt.s32.f32 %v2696
        %v2761 = vcvt.s32.f32 %v2697
        %v2762 = vcvt.s32.f32 %v2698
        %v2763 = vcvt.s32.f32 %v2699
        %v2764 = vcvt.s32.f32 %v2700
        %v2765 = vcvt.s32.f32 %v2701
        %v2766 = vcvt.s32.f32 %v2702
        %v2767 = vcvt.s32.f32 %v2703
        %v2768 = vcvt.s32.f32 %v2704
        %v2769 = vcvt.s32.f32 %v2705
        %v2770 = vcvt.s32.f32 %v2706
        %v2771 = vcvt.s32.f32 %v2707
        %v2772 = vcvt.s32.f32 %v2708
        %v2773 = vcvt.s32.f32 %v2709
        %v2774 = vcvt.s32.f32 %v2710
        %v2775 = vcvt.s32.f32 %v2711
        %v2776 = vcvt.s32.f32 %v2712
        %v2777 = vcvt.s32.f32 %v2713
        %v2778 = vadd.f32 %v2474, %v2714
        %v2779 = vadd.f32 %v2475, %v2715
        %v2780 = vadd.f32 %v2476, %v2716
        %v2781 = vadd.f32 %v2477, %v2717
        %v2782 = vadd.f32 %v2478, %v2718
        %v2783 = vadd.f32 %v2479, %v2719
        %v2784 = vadd.f32 %v2480, %v2720
        %v2785 = vadd.f32 %v2481, %v2721
        %v2786 = vadd.f32 %v2482, %v2722
        %v2787 = vadd.f32 %v2483, %v2723
        %v2788 = vadd.f32 %v2484, %v2724
        %v2789 = vadd.f32 %v2485, %v2725
        %v2790 = vadd.f32 %v2486, %v2726
        %v2791 = vadd.f32 %v2487, %v2727
        %v2792 = vadd.f32 %v2488, %v2728
        %v2793 = vadd.f32 %v2489, %v2729
        %v2794 = vadd.f32 %v2490, %v2730
        %v2795 = vadd.f32 %v2491, %v2731
        %v2796 = vadd.f32 %v2492, %v2732
        %v2797 = vadd.f32 %v2493, %v2733
        %v2798 = vadd.f32 %v2494, %v2734
        %v2799 = vadd.f32 %v2495, %v2735
        %v2800 = vadd.f32 %v2496, %v2736
        %v2801 = vadd.f32 %v2497, %v2737
        %v2802 = vadd.f32 %v2498, %v2738
        %v2803 = vadd.f32 %v2499, %v2739
        %v2804 = vadd.f32 %v2500, %v2740
        %v2805 = vadd.f32 %v2501, %v2741
        %v2806 = vadd.f32 %v2502, %v2742
        %v2807 = vadd.f32 %v2503, %v2743
        %v2808 = vadd.f32 %v2504, %v2744
        %v2809 = vadd.f32 %v2505, %v2745
        %v2810 = vadd.f32 %v2506, %v2746
        %v2811 = vadd.f32 %v2507, %v2747
        %v2812 = vadd.f32 %v2508, %v2748
        %v2813 = vadd.f32 %v2509, %v2749
        %v2814 = vadd.f32 %v2510, %v2750
        %v2815 = vadd.f32 %v2511, %v2751
        %v2816 = vadd.f32 %v2512, %v2752
        %v2817 = vadd.f32 %v2513, %v2753
        %v2818 = vadd.f32 %v2514, %v2754
        %v2819 = vadd.f32 %v2515, %v2755
        %v2820 = vadd.f32 %v2516, %v2756
        %v2821 = vadd.f32 %v2517, %v2757
        %v2822 = vadd.f32 %v2518, %v2758
        %v2823 = vadd.f32 %v2519, %v2759
        %v2824 = vadd.f32 %v2520, %v2760
        %v2825 = vadd.f32 %v2521, %v2761
        %v2826 = vadd.f32 %v2522, %v2762
        %v2827 = vadd.f32 %v2523, %v2763
        %v2828 = vadd.f32 %v2524, %v2764
        %v2829 = vadd.f32 %v2525, %v2765
        %v2830 = vadd.f32 %v2526, %v2766
        %v2831 = vadd.f32 %v2527, %v2767
        %v2832 = vadd.f32 %v2528, %v2768
        %v2833 = vadd.f32 %v2529, %v2769
        %v2834 = vadd.f32 %v2530, %v2770
        %v2835 = vadd.f32 %v2531, %v2771
        %v2836 = vadd.f32 %v2532, %v2772
        %v2837 = vadd.f32 %v2533, %v2773
        %v2838 = vadd.f32 %v2534, %v2774
        %v2839 = vadd.f32 %v2535, %v2775
        %v2840 = vadd.f32 %v2536, %v2776
        %v2841 = vadd.f32 %v2537, %v2777
        %2842 = vset.pattern.permute.xlu0 7
        %2843 = vperm.xlu0 %2842, %v216
        %v2844 = vpop.permute.xlu0 %2843
        %2845 = vset.pattern.permute.xlu0 7
        %2846 = vperm.xlu0 %2845, %v217
        %v2847 = vpop.permute.xlu0 %2846
        %2848 = vset.pattern.permute.xlu0 7
        %2849 = vperm.xlu0 %2848, %v218
        %v2850 = vpop.permute.xlu0 %2849
        %2851 = vset.pattern.permute.xlu0 7
        %2852 = vperm.xlu0 %2851, %v219
        %v2853 = vpop.permute.xlu0 %2852
        %2854 = vset.pattern.permute.xlu0 7
        %2855 = vperm.xlu0 %2854, %v220
        %v2856 = vpop.permute.xlu0 %2855
        %2857 = vset.pattern.permute.xlu0 7
        %2858 = vperm.xlu0 %2857, %v221
        %v2859 = vpop.permute.xlu0 %2858
        %2860 = vset.pattern.permute.xlu0 7
        %2861 = vperm.xlu0 %2860, %v222
        %v2862 = vpop.permute.xlu0 %2861
        %2863 = vset.pattern.permute.xlu0 7
        %2864 = vperm.xlu0 %2863, %v223
        %v2865 = vpop.permute.xlu0 %2864
        %2866 = vset.pattern.permute.xlu0 7
        %2867 = vperm.xlu0 %2866, %v224
        %v2868 = vpop.permute.xlu0 %2867
        %2869 = vset.pattern.permute.xlu0 7
        %2870 = vperm.xlu0 %2869, %v225
        %v2871 = vpop.permute.xlu0 %2870
        %2872 = vset.pattern.permute.xlu0 7
        %2873 = vperm.xlu0 %2872, %v226
        %v2874 = vpop.permute.xlu0 %2873
        %2875 = vset.pattern.permute.xlu0 7
        %2876 = vperm.xlu0 %2875, %v227
        %v2877 = vpop.permute.xlu0 %2876
        %2878 = vset.pattern.permute.xlu0 7
        %2879 = vperm.xlu0 %2878, %v228
        %v2880 = vpop.permute.xlu0 %2879
        %2881 = vset.pattern.permute.xlu0 7
        %2882 = vperm.xlu0 %2881, %v229
        %v2883 = vpop.permute.xlu0 %2882
        %2884 = vset.pattern.permute.xlu0 7
        %2885 = vperm.xlu0 %2884, %v230
        %v2886 = vpop.permute.xlu0 %2885
        %2887 = vset.pattern.permute.xlu0 7
        %2888 = vperm.xlu0 %2887, %v231
        %v2889 = vpop.permute.xlu0 %2888
        %vm2890 = vcmp.eq.s32.totalorder %v2844, %v194
        %vm2891 = vcmp.eq.s32.totalorder %v2844, %v195
        %vm2892 = vcmp.eq.s32.totalorder %v2844, %v196
        %vm2893 = vcmp.eq.s32.totalorder %v2844, %v197
        %vm2894 = vcmp.eq.s32.totalorder %v2847, %v194
        %vm2895 = vcmp.eq.s32.totalorder %v2847, %v195
        %vm2896 = vcmp.eq.s32.totalorder %v2847, %v196
        %vm2897 = vcmp.eq.s32.totalorder %v2847, %v197
        %vm2898 = vcmp.eq.s32.totalorder %v2850, %v194
        %vm2899 = vcmp.eq.s32.totalorder %v2850, %v195
        %vm2900 = vcmp.eq.s32.totalorder %v2850, %v196
        %vm2901 = vcmp.eq.s32.totalorder %v2850, %v197
        %vm2902 = vcmp.eq.s32.totalorder %v2853, %v194
        %vm2903 = vcmp.eq.s32.totalorder %v2853, %v195
        %vm2904 = vcmp.eq.s32.totalorder %v2853, %v196
        %vm2905 = vcmp.eq.s32.totalorder %v2853, %v197
        %vm2906 = vcmp.eq.s32.totalorder %v2856, %v194
        %vm2907 = vcmp.eq.s32.totalorder %v2856, %v195
        %vm2908 = vcmp.eq.s32.totalorder %v2856, %v196
        %vm2909 = vcmp.eq.s32.totalorder %v2856, %v197
        %vm2910 = vcmp.eq.s32.totalorder %v2859, %v194
        %vm2911 = vcmp.eq.s32.totalorder %v2859, %v195
        %vm2912 = vcmp.eq.s32.totalorder %v2859, %v196
        %vm2913 = vcmp.eq.s32.totalorder %v2859, %v197
        %vm2914 = vcmp.eq.s32.totalorder %v2862, %v194
        %vm2915 = vcmp.eq.s32.totalorder %v2862, %v195
        %vm2916 = vcmp.eq.s32.totalorder %v2862, %v196
        %vm2917 = vcmp.eq.s32.totalorder %v2862, %v197
        %vm2918 = vcmp.eq.s32.totalorder %v2865, %v194
        %vm2919 = vcmp.eq.s32.totalorder %v2865, %v195
        %vm2920 = vcmp.eq.s32.totalorder %v2865, %v196
        %vm2921 = vcmp.eq.s32.totalorder %v2865, %v197
        %vm2922 = vcmp.eq.s32.totalorder %v2868, %v194
        %vm2923 = vcmp.eq.s32.totalorder %v2868, %v195
        %vm2924 = vcmp.eq.s32.totalorder %v2868, %v196
        %vm2925 = vcmp.eq.s32.totalorder %v2868, %v197
        %vm2926 = vcmp.eq.s32.totalorder %v2871, %v194
        %vm2927 = vcmp.eq.s32.totalorder %v2871, %v195
        %vm2928 = vcmp.eq.s32.totalorder %v2871, %v196
        %vm2929 = vcmp.eq.s32.totalorder %v2871, %v197
        %vm2930 = vcmp.eq.s32.totalorder %v2874, %v194
        %vm2931 = vcmp.eq.s32.totalorder %v2874, %v195
        %vm2932 = vcmp.eq.s32.totalorder %v2874, %v196
        %vm2933 = vcmp.eq.s32.totalorder %v2874, %v197
        %vm2934 = vcmp.eq.s32.totalorder %v2877, %v194
        %vm2935 = vcmp.eq.s32.totalorder %v2877, %v195
        %vm2936 = vcmp.eq.s32.totalorder %v2877, %v196
        %vm2937 = vcmp.eq.s32.totalorder %v2877, %v197
        %vm2938 = vcmp.eq.s32.totalorder %v2880, %v194
        %vm2939 = vcmp.eq.s32.totalorder %v2880, %v195
        %vm2940 = vcmp.eq.s32.totalorder %v2880, %v196
        %vm2941 = vcmp.eq.s32.totalorder %v2880, %v197
        %vm2942 = vcmp.eq.s32.totalorder %v2883, %v194
        %vm2943 = vcmp.eq.s32.totalorder %v2883, %v195
        %vm2944 = vcmp.eq.s32.totalorder %v2883, %v196
        %vm2945 = vcmp.eq.s32.totalorder %v2883, %v197
        %vm2946 = vcmp.eq.s32.totalorder %v2886, %v194
        %vm2947 = vcmp.eq.s32.totalorder %v2886, %v195
        %vm2948 = vcmp.eq.s32.totalorder %v2886, %v196
        %vm2949 = vcmp.eq.s32.totalorder %v2886, %v197
        %vm2950 = vcmp.eq.s32.totalorder %v2889, %v194
        %vm2951 = vcmp.eq.s32.totalorder %v2889, %v195
        %vm2952 = vcmp.eq.s32.totalorder %v2889, %v196
        %vm2953 = vcmp.eq.s32.totalorder %v2889, %v197
        %v2954 = vsel %vm2890, 1, 0
        %v2955 = vsel %vm2891, 1, 0
        %v2956 = vsel %vm2892, 1, 0
        %v2957 = vsel %vm2893, 1, 0
        %v2958 = vsel %vm2894, 1, 0
        %v2959 = vsel %vm2895, 1, 0
        %v2960 = vsel %vm2896, 1, 0
        %v2961 = vsel %vm2897, 1, 0
        %v2962 = vsel %vm2898, 1, 0
        %v2963 = vsel %vm2899, 1, 0
        %v2964 = vsel %vm2900, 1, 0
        %v2965 = vsel %vm2901, 1, 0
        %v2966 = vsel %vm2902, 1, 0
        %v2967 = vsel %vm2903, 1, 0
        %v2968 = vsel %vm2904, 1, 0
        %v2969 = vsel %vm2905, 1, 0
        %v2970 = vsel %vm2906, 1, 0
        %v2971 = vsel %vm2907, 1, 0
        %v2972 = vsel %vm2908, 1, 0
        %v2973 = vsel %vm2909, 1, 0
        %v2974 = vsel %vm2910, 1, 0
        %v2975 = vsel %vm2911, 1, 0
        %v2976 = vsel %vm2912, 1, 0
        %v2977 = vsel %vm2913, 1, 0
        %v2978 = vsel %vm2914, 1, 0
        %v2979 = vsel %vm2915, 1, 0
        %v2980 = vsel %vm2916, 1, 0
        %v2981 = vsel %vm2917, 1, 0
        %v2982 = vsel %vm2918, 1, 0
        %v2983 = vsel %vm2919, 1, 0
        %v2984 = vsel %vm2920, 1, 0
        %v2985 = vsel %vm2921, 1, 0
        %v2986 = vsel %vm2922, 1, 0
        %v2987 = vsel %vm2923, 1, 0
        %v2988 = vsel %vm2924, 1, 0
        %v2989 = vsel %vm2925, 1, 0
        %v2990 = vsel %vm2926, 1, 0
        %v2991 = vsel %vm2927, 1, 0
        %v2992 = vsel %vm2928, 1, 0
        %v2993 = vsel %vm2929, 1, 0
        %v2994 = vsel %vm2930, 1, 0
        %v2995 = vsel %vm2931, 1, 0
        %v2996 = vsel %vm2932, 1, 0
        %v2997 = vsel %vm2933, 1, 0
        %v2998 = vsel %vm2934, 1, 0
        %v2999 = vsel %vm2935, 1, 0
        %v3000 = vsel %vm2936, 1, 0
        %v3001 = vsel %vm2937, 1, 0
        %v3002 = vsel %vm2938, 1, 0
        %v3003 = vsel %vm2939, 1, 0
        %v3004 = vsel %vm2940, 1, 0
        %v3005 = vsel %vm2941, 1, 0
        %v3006 = vsel %vm2942, 1, 0
        %v3007 = vsel %vm2943, 1, 0
        %v3008 = vsel %vm2944, 1, 0
        %v3009 = vsel %vm2945, 1, 0
        %v3010 = vsel %vm2946, 1, 0
        %v3011 = vsel %vm2947, 1, 0
        %v3012 = vsel %vm2948, 1, 0
        %v3013 = vsel %vm2949, 1, 0
        %v3014 = vsel %vm2950, 1, 0
        %v3015 = vsel %vm2951, 1, 0
        %v3016 = vsel %vm2952, 1, 0
        %v3017 = vsel %vm2953, 1, 0
        %v3018 = vcvt.s32.f32 %v2954
        %v3019 = vcvt.s32.f32 %v2955
        %v3020 = vcvt.s32.f32 %v2956
        %v3021 = vcvt.s32.f32 %v2957
        %v3022 = vcvt.s32.f32 %v2958
        %v3023 = vcvt.s32.f32 %v2959
        %v3024 = vcvt.s32.f32 %v2960
        %v3025 = vcvt.s32.f32 %v2961
        %v3026 = vcvt.s32.f32 %v2962
        %v3027 = vcvt.s32.f32 %v2963
        %v3028 = vcvt.s32.f32 %v2964
        %v3029 = vcvt.s32.f32 %v2965
        %v3030 = vcvt.s32.f32 %v2966
        %v3031 = vcvt.s32.f32 %v2967
        %v3032 = vcvt.s32.f32 %v2968
        %v3033 = vcvt.s32.f32 %v2969
        %v3034 = vcvt.s32.f32 %v2970
        %v3035 = vcvt.s32.f32 %v2971
        %v3036 = vcvt.s32.f32 %v2972
        %v3037 = vcvt.s32.f32 %v2973
        %v3038 = vcvt.s32.f32 %v2974
        %v3039 = vcvt.s32.f32 %v2975
        %v3040 = vcvt.s32.f32 %v2976
        %v3041 = vcvt.s32.f32 %v2977
        %v3042 = vcvt.s32.f32 %v2978
        %v3043 = vcvt.s32.f32 %v2979
        %v3044 = vcvt.s32.f32 %v2980
        %v3045 = vcvt.s32.f32 %v2981
        %v3046 = vcvt.s32.f32 %v2982
        %v3047 = vcvt.s32.f32 %v2983
        %v3048 = vcvt.s32.f32 %v2984
        %v3049 = vcvt.s32.f32 %v2985
        %v3050 = vcvt.s32.f32 %v2986
        %v3051 = vcvt.s32.f32 %v2987
        %v3052 = vcvt.s32.f32 %v2988
        %v3053 = vcvt.s32.f32 %v2989
        %v3054 = vcvt.s32.f32 %v2990
        %v3055 = vcvt.s32.f32 %v2991
        %v3056 = vcvt.s32.f32 %v2992
        %v3057 = vcvt.s32.f32 %v2993
        %v3058 = vcvt.s32.f32 %v2994
        %v3059 = vcvt.s32.f32 %v2995
        %v3060 = vcvt.s32.f32 %v2996
        %v3061 = vcvt.s32.f32 %v2997
        %v3062 = vcvt.s32.f32 %v2998
        %v3063 = vcvt.s32.f32 %v2999
        %v3064 = vcvt.s32.f32 %v3000
        %v3065 = vcvt.s32.f32 %v3001
        %v3066 = vcvt.s32.f32 %v3002
        %v3067 = vcvt.s32.f32 %v3003
        %v3068 = vcvt.s32.f32 %v3004
        %v3069 = vcvt.s32.f32 %v3005
        %v3070 = vcvt.s32.f32 %v3006
        %v3071 = vcvt.s32.f32 %v3007
        %v3072 = vcvt.s32.f32 %v3008
        %v3073 = vcvt.s32.f32 %v3009
        %v3074 = vcvt.s32.f32 %v3010
        %v3075 = vcvt.s32.f32 %v3011
        %v3076 = vcvt.s32.f32 %v3012
        %v3077 = vcvt.s32.f32 %v3013
        %v3078 = vcvt.s32.f32 %v3014
        %v3079 = vcvt.s32.f32 %v3015
        %v3080 = vcvt.s32.f32 %v3016
        %v3081 = vcvt.s32.f32 %v3017
        %v3082 = vadd.f32 %v2778, %v3018
        %v3083 = vadd.f32 %v2779, %v3019
        %v3084 = vadd.f32 %v2780, %v3020
        %v3085 = vadd.f32 %v2781, %v3021
        %v3086 = vadd.f32 %v2782, %v3022
        %v3087 = vadd.f32 %v2783, %v3023
        %v3088 = vadd.f32 %v2784, %v3024
        %v3089 = vadd.f32 %v2785, %v3025
        %v3090 = vadd.f32 %v2786, %v3026
        %v3091 = vadd.f32 %v2787, %v3027
        %v3092 = vadd.f32 %v2788, %v3028
        %v3093 = vadd.f32 %v2789, %v3029
        %v3094 = vadd.f32 %v2790, %v3030
        %v3095 = vadd.f32 %v2791, %v3031
        %v3096 = vadd.f32 %v2792, %v3032
        %v3097 = vadd.f32 %v2793, %v3033
        %v3098 = vadd.f32 %v2794, %v3034
        %v3099 = vadd.f32 %v2795, %v3035
        %v3100 = vadd.f32 %v2796, %v3036
        %v3101 = vadd.f32 %v2797, %v3037
        %v3102 = vadd.f32 %v2798, %v3038
        %v3103 = vadd.f32 %v2799, %v3039
        %v3104 = vadd.f32 %v2800, %v3040
        %v3105 = vadd.f32 %v2801, %v3041
        %v3106 = vadd.f32 %v2802, %v3042
        %v3107 = vadd.f32 %v2803, %v3043
        %v3108 = vadd.f32 %v2804, %v3044
        %v3109 = vadd.f32 %v2805, %v3045
        %v3110 = vadd.f32 %v2806, %v3046
        %v3111 = vadd.f32 %v2807, %v3047
        %v3112 = vadd.f32 %v2808, %v3048
        %v3113 = vadd.f32 %v2809, %v3049
        %v3114 = vadd.f32 %v2810, %v3050
        %v3115 = vadd.f32 %v2811, %v3051
        %v3116 = vadd.f32 %v2812, %v3052
        %v3117 = vadd.f32 %v2813, %v3053
        %v3118 = vadd.f32 %v2814, %v3054
        %v3119 = vadd.f32 %v2815, %v3055
        %v3120 = vadd.f32 %v2816, %v3056
        %v3121 = vadd.f32 %v2817, %v3057
        %v3122 = vadd.f32 %v2818, %v3058
        %v3123 = vadd.f32 %v2819, %v3059
        %v3124 = vadd.f32 %v2820, %v3060
        %v3125 = vadd.f32 %v2821, %v3061
        %v3126 = vadd.f32 %v2822, %v3062
        %v3127 = vadd.f32 %v2823, %v3063
        %v3128 = vadd.f32 %v2824, %v3064
        %v3129 = vadd.f32 %v2825, %v3065
        %v3130 = vadd.f32 %v2826, %v3066
        %v3131 = vadd.f32 %v2827, %v3067
        %v3132 = vadd.f32 %v2828, %v3068
        %v3133 = vadd.f32 %v2829, %v3069
        %v3134 = vadd.f32 %v2830, %v3070
        %v3135 = vadd.f32 %v2831, %v3071
        %v3136 = vadd.f32 %v2832, %v3072
        %v3137 = vadd.f32 %v2833, %v3073
        %v3138 = vadd.f32 %v2834, %v3074
        %v3139 = vadd.f32 %v2835, %v3075
        %v3140 = vadd.f32 %v2836, %v3076
        %v3141 = vadd.f32 %v2837, %v3077
        %v3142 = vadd.f32 %v2838, %v3078
        %v3143 = vadd.f32 %v2839, %v3079
        %v3144 = vadd.f32 %v2840, %v3080
        %v3145 = vadd.f32 %v2841, %v3081
        %v3146 = vpack.c.bf16 %v3086, %v3082
        %v3147 = vpack.c.bf16 %v3087, %v3083
        %v3148 = vpack.c.bf16 %v3088, %v3084
        %v3149 = vpack.c.bf16 %v3089, %v3085
        %v3150 = vpack.c.bf16 %v3094, %v3090
        %v3151 = vpack.c.bf16 %v3095, %v3091
        %v3152 = vpack.c.bf16 %v3096, %v3092
        %v3153 = vpack.c.bf16 %v3097, %v3093
        %v3154 = vpack.c.bf16 %v3102, %v3098
        %v3155 = vpack.c.bf16 %v3103, %v3099
        %v3156 = vpack.c.bf16 %v3104, %v3100
        %v3157 = vpack.c.bf16 %v3105, %v3101
        %v3158 = vpack.c.bf16 %v3110, %v3106
        %v3159 = vpack.c.bf16 %v3111, %v3107
        %v3160 = vpack.c.bf16 %v3112, %v3108
        %v3161 = vpack.c.bf16 %v3113, %v3109
        %v3162 = vpack.c.bf16 %v3118, %v3114
        %v3163 = vpack.c.bf16 %v3119, %v3115
        %v3164 = vpack.c.bf16 %v3120, %v3116
        %v3165 = vpack.c.bf16 %v3121, %v3117
        %v3166 = vpack.c.bf16 %v3126, %v3122
        %v3167 = vpack.c.bf16 %v3127, %v3123
        %v3168 = vpack.c.bf16 %v3128, %v3124
        %v3169 = vpack.c.bf16 %v3129, %v3125
        %v3170 = vpack.c.bf16 %v3134, %v3130
        %v3171 = vpack.c.bf16 %v3135, %v3131
        %v3172 = vpack.c.bf16 %v3136, %v3132
        %v3173 = vpack.c.bf16 %v3137, %v3133
        %v3174 = vpack.c.bf16 %v3142, %v3138
        %v3175 = vpack.c.bf16 %v3143, %v3139
        %v3176 = vpack.c.bf16 %v3144, %v3140
        %v3177 = vpack.c.bf16 %v3145, %v3141
        %3178 = vmatprep.subr.bf16.mxu0 0
        %3179 = vmatpush1.bf16.msra.mxu0 %v1672
        %3180 = vmatprep.subr.bf16.mxu0 0
        %3181 = vmatpush1.bf16.msra.mxu0 %v1673
        %3182 = vmatprep.subr.bf16.mxu0 0
        %3183 = vmatpush1.bf16.msra.mxu0 %v1674
        %3184 = vmatprep.subr.bf16.mxu0 0
        %3185 = vmatpush1.bf16.msra.mxu0 %v1675
        %3186 = vmatprep.subr.bf16.mxu0 0
        %3187 = vmatpush1.bf16.msra.mxu0 %v1676
        %3188 = vmatprep.subr.bf16.mxu0 0
        %3189 = vmatpush1.bf16.msra.mxu0 %v1677
        %3190 = vmatprep.subr.bf16.mxu0 0
        %3191 = vmatpush1.bf16.msra.mxu0 %v1678
        %3192 = vmatprep.subr.bf16.mxu0 0
        %3193 = vmatpush1.bf16.msra.mxu0 %v1679
        %3194 = vmatprep.subr.bf16.mxu0 0
        %3195 = vmatpush1.bf16.msra.mxu0 %v1680
        %3196 = vmatprep.subr.bf16.mxu0 0
        %3197 = vmatpush1.bf16.msra.mxu0 %v1681
        %3198 = vmatprep.subr.bf16.mxu0 0
        %3199 = vmatpush1.bf16.msra.mxu0 %v1682
        %3200 = vmatprep.subr.bf16.mxu0 0
        %3201 = vmatpush1.bf16.msra.mxu0 %v1683
        %3202 = vmatprep.subr.bf16.mxu0 0
        %3203 = vmatpush1.bf16.msra.mxu0 %v1684
        %3204 = vmatprep.subr.bf16.mxu0 0
        %3205 = vmatpush1.bf16.msra.mxu0 %v1685
        %3206 = vmatprep.subr.bf16.mxu0 0
        %3207 = vmatpush1.bf16.msra.mxu0 %v1686
        %3208 = vmatprep.subr.bf16.mxu0 0
        %3209 = vmatpush1.bf16.msra.mxu0 %v1687
        %3210 = vmatprep.mubr.bf16.mxu0 %v3147
        %3211 = vmatmul.mubr.bf16.gmra.mrb[0].mxu0 %v3146
        %v3212 = vpop.f32.mrb[0].mxu0
        %v3213 = vadd.f32 0.0, %v3212
        %v3214 = vpop.f32.mrb[0].mxu0
        %v3215 = vpop.f32.mrb[0].mxu0
        %v3216 = vadd.f32 0.0, %v3215
        %v3217 = vpop.f32.mrb[0].mxu0
        %3218 = vmatprep.mubr.bf16.mxu0 %v3151
        %3219 = vmatmul.mubr.bf16.gmra.mrb[0].mxu0 %v3150
        %v3220 = vpop.f32.mrb[0].mxu0
        %v3221 = vadd.f32 0.0, %v3220
        %v3222 = vpop.f32.mrb[0].mxu0
        %v3223 = vpop.f32.mrb[0].mxu0
        %v3224 = vadd.f32 0.0, %v3223
        %v3225 = vpop.f32.mrb[0].mxu0
        %3226 = vmatprep.mubr.bf16.mxu0 %v3155
        %3227 = vmatmul.mubr.bf16.gmra.mrb[0].mxu0 %v3154
        %v3228 = vpop.f32.mrb[0].mxu0
        %v3229 = vadd.f32 0.0, %v3228
        %v3230 = vpop.f32.mrb[0].mxu0
        %v3231 = vpop.f32.mrb[0].mxu0
        %v3232 = vadd.f32 0.0, %v3231
        %v3233 = vpop.f32.mrb[0].mxu0
        %3234 = vmatprep.mubr.bf16.mxu0 %v3159
        %3235 = vmatmul.mubr.bf16.gmra.mrb[0].mxu0 %v3158
        %v3236 = vpop.f32.mrb[0].mxu0
        %v3237 = vadd.f32 0.0, %v3236
        %v3238 = vpop.f32.mrb[0].mxu0
        %v3239 = vpop.f32.mrb[0].mxu0
        %v3240 = vadd.f32 0.0, %v3239
        %v3241 = vpop.f32.mrb[0].mxu0
        %3242 = vmatprep.mubr.bf16.mxu0 %v3163
        %3243 = vmatmul.mubr.bf16.gmra.mrb[0].mxu0 %v3162
        %v3244 = vpop.f32.mrb[0].mxu0
        %v3245 = vadd.f32 0.0, %v3244
        %v3246 = vpop.f32.mrb[0].mxu0
        %v3247 = vpop.f32.mrb[0].mxu0
        %v3248 = vadd.f32 0.0, %v3247
        %v3249 = vpop.f32.mrb[0].mxu0
        %3250 = vmatprep.mubr.bf16.mxu0 %v3167
        %3251 = vmatmul.mubr.bf16.gmra.mrb[0].mxu0 %v3166
        %v3252 = vpop.f32.mrb[0].mxu0
        %v3253 = vadd.f32 0.0, %v3252
        %v3254 = vpop.f32.mrb[0].mxu0
        %v3255 = vpop.f32.mrb[0].mxu0
        %v3256 = vadd.f32 0.0, %v3255
        %v3257 = vpop.f32.mrb[0].mxu0
        %3258 = vmatprep.mubr.bf16.mxu0 %v3171
        %3259 = vmatmul.mubr.bf16.gmra.mrb[0].mxu0 %v3170
        %v3260 = vpop.f32.mrb[0].mxu0
        %v3261 = vadd.f32 0.0, %v3260
        %v3262 = vpop.f32.mrb[0].mxu0
        %v3263 = vpop.f32.mrb[0].mxu0
        %v3264 = vadd.f32 0.0, %v3263
        %v3265 = vpop.f32.mrb[0].mxu0
        %3266 = vmatprep.mubr.bf16.mxu0 %v3175
        %3267 = vmatmul.mubr.bf16.gmra.mrb[0].mxu0 %v3174
        %v3268 = vpop.f32.mrb[0].mxu0
        %v3269 = vadd.f32 0.0, %v3268
        %v3270 = vpop.f32.mrb[0].mxu0
        %v3271 = vpop.f32.mrb[0].mxu0
        %v3272 = vadd.f32 0.0, %v3271
        %v3273 = vpop.f32.mrb[0].mxu0
        %3274 = vdwg.mxu0
        %3275 = vmatprep.subr.bf16.mxu0 0
        %3276 = vmatpush1.bf16.msra.mxu0 %v1688
        %3277 = vmatprep.subr.bf16.mxu0 0
        %3278 = vmatpush1.bf16.msra.mxu0 %v1689
        %3279 = vmatprep.subr.bf16.mxu0 0
        %3280 = vmatpush1.bf16.msra.mxu0 %v1690
        %3281 = vmatprep.subr.bf16.mxu0 0
        %3282 = vmatpush1.bf16.msra.mxu0 %v1691
        %3283 = vmatprep.subr.bf16.mxu0 0
        %3284 = vmatpush1.bf16.msra.mxu0 %v1692
        %3285 = vmatprep.subr.bf16.mxu0 0
        %3286 = vmatpush1.bf16.msra.mxu0 %v1693
        %3287 = vmatprep.subr.bf16.mxu0 0
        %3288 = vmatpush1.bf16.msra.mxu0 %v1694
        %3289 = vmatprep.subr.bf16.mxu0 0
        %3290 = vmatpush1.bf16.msra.mxu0 %v1695
        %3291 = vmatprep.subr.bf16.mxu0 0
        %3292 = vmatpush1.bf16.msra.mxu0 %v1696
        %3293 = vmatprep.subr.bf16.mxu0 0
        %3294 = vmatpush1.bf16.msra.mxu0 %v1697
        %3295 = vmatprep.subr.bf16.mxu0 0
        %3296 = vmatpush1.bf16.msra.mxu0 %v1698
        %3297 = vmatprep.subr.bf16.mxu0 0
        %3298 = vmatpush1.bf16.msra.mxu0 %v1699
        %3299 = vmatprep.subr.bf16.mxu0 0
        %3300 = vmatpush1.bf16.msra.mxu0 %v1700
        %3301 = vmatprep.subr.bf16.mxu0 0
        %3302 = vmatpush1.bf16.msra.mxu0 %v1701
        %3303 = vmatprep.subr.bf16.mxu0 0
        %3304 = vmatpush1.bf16.msra.mxu0 %v1702
        %3305 = vmatprep.subr.bf16.mxu0 0
        %3306 = vmatpush1.bf16.msra.mxu0 %v1703
        %3307 = vmatprep.mubr.bf16.mxu0 %v3149
        %3308 = vmatmul.mubr.bf16.gmra.mrb[0].mxu0 %v3148
        %v3309 = vpop.f32.mrb[0].mxu0
        %v3310 = vadd.f32 %v3213, %v3309
        %v3311 = vpop.f32.mrb[0].mxu0
        %v3312 = vpop.f32.mrb[0].mxu0
        %v3313 = vadd.f32 %v3216, %v3312
        %v3314 = vpop.f32.mrb[0].mxu0
        %3315 = vmatprep.mubr.bf16.mxu0 %v3153
        %3316 = vmatmul.mubr.bf16.gmra.mrb[0].mxu0 %v3152
        %v3317 = vpop.f32.mrb[0].mxu0
        %v3318 = vadd.f32 %v3221, %v3317
        %v3319 = vpop.f32.mrb[0].mxu0
        %v3320 = vpop.f32.mrb[0].mxu0
        %v3321 = vadd.f32 %v3224, %v3320
        %v3322 = vpop.f32.mrb[0].mxu0
        %3323 = vmatprep.mubr.bf16.mxu0 %v3157
        %3324 = vmatmul.mubr.bf16.gmra.mrb[0].mxu0 %v3156
        %v3325 = vpop.f32.mrb[0].mxu0
        %v3326 = vadd.f32 %v3229, %v3325
        %v3327 = vpop.f32.mrb[0].mxu0
        %v3328 = vpop.f32.mrb[0].mxu0
        %v3329 = vadd.f32 %v3232, %v3328
        %v3330 = vpop.f32.mrb[0].mxu0
        %3331 = vmatprep.mubr.bf16.mxu0 %v3161
        %3332 = vmatmul.mubr.bf16.gmra.mrb[0].mxu0 %v3160
        %v3333 = vpop.f32.mrb[0].mxu0
        %v3334 = vadd.f32 %v3237, %v3333
        %v3335 = vpop.f32.mrb[0].mxu0
        %v3336 = vpop.f32.mrb[0].mxu0
        %v3337 = vadd.f32 %v3240, %v3336
        %v3338 = vpop.f32.mrb[0].mxu0
        %3339 = vmatprep.mubr.bf16.mxu0 %v3165
        %3340 = vmatmul.mubr.bf16.gmra.mrb[0].mxu0 %v3164
        %v3341 = vpop.f32.mrb[0].mxu0
        %v3342 = vadd.f32 %v3245, %v3341
        %v3343 = vpop.f32.mrb[0].mxu0
        %v3344 = vpop.f32.mrb[0].mxu0
        %v3345 = vadd.f32 %v3248, %v3344
        %v3346 = vpop.f32.mrb[0].mxu0
        %3347 = vmatprep.mubr.bf16.mxu0 %v3169
        %3348 = vmatmul.mubr.bf16.gmra.mrb[0].mxu0 %v3168
        %v3349 = vpop.f32.mrb[0].mxu0
        %v3350 = vadd.f32 %v3253, %v3349
        %v3351 = vpop.f32.mrb[0].mxu0
        %v3352 = vpop.f32.mrb[0].mxu0
        %v3353 = vadd.f32 %v3256, %v3352
        %v3354 = vpop.f32.mrb[0].mxu0
        %3355 = vmatprep.mubr.bf16.mxu0 %v3173
        %3356 = vmatmul.mubr.bf16.gmra.mrb[0].mxu0 %v3172
        %v3357 = vpop.f32.mrb[0].mxu0
        %v3358 = vadd.f32 %v3261, %v3357
        %v3359 = vpop.f32.mrb[0].mxu0
        %v3360 = vpop.f32.mrb[0].mxu0
        %v3361 = vadd.f32 %v3264, %v3360
        %v3362 = vpop.f32.mrb[0].mxu0
        %3363 = vmatprep.mubr.bf16.mxu0 %v3177
        %3364 = vmatmul.mubr.bf16.gmra.mrb[0].mxu0 %v3176
        %v3365 = vpop.f32.mrb[0].mxu0
        %v3366 = vadd.f32 %v3269, %v3365
        %v3367 = vpop.f32.mrb[0].mxu0
        %v3368 = vpop.f32.mrb[0].mxu0
        %v3369 = vadd.f32 %v3272, %v3368
        %v3370 = vpop.f32.mrb[0].mxu0
        %3371 = vdwg.mxu0
        %v3372 = vld [vmem:[#allocation2] sm:$0xff]
        %v3373 = vld [vmem:[#allocation2 + $0x8] sm:$0xff]
        %v3374 = vld [vmem:[#allocation2 + $0x10] sm:$0xff]
        %v3375 = vld [vmem:[#allocation2 + $0x18] sm:$0xff]
        %v3376 = vld [vmem:[#allocation2 + $0x20] sm:$0xff]
        %v3377 = vld [vmem:[#allocation2 + $0x28] sm:$0xff]
        %v3378 = vld [vmem:[#allocation2 + $0x30] sm:$0xff]
        %v3379 = vld [vmem:[#allocation2 + $0x38] sm:$0xff]
        %v3380 = vld [vmem:[#allocation2 + $0x40] sm:$0xff]
        %v3381 = vld [vmem:[#allocation2 + $0x48] sm:$0xff]
        %v3382 = vld [vmem:[#allocation2 + $0x50] sm:$0xff]
        %v3383 = vld [vmem:[#allocation2 + $0x58] sm:$0xff]
        %v3384 = vld [vmem:[#allocation2 + $0x60] sm:$0xff]
        %v3385 = vld [vmem:[#allocation2 + $0x68] sm:$0xff]
        %v3386 = vld [vmem:[#allocation2 + $0x70] sm:$0xff]
        %v3387 = vld [vmem:[#allocation2 + $0x78] sm:$0xff]
        %3404 = vrot.lane.b32.xlu0 %v3310, 64
        %v3405 = vpop.permute.xlu0 %3404
        %3406 = vrot.lane.b32.xlu0 %v3313, 64
        %v3407 = vpop.permute.xlu0 %3406
        %3408 = vrot.lane.b32.xlu0 %v3318, 64
        %v3409 = vpop.permute.xlu0 %3408
        %3410 = vrot.lane.b32.xlu0 %v3321, 64
        %v3411 = vpop.permute.xlu0 %3410
        %3412 = vrot.lane.b32.xlu0 %v3326, 64
        %v3413 = vpop.permute.xlu0 %3412
        %3414 = vrot.lane.b32.xlu0 %v3329, 64
        %v3415 = vpop.permute.xlu0 %3414
        %3416 = vrot.lane.b32.xlu0 %v3334, 64
        %v3417 = vpop.permute.xlu0 %3416
        %3418 = vrot.lane.b32.xlu0 %v3337, 64
        %v3419 = vpop.permute.xlu0 %3418
        %3420 = vrot.lane.b32.xlu0 %v3342, 64
        %v3421 = vpop.permute.xlu0 %3420
        %3422 = vrot.lane.b32.xlu0 %v3345, 64
        %v3423 = vpop.permute.xlu0 %3422
        %3424 = vrot.lane.b32.xlu0 %v3350, 64
        %v3425 = vpop.permute.xlu0 %3424
        %3426 = vrot.lane.b32.xlu0 %v3353, 64
        %v3427 = vpop.permute.xlu0 %3426
        %3428 = vrot.lane.b32.xlu0 %v3358, 64
        %v3429 = vpop.permute.xlu0 %3428
        %3430 = vrot.lane.b32.xlu0 %v3361, 64
        %v3431 = vpop.permute.xlu0 %3430
        %3432 = vrot.lane.b32.xlu0 %v3366, 64
        %v3433 = vpop.permute.xlu0 %3432
        %3434 = vrot.lane.b32.xlu0 %v3369, 64
        %v3435 = vpop.permute.xlu0 %3434
        %vm3452 = vcmask 523264
        %v3453 = vsel %vm3452, %v1868, %v3405
        %v3454 = vsel %vm3452, %v1871, %v3407
        %v3455 = vsel %vm3452, %v1876, %v3409
        %v3456 = vsel %vm3452, %v1879, %v3411
        %v3457 = vsel %vm3452, %v1884, %v3413
        %v3458 = vsel %vm3452, %v1887, %v3415
        %v3459 = vsel %vm3452, %v1892, %v3417
        %v3460 = vsel %vm3452, %v1895, %v3419
        %v3461 = vsel %vm3452, %v1900, %v3421
        %v3462 = vsel %vm3452, %v1903, %v3423
        %v3463 = vsel %vm3452, %v1908, %v3425
        %v3464 = vsel %vm3452, %v1911, %v3427
        %v3465 = vsel %vm3452, %v1916, %v3429
        %v3466 = vsel %vm3452, %v1919, %v3431
        %v3467 = vsel %vm3452, %v1924, %v3433
        %v3468 = vsel %vm3452, %v1927, %v3435
        %v3469 = vadd.f32 %v3372, %v3453
        %v3470 = vadd.f32 %v3373, %v3454
        %v3471 = vadd.f32 %v3374, %v3455
        %v3472 = vadd.f32 %v3375, %v3456
        %v3473 = vadd.f32 %v3376, %v3457
        %v3474 = vadd.f32 %v3377, %v3458
        %v3475 = vadd.f32 %v3378, %v3459
        %v3476 = vadd.f32 %v3379, %v3460
        %v3477 = vadd.f32 %v3380, %v3461
        %v3478 = vadd.f32 %v3381, %v3462
        %v3479 = vadd.f32 %v3382, %v3463
        %v3480 = vadd.f32 %v3383, %v3464
        %v3481 = vadd.f32 %v3384, %v3465
        %v3482 = vadd.f32 %v3385, %v3466
        %v3483 = vadd.f32 %v3386, %v3467
        %v3484 = vadd.f32 %v3387, %v3468
        %3485 = vst [vmem:[#allocation2] sm:$0xff] %v3469
        %3486 = vst [vmem:[#allocation2 + $0x8] sm:$0xff] %v3470
        %3487 = vst [vmem:[#allocation2 + $0x10] sm:$0xff] %v3471
        %3488 = vst [vmem:[#allocation2 + $0x18] sm:$0xff] %v3472
        %3489 = vst [vmem:[#allocation2 + $0x20] sm:$0xff] %v3473
        %3490 = vst [vmem:[#allocation2 + $0x28] sm:$0xff] %v3474
        %3491 = vst [vmem:[#allocation2 + $0x30] sm:$0xff] %v3475
        %3492 = vst [vmem:[#allocation2 + $0x38] sm:$0xff] %v3476
        %3493 = vst [vmem:[#allocation2 + $0x40] sm:$0xff] %v3477
        %3494 = vst [vmem:[#allocation2 + $0x48] sm:$0xff] %v3478
        %3495 = vst [vmem:[#allocation2 + $0x50] sm:$0xff] %v3479
        %3496 = vst [vmem:[#allocation2 + $0x58] sm:$0xff] %v3480
        %3497 = vst [vmem:[#allocation2 + $0x60] sm:$0xff] %v3481
        %3498 = vst [vmem:[#allocation2 + $0x68] sm:$0xff] %v3482
        %3499 = vst [vmem:[#allocation2 + $0x70] sm:$0xff] %v3483
        %3500 = vst [vmem:[#allocation2 + $0x78] sm:$0xff] %v3484
        // Predicated region
        $region33: #{tpu_custom_call.1} parent=27 // pred_check
          %p3501 = pneg %p96
        $region34: #{tpu_custom_call.1} parent=27 // pred_check_branch
          %3503 = sbr.rel (%p3501) target = $region36
        $region35: #{tpu_custom_call.1} parent=27 // pred_region
          %s3504 = smul.u32 16, %s18
          %s3506 = ssub.s32 2048, 2048
          %3507 = vsyncadd [#allocation3], %s3506
          %s3508 = smul.addr %s3504, 128
          %s3509 = scalar_lea.hbm %s2, %s3508
          %s3510 = sshll.u32 [#allocation2], 4
          %s3511 = int_to_ptr.vmem [resolvable:$true] %s3510
          %3516 = dma.vmem_to_hbm [thread:$0]  %s3511, 2048, %s3509, [#allocation3], 128, 128, 8
        $region36: #{tpu_custom_call.1} parent=27 // pred_fallthru
          _
        // Predicated region
        $region37: #{tpu_custom_call.1} parent=27 // pred_check
          %p3517 = pneg %p96
        $region38: #{tpu_custom_call.1} parent=27 // pred_check_branch
          %3519 = sbr.rel (%p3517) target = $region40
        $region39: #{tpu_custom_call.1} parent=27 // pred_region
          %3520 = dma.done [#allocation3], 2048
        $region40: #{tpu_custom_call.1} parent=27 // pred_fallthru
          _
      $region28: #{tpu_custom_call.1} parent=5 // pred_fallthru
        _
      %p3521 = scmp.le.s32.totalorder 2, %s9
      // Predicated region
      $region41: #{tpu_custom_call.1} parent=5 // pred_check
        %p3522 = pneg %p3521
      $region42: #{tpu_custom_call.1} parent=5 // pred_check_branch
        %3524 = sbr.rel (%p3522) target = $region44
      $region43: #{tpu_custom_call.1} parent=5 // pred_region
        %s3525 = ssub.s32 %s9, 2
      $region44: #{tpu_custom_call.1} parent=5 // pred_fallthru
        _
    $region6: #{tpu_custom_call.1} parent=1 // loop_footer
      %s13 = sadd.s32 1, %s9
    $region7: #{tpu_custom_call.1} parent=1 // loop_footer_branch
      %8 = sbr.rel target = $region3
    $region8: #{tpu_custom_call.1} parent=1 // loop_exit
      _
    %3526 = vsyncpa [#allocation3], 1
    %s3527 = scalar_lea.sflag [#allocation3], 1
    %3528 = vsyncpa %s3527, 1

</llo_original>
